<compile_context>
chip_gen: v5e
topology: v5e:2x2
jax: 0.10.0
libtpu: 0.0.40
codegen_flags: <defaults>
</compile_context>

<pallas_src>
import functools

import jax
import jax.numpy as jnp
from jax.experimental import pallas as pl
from jax.experimental.pallas import tpu as pltpu


# Whole-array-in-VMEM spec: every operand of the fused kernel is tiny, so the
# full network's weights + activations are kept VMEM-resident.
_VMEM = pl.BlockSpec(memory_space=pltpu.MemorySpace.VMEM)


# --------------------------- fused network kernel ---------------------------

def _resnet_fused_kernel(*refs, plan, batch):
    """Entire ResNet1D_M forward in one kernel.

    refs = (x_ref, *param_refs, out_ref)
      x_ref:      (B*L, Cin) channels-last activation slab.
      param refs: consumed in order: stem (w, scale, shift); per block:
                  [res w/scale/shift if down], conv1 w/scale/shift,
                  conv2 w/scale/shift; finally fc_w, fc_b.  Conv weights are
                  (K*Cin, Cout); scale/shift are (1, Cout) with eval-mode BN
                  and the conv bias already folded in.
      out_ref:    (B, n_class)
    """
    x_ref = refs[0]
    out_ref = refs[-1]
    param_it = iter(refs[1:-1])
    B = batch

    def nxt():
        return next(param_it)[...]

    def pad_rows(x, L, pad):
        # (B*L, C) -> (B*(L+2*pad), C): zero rows framing each batch segment.
        if pad == 0:
            return x
        C = x.shape[1]
        z = jnp.zeros((pad, C), jnp.float32)
        pieces = []
        for b in range(B):
            pieces.extend([z, x[b * L:(b + 1) * L, :], z])
        return jnp.concatenate(pieces, axis=0)

    def im2col_s1(x, L, K, pad):
        # Stride-1 im2col -> (B*L_out, K*C).  Taps are contiguous row slices
        # of the in-kernel padded slab, concatenated along lanes.
        L_out = L + 2 * pad - K + 1
        L_pad = L + 2 * pad
        xp = pad_rows(x, L, pad)
        taps = []
        for k in range(K):
            taps.append(jnp.concatenate(
                [xp[b * L_pad + k:b * L_pad + k + L_out, :] for b in range(B)],
                axis=0))
        return (taps[0] if K == 1 else jnp.concatenate(taps, axis=1)), L_out

    def im2col_s2(x, L, K, pad):
        # Stride-2 im2col: only even output positions are produced.  The
        # strided row gather is a one-hot selection matmul (MXU gather); taps
        # that fall inside the zero padding select nothing -> zero rows.
        L_out = (L + 2 * pad - K) // 2 + 1
        row = jax.lax.broadcasted_iota(jnp.int32, (L_out, L), 0)
        col = jax.lax.broadcasted_iota(jnp.int32, (L_out, L), 1)
        taps = []
        for k in range(K):
            src = 2 * row + (k - pad)            # input row feeding this tap
            sel = jnp.where(col == src, jnp.float32(1.0), jnp.float32(0.0))
            per_b = [jnp.dot(sel, x[b * L:(b + 1) * L, :],
                             preferred_element_type=jnp.float32)
                     for b in range(B)]
            taps.append(per_b[0] if B == 1 else jnp.concatenate(per_b, axis=0))
        return (taps[0] if K == 1 else jnp.concatenate(taps, axis=1)), L_out

    def conv_bn(x, L, w, scale, shift, *, K, stride, pad, relu, residual=None):
        cols, L_out = (im2col_s1(x, L, K, pad) if stride == 1
                       else im2col_s2(x, L, K, pad))
        out = jnp.dot(cols, w, preferred_element_type=jnp.float32)
        out = out * scale + shift                # folded BN (+ conv bias)
        if residual is not None:
            out = out + residual
        if relu:
            out = jnp.maximum(out, 0.0)
        return out, L_out

    x = x_ref[...].astype(jnp.float32)
    L = x.shape[0] // B

    # --- stem: conv1(K=7, pad=3, stride=1) + norm1 + relu ---
    stem_K, stem_pad = plan[0]
    w, sc, sh = nxt(), nxt(), nxt()
    x, L = conv_bn(x, L, w, sc, sh, K=stem_K, stride=1, pad=stem_pad, relu=True)

    # --- residual stages (drop_rate == 0.0 -> dropout is identity) ---
    for down, K, pad in plan[1]:
        if down:
            rw, rsc, rsh = nxt(), nxt(), nxt()
            identity, _ = conv_bn(x, L, rw, rsc, rsh,
                                  K=1, stride=2, pad=0, relu=False)
            w1, s1, h1 = nxt(), nxt(), nxt()
            y, L1 = conv_bn(x, L, w1, s1, h1,
                            K=K, stride=2, pad=pad, relu=True)
        else:
            identity = x
            w1, s1, h1 = nxt(), nxt(), nxt()
            y, L1 = conv_bn(x, L, w1, s1, h1,
                            K=K, stride=1, pad=pad, relu=True)
        w2, s2, h2 = nxt(), nxt(), nxt()
        x, L = conv_bn(y, L1, w2, s2, h2, K=K, stride=1, pad=pad, relu=True,
                       residual=identity)

    # --- AdaptiveAvgPool1d(1) + Linear, fused ---
    fw, fb = nxt(), nxt()
    pooled = jnp.concatenate(
        [jnp.mean(x[b * L:(b + 1) * L, :], axis=0, keepdims=True)
         for b in range(B)], axis=0)             # (B, C_last)
    out_ref[...] = jnp.dot(pooled, fw, preferred_element_type=jnp.float32) + fb


# ------------------------------- wrapper -------------------------------------

def make_forward(plan, n_class):
    """Jitted forward: (B, C_in, L) NCL input -> (B, n_class) logits."""

    @jax.jit
    def forward(x_ncl, flat_params):
        B, Cin, L = x_ncl.shape
        # Single layout transform at the model boundary: NCL -> (B*L, Cin).
        x = jnp.transpose(x_ncl, (0, 2, 1)).reshape(B * L, Cin)
        x = x.astype(jnp.float32)
        kernel = functools.partial(_resnet_fused_kernel, plan=plan, batch=B)
        return pl.pallas_call(
            kernel,
            out_shape=jax.ShapeDtypeStruct((B, n_class), jnp.float32),
            in_specs=[_VMEM] * (1 + len(flat_params)),
            out_specs=_VMEM,
        )(x, *flat_params)

    return forward


def _flatten_params(params):
    """Flattens params into the exact consumption order of the kernel."""
    flat = [params["stem"]["w"], params["stem"]["scale"], params["stem"]["shift"]]
    for blk in params["blocks"]:
        if "res" in blk:
            flat += [blk["res"]["w"], blk["res"]["scale"], blk["res"]["shift"]]
        flat += [blk["conv1"]["w"], blk["conv1"]["scale"], blk["conv1"]["shift"]]
        flat += [blk["conv2"]["w"], blk["conv2"]["scale"], blk["conv2"]["shift"]]
    flat += [params["fc_w"], params["fc_b"]]
    return flat


# ------------------------------ parameters ------------------------------------

def init_conv_bn(key, cin, cout, K):
    """Conv1d(+bias) + eval-mode BatchNorm1d folded to (K*Cin,Cout) w, scale, shift."""
    ks = jax.random.split(key, 6)
    w = jax.random.normal(ks[0], (K, cin, cout), jnp.float32) / jnp.sqrt(cin * K)
    bias = 0.02 * jax.random.normal(ks[1], (cout,), jnp.float32)
    gamma = 1.0 + 0.1 * jax.random.normal(ks[2], (cout,), jnp.float32)
    beta = 0.1 * jax.random.normal(ks[3], (cout,), jnp.float32)
    rmean = 0.05 * jax.random.normal(ks[4], (cout,), jnp.float32)
    rvar = 1.0 + 0.1 * jnp.abs(jax.random.normal(ks[5], (cout,), jnp.float32))
    eps = 1e-5
    scale = gamma / jnp.sqrt(rvar + eps)
    shift = beta - rmean * scale + bias * scale   # conv bias folded into shift
    return {"w": w.reshape(K * cin, cout),        # one-shot im2col matmul weight
            "scale": scale.reshape(1, cout),
            "shift": shift.reshape(1, cout)}


def init_resnet(key, in_channels, layers, n_class, ks=3, pa=1, stages=18):
    config = [2, 2, 2, 2] if stages == 18 else [3, 4, 6, 3]
    keys = iter(jax.random.split(key, 256))
    params = {"stem": init_conv_bn(next(keys), in_channels, layers[0], 7)}
    blocks, down_flags = [], []

    def add_stage(cin, cout, down, num_l):
        blk = {"conv1": init_conv_bn(next(keys), cin, cout, ks),
               "conv2": init_conv_bn(next(keys), cout, cout, ks)}
        if down:
            blk["res"] = init_conv_bn(next(keys), cin, cout, 1)
        blocks.append(blk)
        down_flags.append(down)
        for _ in range(1, num_l):
            blocks.append({"conv1": init_conv_bn(next(keys), cout, cout, ks),
                           "conv2": init_conv_bn(next(keys), cout, cout, ks)})
            down_flags.append(False)

    add_stage(layers[0], layers[0], False, config[0])
    add_stage(layers[0], layers[1], True, config[1])
    add_stage(layers[1], layers[2], True, config[2])
    add_stage(layers[2], layers[3], True, config[3])
    params["blocks"] = blocks

    kf1, kf2 = jax.random.split(next(keys))
    params["fc_w"] = (jax.random.normal(kf1, (layers[3], n_class), jnp.float32)
                      / jnp.sqrt(layers[3]))
    params["fc_b"] = 0.02 * jax.random.normal(kf2, (1, n_class), jnp.float32)

    plan = ((7, 3), tuple((bool(d), ks, pa) for d in down_flags))
    return params, plan


# --------------------------- pure-JAX reference --------------------------------

def _reference_forward(x_ncl, params, plan):
    """Plain-jnp reference (shifted matmuls) for numerical validation."""
    x = jnp.transpose(x_ncl, (0, 2, 1)).astype(jnp.float32)     # (B, L, C)

    def conv_bn(x, p, K, stride, pad, relu, residual=None):
        B, L, Cin = x.shape
        w = p["w"].reshape(K, Cin, -1)
        xp = jnp.pad(x, ((0, 0), (pad, pad), (0, 0)))
        L_out = (L + 2 * pad - K) // stride + 1
        acc = jnp.zeros((B, L_out, w.shape[-1]), jnp.float32)
        for k in range(K):
            sl = xp[:, k:k + stride * (L_out - 1) + 1:stride, :]
            acc = acc + jnp.einsum("blc,co->blo", sl, w[k])
        out = acc * p["scale"][None] + p["shift"][None]
        if residual is not None:
            out = out + residual
        if relu:
            out = jnp.maximum(out, 0.0)
        return out

    (stem_K, stem_pad), blocks_plan = plan
    x = conv_bn(x, params["stem"], stem_K, 1, stem_pad, True)
    for blk, (down, K, pad) in zip(params["blocks"], blocks_plan):
        if down:
            identity = conv_bn(x, blk["res"], 1, 2, 0, False)
            y = conv_bn(x, blk["conv1"], K, 2, pad, True)
        else:
            identity = x
            y = conv_bn(x, blk["conv1"], K, 1, pad, True)
        x = conv_bn(y, blk["conv2"], K, 1, pad, True, residual=identity)
    pooled = jnp.mean(x, axis=1)
    return jnp.dot(pooled, params["fc_w"]) + params["fc_b"]


# ----------------------------------- main --------------------------------------

if __name__ == "__main__":
    key = jax.random.PRNGKey(0)
    kx, kp = jax.random.split(key)

    in_channels, layers, n_class = 4, [8, 16, 32, 64], 3
    B, L = 2, 16

    # Input in PyTorch NCL layout: (batch, in_channels, length)
    x = jax.random.normal(kx, (B, in_channels, L), jnp.float32)
    params, plan = init_resnet(kp, in_channels, layers, n_class)
    flat_params = _flatten_params(params)

    forward = make_forward(plan, n_class)
    out = jax.block_until_ready(forward(x, flat_params))

    assert out.shape == (B, n_class), out.shape
    assert bool(jnp.all(jnp.isfinite(out)))

    # Validate against the pure-JAX reference (loose tol: MXU precision noise).
    ref = _reference_forward(x, params, plan)
    assert bool(jnp.allclose(out, ref, rtol=5e-2, atol=5e-2)), (out, ref)

    print("KERNEL_OK")
</pallas_src>

<mosaic_0001>
module attributes {stable_mosaic.version = 11 : i64} {
  func.func @_resnet_fused_kernel(%arg0: memref<32x4xf32, #tpu.memory_space<vmem>>, %arg1: memref<28x8xf32, #tpu.memory_space<vmem>>, %arg2: memref<1x8xf32, #tpu.memory_space<vmem>>, %arg3: memref<1x8xf32, #tpu.memory_space<vmem>>, %arg4: memref<24x8xf32, #tpu.memory_space<vmem>>, %arg5: memref<1x8xf32, #tpu.memory_space<vmem>>, %arg6: memref<1x8xf32, #tpu.memory_space<vmem>>, %arg7: memref<24x8xf32, #tpu.memory_space<vmem>>, %arg8: memref<1x8xf32, #tpu.memory_space<vmem>>, %arg9: memref<1x8xf32, #tpu.memory_space<vmem>>, %arg10: memref<24x8xf32, #tpu.memory_space<vmem>>, %arg11: memref<1x8xf32, #tpu.memory_space<vmem>>, %arg12: memref<1x8xf32, #tpu.memory_space<vmem>>, %arg13: memref<24x8xf32, #tpu.memory_space<vmem>>, %arg14: memref<1x8xf32, #tpu.memory_space<vmem>>, %arg15: memref<1x8xf32, #tpu.memory_space<vmem>>, %arg16: memref<8x16xf32, #tpu.memory_space<vmem>>, %arg17: memref<1x16xf32, #tpu.memory_space<vmem>>, %arg18: memref<1x16xf32, #tpu.memory_space<vmem>>, %arg19: memref<24x16xf32, #tpu.memory_space<vmem>>, %arg20: memref<1x16xf32, #tpu.memory_space<vmem>>, %arg21: memref<1x16xf32, #tpu.memory_space<vmem>>, %arg22: memref<48x16xf32, #tpu.memory_space<vmem>>, %arg23: memref<1x16xf32, #tpu.memory_space<vmem>>, %arg24: memref<1x16xf32, #tpu.memory_space<vmem>>, %arg25: memref<48x16xf32, #tpu.memory_space<vmem>>, %arg26: memref<1x16xf32, #tpu.memory_space<vmem>>, %arg27: memref<1x16xf32, #tpu.memory_space<vmem>>, %arg28: memref<48x16xf32, #tpu.memory_space<vmem>>, %arg29: memref<1x16xf32, #tpu.memory_space<vmem>>, %arg30: memref<1x16xf32, #tpu.memory_space<vmem>>, %arg31: memref<16x32xf32, #tpu.memory_space<vmem>>, %arg32: memref<1x32xf32, #tpu.memory_space<vmem>>, %arg33: memref<1x32xf32, #tpu.memory_space<vmem>>, %arg34: memref<48x32xf32, #tpu.memory_space<vmem>>, %arg35: memref<1x32xf32, #tpu.memory_space<vmem>>, %arg36: memref<1x32xf32, #tpu.memory_space<vmem>>, %arg37: memref<96x32xf32, #tpu.memory_space<vmem>>, %arg38: memref<1x32xf32, #tpu.memory_space<vmem>>, %arg39: memref<1x32xf32, #tpu.memory_space<vmem>>, %arg40: memref<96x32xf32, #tpu.memory_space<vmem>>, %arg41: memref<1x32xf32, #tpu.memory_space<vmem>>, %arg42: memref<1x32xf32, #tpu.memory_space<vmem>>, %arg43: memref<96x32xf32, #tpu.memory_space<vmem>>, %arg44: memref<1x32xf32, #tpu.memory_space<vmem>>, %arg45: memref<1x32xf32, #tpu.memory_space<vmem>>, %arg46: memref<32x64xf32, #tpu.memory_space<vmem>>, %arg47: memref<1x64xf32, #tpu.memory_space<vmem>>, %arg48: memref<1x64xf32, #tpu.memory_space<vmem>>, %arg49: memref<96x64xf32, #tpu.memory_space<vmem>>, %arg50: memref<1x64xf32, #tpu.memory_space<vmem>>, %arg51: memref<1x64xf32, #tpu.memory_space<vmem>>, %arg52: memref<192x64xf32, #tpu.memory_space<vmem>>, %arg53: memref<1x64xf32, #tpu.memory_space<vmem>>, %arg54: memref<1x64xf32, #tpu.memory_space<vmem>>, %arg55: memref<192x64xf32, #tpu.memory_space<vmem>>, %arg56: memref<1x64xf32, #tpu.memory_space<vmem>>, %arg57: memref<1x64xf32, #tpu.memory_space<vmem>>, %arg58: memref<192x64xf32, #tpu.memory_space<vmem>>, %arg59: memref<1x64xf32, #tpu.memory_space<vmem>>, %arg60: memref<1x64xf32, #tpu.memory_space<vmem>>, %arg61: memref<64x3xf32, #tpu.memory_space<vmem>>, %arg62: memref<1x3xf32, #tpu.memory_space<vmem>>, %arg63: memref<2x3xf32, #tpu.memory_space<vmem>>) attributes {dimension_semantics = [], scalar_prefetch = 0 : i64, scratch_operands = 0 : i64, tpu.core_type = #tpu.core_type<tc>} {
    %c0 = arith.constant 0 : index
    %c0_0 = arith.constant 0 : index
    %0 = vector.load %arg0[%c0, %c0_0] : memref<32x4xf32, #tpu.memory_space<vmem>>, vector<32x4xf32>
    %c0_1 = arith.constant 0 : index
    %c0_2 = arith.constant 0 : index
    %1 = vector.load %arg1[%c0_1, %c0_2] : memref<28x8xf32, #tpu.memory_space<vmem>>, vector<28x8xf32>
    %c0_3 = arith.constant 0 : index
    %c0_4 = arith.constant 0 : index
    %2 = vector.load %arg2[%c0_3, %c0_4] : memref<1x8xf32, #tpu.memory_space<vmem>>, vector<1x8xf32>
    %c0_5 = arith.constant 0 : index
    %c0_6 = arith.constant 0 : index
    %3 = vector.load %arg3[%c0_5, %c0_6] : memref<1x8xf32, #tpu.memory_space<vmem>>, vector<1x8xf32>
    %cst = arith.constant 0.000000e+00 : f32
    %4 = vector.broadcast %cst : f32 to vector<3x4xf32>
    %5 = vector.extract_strided_slice %0 {offsets = [0, 0], sizes = [16, 4], strides = [1, 1]} : vector<32x4xf32> to vector<16x4xf32>
    %6 = vector.extract_strided_slice %0 {offsets = [16, 0], sizes = [16, 4], strides = [1, 1]} : vector<32x4xf32> to vector<16x4xf32>
    %7 = tpu.concatenate %4, %5, %4, %4, %6, %4 in 0 : vector<3x4xf32>, vector<16x4xf32>, vector<3x4xf32>, vector<3x4xf32>, vector<16x4xf32>, vector<3x4xf32> -> vector<44x4xf32>
    %8 = vector.extract_strided_slice %7 {offsets = [0, 0], sizes = [16, 4], strides = [1, 1]} : vector<44x4xf32> to vector<16x4xf32>
    %9 = vector.extract_strided_slice %7 {offsets = [22, 0], sizes = [16, 4], strides = [1, 1]} : vector<44x4xf32> to vector<16x4xf32>
    %10 = tpu.concatenate %8, %9 in 0 : vector<16x4xf32>, vector<16x4xf32> -> vector<32x4xf32>
    %11 = vector.extract_strided_slice %7 {offsets = [1, 0], sizes = [16, 4], strides = [1, 1]} : vector<44x4xf32> to vector<16x4xf32>
    %12 = vector.extract_strided_slice %7 {offsets = [23, 0], sizes = [16, 4], strides = [1, 1]} : vector<44x4xf32> to vector<16x4xf32>
    %13 = tpu.concatenate %11, %12 in 0 : vector<16x4xf32>, vector<16x4xf32> -> vector<32x4xf32>
    %14 = vector.extract_strided_slice %7 {offsets = [2, 0], sizes = [16, 4], strides = [1, 1]} : vector<44x4xf32> to vector<16x4xf32>
    %15 = vector.extract_strided_slice %7 {offsets = [24, 0], sizes = [16, 4], strides = [1, 1]} : vector<44x4xf32> to vector<16x4xf32>
    %16 = tpu.concatenate %14, %15 in 0 : vector<16x4xf32>, vector<16x4xf32> -> vector<32x4xf32>
    %17 = vector.extract_strided_slice %7 {offsets = [3, 0], sizes = [16, 4], strides = [1, 1]} : vector<44x4xf32> to vector<16x4xf32>
    %18 = vector.extract_strided_slice %7 {offsets = [25, 0], sizes = [16, 4], strides = [1, 1]} : vector<44x4xf32> to vector<16x4xf32>
    %19 = tpu.concatenate %17, %18 in 0 : vector<16x4xf32>, vector<16x4xf32> -> vector<32x4xf32>
    %20 = vector.extract_strided_slice %7 {offsets = [4, 0], sizes = [16, 4], strides = [1, 1]} : vector<44x4xf32> to vector<16x4xf32>
    %21 = vector.extract_strided_slice %7 {offsets = [26, 0], sizes = [16, 4], strides = [1, 1]} : vector<44x4xf32> to vector<16x4xf32>
    %22 = tpu.concatenate %20, %21 in 0 : vector<16x4xf32>, vector<16x4xf32> -> vector<32x4xf32>
    %23 = vector.extract_strided_slice %7 {offsets = [5, 0], sizes = [16, 4], strides = [1, 1]} : vector<44x4xf32> to vector<16x4xf32>
    %24 = vector.extract_strided_slice %7 {offsets = [27, 0], sizes = [16, 4], strides = [1, 1]} : vector<44x4xf32> to vector<16x4xf32>
    %25 = tpu.concatenate %23, %24 in 0 : vector<16x4xf32>, vector<16x4xf32> -> vector<32x4xf32>
    %26 = vector.extract_strided_slice %7 {offsets = [6, 0], sizes = [16, 4], strides = [1, 1]} : vector<44x4xf32> to vector<16x4xf32>
    %27 = vector.extract_strided_slice %7 {offsets = [28, 0], sizes = [16, 4], strides = [1, 1]} : vector<44x4xf32> to vector<16x4xf32>
    %28 = tpu.concatenate %26, %27 in 0 : vector<16x4xf32>, vector<16x4xf32> -> vector<32x4xf32>
    %29 = tpu.concatenate %10, %13, %16, %19, %22, %25, %28 in 1 : vector<32x4xf32>, vector<32x4xf32>, vector<32x4xf32>, vector<32x4xf32>, vector<32x4xf32>, vector<32x4xf32>, vector<32x4xf32> -> vector<32x28xf32>
    %cst_7 = arith.constant dense<0.000000e+00> : vector<32x8xf32>
    %30 = tpu.matmul %29, %1, %cst_7 {dimension_numbers = #tpu.dot_dimension_numbers<[1], [0], [0], [1], [0, 0, 1, 1], [], []>} : vector<32x28xf32>, vector<28x8xf32>, vector<32x8xf32> -> vector<32x8xf32>
    %31 = vector.broadcast %2 : vector<1x8xf32> to vector<32x8xf32>
    %32 = arith.mulf %30, %31 : vector<32x8xf32>
    %33 = vector.broadcast %3 : vector<1x8xf32> to vector<32x8xf32>
    %34 = arith.addf %32, %33 : vector<32x8xf32>
    %cst_8 = arith.constant 0.000000e+00 : f32
    %35 = vector.broadcast %cst_8 : f32 to vector<32x8xf32>
    %36 = arith.maximumf %34, %35 : vector<32x8xf32>
    %c0_9 = arith.constant 0 : index
    %c0_10 = arith.constant 0 : index
    %37 = vector.load %arg4[%c0_9, %c0_10] : memref<24x8xf32, #tpu.memory_space<vmem>>, vector<24x8xf32>
    %c0_11 = arith.constant 0 : index
    %c0_12 = arith.constant 0 : index
    %38 = vector.load %arg5[%c0_11, %c0_12] : memref<1x8xf32, #tpu.memory_space<vmem>>, vector<1x8xf32>
    %c0_13 = arith.constant 0 : index
    %c0_14 = arith.constant 0 : index
    %39 = vector.load %arg6[%c0_13, %c0_14] : memref<1x8xf32, #tpu.memory_space<vmem>>, vector<1x8xf32>
    %cst_15 = arith.constant 0.000000e+00 : f32
    %40 = vector.broadcast %cst_15 : f32 to vector<1x8xf32>
    %41 = vector.extract_strided_slice %36 {offsets = [0, 0], sizes = [16, 8], strides = [1, 1]} : vector<32x8xf32> to vector<16x8xf32>
    %42 = vector.extract_strided_slice %36 {offsets = [16, 0], sizes = [16, 8], strides = [1, 1]} : vector<32x8xf32> to vector<16x8xf32>
    %43 = tpu.concatenate %40, %41, %40, %40, %42, %40 in 0 : vector<1x8xf32>, vector<16x8xf32>, vector<1x8xf32>, vector<1x8xf32>, vector<16x8xf32>, vector<1x8xf32> -> vector<36x8xf32>
    %44 = vector.extract_strided_slice %43 {offsets = [0, 0], sizes = [16, 8], strides = [1, 1]} : vector<36x8xf32> to vector<16x8xf32>
    %45 = vector.extract_strided_slice %43 {offsets = [18, 0], sizes = [16, 8], strides = [1, 1]} : vector<36x8xf32> to vector<16x8xf32>
    %46 = tpu.concatenate %44, %45 in 0 : vector<16x8xf32>, vector<16x8xf32> -> vector<32x8xf32>
    %47 = vector.extract_strided_slice %43 {offsets = [1, 0], sizes = [16, 8], strides = [1, 1]} : vector<36x8xf32> to vector<16x8xf32>
    %48 = vector.extract_strided_slice %43 {offsets = [19, 0], sizes = [16, 8], strides = [1, 1]} : vector<36x8xf32> to vector<16x8xf32>
    %49 = tpu.concatenate %47, %48 in 0 : vector<16x8xf32>, vector<16x8xf32> -> vector<32x8xf32>
    %50 = vector.extract_strided_slice %43 {offsets = [2, 0], sizes = [16, 8], strides = [1, 1]} : vector<36x8xf32> to vector<16x8xf32>
    %51 = vector.extract_strided_slice %43 {offsets = [20, 0], sizes = [16, 8], strides = [1, 1]} : vector<36x8xf32> to vector<16x8xf32>
    %52 = tpu.concatenate %50, %51 in 0 : vector<16x8xf32>, vector<16x8xf32> -> vector<32x8xf32>
    %53 = tpu.concatenate %46, %49, %52 in 1 : vector<32x8xf32>, vector<32x8xf32>, vector<32x8xf32> -> vector<32x24xf32>
    %cst_16 = arith.constant dense<0.000000e+00> : vector<32x8xf32>
    %54 = tpu.matmul %53, %37, %cst_16 {dimension_numbers = #tpu.dot_dimension_numbers<[1], [0], [0], [1], [0, 0, 1, 1], [], []>} : vector<32x24xf32>, vector<24x8xf32>, vector<32x8xf32> -> vector<32x8xf32>
    %55 = vector.broadcast %38 : vector<1x8xf32> to vector<32x8xf32>
    %56 = arith.mulf %54, %55 : vector<32x8xf32>
    %57 = vector.broadcast %39 : vector<1x8xf32> to vector<32x8xf32>
    %58 = arith.addf %56, %57 : vector<32x8xf32>
    %cst_17 = arith.constant 0.000000e+00 : f32
    %59 = vector.broadcast %cst_17 : f32 to vector<32x8xf32>
    %60 = arith.maximumf %58, %59 : vector<32x8xf32>
    %c0_18 = arith.constant 0 : index
    %c0_19 = arith.constant 0 : index
    %61 = vector.load %arg7[%c0_18, %c0_19] : memref<24x8xf32, #tpu.memory_space<vmem>>, vector<24x8xf32>
    %c0_20 = arith.constant 0 : index
    %c0_21 = arith.constant 0 : index
    %62 = vector.load %arg8[%c0_20, %c0_21] : memref<1x8xf32, #tpu.memory_space<vmem>>, vector<1x8xf32>
    %c0_22 = arith.constant 0 : index
    %c0_23 = arith.constant 0 : index
    %63 = vector.load %arg9[%c0_22, %c0_23] : memref<1x8xf32, #tpu.memory_space<vmem>>, vector<1x8xf32>
    %cst_24 = arith.constant 0.000000e+00 : f32
    %64 = vector.broadcast %cst_24 : f32 to vector<1x8xf32>
    %65 = vector.extract_strided_slice %60 {offsets = [0, 0], sizes = [16, 8], strides = [1, 1]} : vector<32x8xf32> to vector<16x8xf32>
    %66 = vector.extract_strided_slice %60 {offsets = [16, 0], sizes = [16, 8], strides = [1, 1]} : vector<32x8xf32> to vector<16x8xf32>
    %67 = tpu.concatenate %64, %65, %64, %64, %66, %64 in 0 : vector<1x8xf32>, vector<16x8xf32>, vector<1x8xf32>, vector<1x8xf32>, vector<16x8xf32>, vector<1x8xf32> -> vector<36x8xf32>
    %68 = vector.extract_strided_slice %67 {offsets = [0, 0], sizes = [16, 8], strides = [1, 1]} : vector<36x8xf32> to vector<16x8xf32>
    %69 = vector.extract_strided_slice %67 {offsets = [18, 0], sizes = [16, 8], strides = [1, 1]} : vector<36x8xf32> to vector<16x8xf32>
    %70 = tpu.concatenate %68, %69 in 0 : vector<16x8xf32>, vector<16x8xf32> -> vector<32x8xf32>
    %71 = vector.extract_strided_slice %67 {offsets = [1, 0], sizes = [16, 8], strides = [1, 1]} : vector<36x8xf32> to vector<16x8xf32>
    %72 = vector.extract_strided_slice %67 {offsets = [19, 0], sizes = [16, 8], strides = [1, 1]} : vector<36x8xf32> to vector<16x8xf32>
    %73 = tpu.concatenate %71, %72 in 0 : vector<16x8xf32>, vector<16x8xf32> -> vector<32x8xf32>
    %74 = vector.extract_strided_slice %67 {offsets = [2, 0], sizes = [16, 8], strides = [1, 1]} : vector<36x8xf32> to vector<16x8xf32>
    %75 = vector.extract_strided_slice %67 {offsets = [20, 0], sizes = [16, 8], strides = [1, 1]} : vector<36x8xf32> to vector<16x8xf32>
    %76 = tpu.concatenate %74, %75 in 0 : vector<16x8xf32>, vector<16x8xf32> -> vector<32x8xf32>
    %77 = tpu.concatenate %70, %73, %76 in 1 : vector<32x8xf32>, vector<32x8xf32>, vector<32x8xf32> -> vector<32x24xf32>
    %cst_25 = arith.constant dense<0.000000e+00> : vector<32x8xf32>
    %78 = tpu.matmul %77, %61, %cst_25 {dimension_numbers = #tpu.dot_dimension_numbers<[1], [0], [0], [1], [0, 0, 1, 1], [], []>} : vector<32x24xf32>, vector<24x8xf32>, vector<32x8xf32> -> vector<32x8xf32>
    %79 = vector.broadcast %62 : vector<1x8xf32> to vector<32x8xf32>
    %80 = arith.mulf %78, %79 : vector<32x8xf32>
    %81 = vector.broadcast %63 : vector<1x8xf32> to vector<32x8xf32>
    %82 = arith.addf %80, %81 : vector<32x8xf32>
    %83 = arith.addf %82, %36 : vector<32x8xf32>
    %cst_26 = arith.constant 0.000000e+00 : f32
    %84 = vector.broadcast %cst_26 : f32 to vector<32x8xf32>
    %85 = arith.maximumf %83, %84 : vector<32x8xf32>
    %c0_27 = arith.constant 0 : index
    %c0_28 = arith.constant 0 : index
    %86 = vector.load %arg10[%c0_27, %c0_28] : memref<24x8xf32, #tpu.memory_space<vmem>>, vector<24x8xf32>
    %c0_29 = arith.constant 0 : index
    %c0_30 = arith.constant 0 : index
    %87 = vector.load %arg11[%c0_29, %c0_30] : memref<1x8xf32, #tpu.memory_space<vmem>>, vector<1x8xf32>
    %c0_31 = arith.constant 0 : index
    %c0_32 = arith.constant 0 : index
    %88 = vector.load %arg12[%c0_31, %c0_32] : memref<1x8xf32, #tpu.memory_space<vmem>>, vector<1x8xf32>
    %cst_33 = arith.constant 0.000000e+00 : f32
    %89 = vector.broadcast %cst_33 : f32 to vector<1x8xf32>
    %90 = vector.extract_strided_slice %85 {offsets = [0, 0], sizes = [16, 8], strides = [1, 1]} : vector<32x8xf32> to vector<16x8xf32>
    %91 = vector.extract_strided_slice %85 {offsets = [16, 0], sizes = [16, 8], strides = [1, 1]} : vector<32x8xf32> to vector<16x8xf32>
    %92 = tpu.concatenate %89, %90, %89, %89, %91, %89 in 0 : vector<1x8xf32>, vector<16x8xf32>, vector<1x8xf32>, vector<1x8xf32>, vector<16x8xf32>, vector<1x8xf32> -> vector<36x8xf32>
    %93 = vector.extract_strided_slice %92 {offsets = [0, 0], sizes = [16, 8], strides = [1, 1]} : vector<36x8xf32> to vector<16x8xf32>
    %94 = vector.extract_strided_slice %92 {offsets = [18, 0], sizes = [16, 8], strides = [1, 1]} : vector<36x8xf32> to vector<16x8xf32>
    %95 = tpu.concatenate %93, %94 in 0 : vector<16x8xf32>, vector<16x8xf32> -> vector<32x8xf32>
    %96 = vector.extract_strided_slice %92 {offsets = [1, 0], sizes = [16, 8], strides = [1, 1]} : vector<36x8xf32> to vector<16x8xf32>
    %97 = vector.extract_strided_slice %92 {offsets = [19, 0], sizes = [16, 8], strides = [1, 1]} : vector<36x8xf32> to vector<16x8xf32>
    %98 = tpu.concatenate %96, %97 in 0 : vector<16x8xf32>, vector<16x8xf32> -> vector<32x8xf32>
    %99 = vector.extract_strided_slice %92 {offsets = [2, 0], sizes = [16, 8], strides = [1, 1]} : vector<36x8xf32> to vector<16x8xf32>
    %100 = vector.extract_strided_slice %92 {offsets = [20, 0], sizes = [16, 8], strides = [1, 1]} : vector<36x8xf32> to vector<16x8xf32>
    %101 = tpu.concatenate %99, %100 in 0 : vector<16x8xf32>, vector<16x8xf32> -> vector<32x8xf32>
    %102 = tpu.concatenate %95, %98, %101 in 1 : vector<32x8xf32>, vector<32x8xf32>, vector<32x8xf32> -> vector<32x24xf32>
    %cst_34 = arith.constant dense<0.000000e+00> : vector<32x8xf32>
    %103 = tpu.matmul %102, %86, %cst_34 {dimension_numbers = #tpu.dot_dimension_numbers<[1], [0], [0], [1], [0, 0, 1, 1], [], []>} : vector<32x24xf32>, vector<24x8xf32>, vector<32x8xf32> -> vector<32x8xf32>
    %104 = vector.broadcast %87 : vector<1x8xf32> to vector<32x8xf32>
    %105 = arith.mulf %103, %104 : vector<32x8xf32>
    %106 = vector.broadcast %88 : vector<1x8xf32> to vector<32x8xf32>
    %107 = arith.addf %105, %106 : vector<32x8xf32>
    %cst_35 = arith.constant 0.000000e+00 : f32
    %108 = vector.broadcast %cst_35 : f32 to vector<32x8xf32>
    %109 = arith.maximumf %107, %108 : vector<32x8xf32>
    %c0_36 = arith.constant 0 : index
    %c0_37 = arith.constant 0 : index
    %110 = vector.load %arg13[%c0_36, %c0_37] : memref<24x8xf32, #tpu.memory_space<vmem>>, vector<24x8xf32>
    %c0_38 = arith.constant 0 : index
    %c0_39 = arith.constant 0 : index
    %111 = vector.load %arg14[%c0_38, %c0_39] : memref<1x8xf32, #tpu.memory_space<vmem>>, vector<1x8xf32>
    %c0_40 = arith.constant 0 : index
    %c0_41 = arith.constant 0 : index
    %112 = vector.load %arg15[%c0_40, %c0_41] : memref<1x8xf32, #tpu.memory_space<vmem>>, vector<1x8xf32>
    %cst_42 = arith.constant 0.000000e+00 : f32
    %113 = vector.broadcast %cst_42 : f32 to vector<1x8xf32>
    %114 = vector.extract_strided_slice %109 {offsets = [0, 0], sizes = [16, 8], strides = [1, 1]} : vector<32x8xf32> to vector<16x8xf32>
    %115 = vector.extract_strided_slice %109 {offsets = [16, 0], sizes = [16, 8], strides = [1, 1]} : vector<32x8xf32> to vector<16x8xf32>
    %116 = tpu.concatenate %113, %114, %113, %113, %115, %113 in 0 : vector<1x8xf32>, vector<16x8xf32>, vector<1x8xf32>, vector<1x8xf32>, vector<16x8xf32>, vector<1x8xf32> -> vector<36x8xf32>
    %117 = vector.extract_strided_slice %116 {offsets = [0, 0], sizes = [16, 8], strides = [1, 1]} : vector<36x8xf32> to vector<16x8xf32>
    %118 = vector.extract_strided_slice %116 {offsets = [18, 0], sizes = [16, 8], strides = [1, 1]} : vector<36x8xf32> to vector<16x8xf32>
    %119 = tpu.concatenate %117, %118 in 0 : vector<16x8xf32>, vector<16x8xf32> -> vector<32x8xf32>
    %120 = vector.extract_strided_slice %116 {offsets = [1, 0], sizes = [16, 8], strides = [1, 1]} : vector<36x8xf32> to vector<16x8xf32>
    %121 = vector.extract_strided_slice %116 {offsets = [19, 0], sizes = [16, 8], strides = [1, 1]} : vector<36x8xf32> to vector<16x8xf32>
    %122 = tpu.concatenate %120, %121 in 0 : vector<16x8xf32>, vector<16x8xf32> -> vector<32x8xf32>
    %123 = vector.extract_strided_slice %116 {offsets = [2, 0], sizes = [16, 8], strides = [1, 1]} : vector<36x8xf32> to vector<16x8xf32>
    %124 = vector.extract_strided_slice %116 {offsets = [20, 0], sizes = [16, 8], strides = [1, 1]} : vector<36x8xf32> to vector<16x8xf32>
    %125 = tpu.concatenate %123, %124 in 0 : vector<16x8xf32>, vector<16x8xf32> -> vector<32x8xf32>
    %126 = tpu.concatenate %119, %122, %125 in 1 : vector<32x8xf32>, vector<32x8xf32>, vector<32x8xf32> -> vector<32x24xf32>
    %cst_43 = arith.constant dense<0.000000e+00> : vector<32x8xf32>
    %127 = tpu.matmul %126, %110, %cst_43 {dimension_numbers = #tpu.dot_dimension_numbers<[1], [0], [0], [1], [0, 0, 1, 1], [], []>} : vector<32x24xf32>, vector<24x8xf32>, vector<32x8xf32> -> vector<32x8xf32>
    %128 = vector.broadcast %111 : vector<1x8xf32> to vector<32x8xf32>
    %129 = arith.mulf %127, %128 : vector<32x8xf32>
    %130 = vector.broadcast %112 : vector<1x8xf32> to vector<32x8xf32>
    %131 = arith.addf %129, %130 : vector<32x8xf32>
    %132 = arith.addf %131, %85 : vector<32x8xf32>
    %cst_44 = arith.constant 0.000000e+00 : f32
    %133 = vector.broadcast %cst_44 : f32 to vector<32x8xf32>
    %134 = arith.maximumf %132, %133 : vector<32x8xf32>
    %c0_45 = arith.constant 0 : index
    %c0_46 = arith.constant 0 : index
    %135 = vector.load %arg16[%c0_45, %c0_46] : memref<8x16xf32, #tpu.memory_space<vmem>>, vector<8x16xf32>
    %c0_47 = arith.constant 0 : index
    %c0_48 = arith.constant 0 : index
    %136 = vector.load %arg17[%c0_47, %c0_48] : memref<1x16xf32, #tpu.memory_space<vmem>>, vector<1x16xf32>
    %c0_49 = arith.constant 0 : index
    %c0_50 = arith.constant 0 : index
    %137 = vector.load %arg18[%c0_49, %c0_50] : memref<1x16xf32, #tpu.memory_space<vmem>>, vector<1x16xf32>
    %138 = tpu.iota {dimensions = array<i32: 0>} : vector<8x16xi32>
    %139 = tpu.iota {dimensions = array<i32: 1>} : vector<8x16xi32>
    %c2_i32 = arith.constant 2 : i32
    %140 = vector.broadcast %c2_i32 : i32 to vector<8x16xi32>
    %141 = arith.muli %140, %138 : vector<8x16xi32>
    %c0_i32 = arith.constant 0 : i32
    %142 = vector.broadcast %c0_i32 : i32 to vector<8x16xi32>
    %143 = arith.addi %141, %142 : vector<8x16xi32>
    %144 = arith.cmpi eq, %139, %143 : vector<8x16xi32>
    %cst_51 = arith.constant 1.000000e+00 : f32
    %cst_52 = arith.constant 0.000000e+00 : f32
    %145 = vector.broadcast %cst_51 : f32 to vector<8x16xf32>
    %146 = vector.broadcast %cst_52 : f32 to vector<8x16xf32>
    %147 = arith.select %144, %145, %146 : vector<8x16xi1>, vector<8x16xf32>
    %148 = vector.extract_strided_slice %134 {offsets = [0, 0], sizes = [16, 8], strides = [1, 1]} : vector<32x8xf32> to vector<16x8xf32>
    %cst_53 = arith.constant dense<0.000000e+00> : vector<8x8xf32>
    %149 = tpu.matmul %147, %148, %cst_53 {dimension_numbers = #tpu.dot_dimension_numbers<[1], [0], [0], [1], [0, 0, 1, 1], [], []>} : vector<8x16xf32>, vector<16x8xf32>, vector<8x8xf32> -> vector<8x8xf32>
    %150 = vector.extract_strided_slice %134 {offsets = [16, 0], sizes = [16, 8], strides = [1, 1]} : vector<32x8xf32> to vector<16x8xf32>
    %cst_54 = arith.constant dense<0.000000e+00> : vector<8x8xf32>
    %151 = tpu.matmul %147, %150, %cst_54 {dimension_numbers = #tpu.dot_dimension_numbers<[1], [0], [0], [1], [0, 0, 1, 1], [], []>} : vector<8x16xf32>, vector<16x8xf32>, vector<8x8xf32> -> vector<8x8xf32>
    %152 = tpu.concatenate %149, %151 in 0 : vector<8x8xf32>, vector<8x8xf32> -> vector<16x8xf32>
    %cst_55 = arith.constant dense<0.000000e+00> : vector<16x16xf32>
    %153 = tpu.matmul %152, %135, %cst_55 {dimension_numbers = #tpu.dot_dimension_numbers<[1], [0], [0], [1], [0, 0, 1, 1], [], []>} : vector<16x8xf32>, vector<8x16xf32>, vector<16x16xf32> -> vector<16x16xf32>
    %154 = vector.broadcast %136 : vector<1x16xf32> to vector<16x16xf32>
    %155 = arith.mulf %153, %154 : vector<16x16xf32>
    %156 = vector.broadcast %137 : vector<1x16xf32> to vector<16x16xf32>
    %157 = arith.addf %155, %156 : vector<16x16xf32>
    %c0_56 = arith.constant 0 : index
    %c0_57 = arith.constant 0 : index
    %158 = vector.load %arg19[%c0_56, %c0_57] : memref<24x16xf32, #tpu.memory_space<vmem>>, vector<24x16xf32>
    %c0_58 = arith.constant 0 : index
    %c0_59 = arith.constant 0 : index
    %159 = vector.load %arg20[%c0_58, %c0_59] : memref<1x16xf32, #tpu.memory_space<vmem>>, vector<1x16xf32>
    %c0_60 = arith.constant 0 : index
    %c0_61 = arith.constant 0 : index
    %160 = vector.load %arg21[%c0_60, %c0_61] : memref<1x16xf32, #tpu.memory_space<vmem>>, vector<1x16xf32>
    %161 = tpu.iota {dimensions = array<i32: 0>} : vector<8x16xi32>
    %162 = tpu.iota {dimensions = array<i32: 1>} : vector<8x16xi32>
    %c2_i32_62 = arith.constant 2 : i32
    %163 = vector.broadcast %c2_i32_62 : i32 to vector<8x16xi32>
    %164 = arith.muli %163, %161 : vector<8x16xi32>
    %c-1_i32 = arith.constant -1 : i32
    %165 = vector.broadcast %c-1_i32 : i32 to vector<8x16xi32>
    %166 = arith.addi %164, %165 : vector<8x16xi32>
    %167 = arith.cmpi eq, %162, %166 : vector<8x16xi32>
    %cst_63 = arith.constant 1.000000e+00 : f32
    %cst_64 = arith.constant 0.000000e+00 : f32
    %168 = vector.broadcast %cst_63 : f32 to vector<8x16xf32>
    %169 = vector.broadcast %cst_64 : f32 to vector<8x16xf32>
    %170 = arith.select %167, %168, %169 : vector<8x16xi1>, vector<8x16xf32>
    %171 = vector.extract_strided_slice %134 {offsets = [0, 0], sizes = [16, 8], strides = [1, 1]} : vector<32x8xf32> to vector<16x8xf32>
    %cst_65 = arith.constant dense<0.000000e+00> : vector<8x8xf32>
    %172 = tpu.matmul %170, %171, %cst_65 {dimension_numbers = #tpu.dot_dimension_numbers<[1], [0], [0], [1], [0, 0, 1, 1], [], []>} : vector<8x16xf32>, vector<16x8xf32>, vector<8x8xf32> -> vector<8x8xf32>
    %173 = vector.extract_strided_slice %134 {offsets = [16, 0], sizes = [16, 8], strides = [1, 1]} : vector<32x8xf32> to vector<16x8xf32>
    %cst_66 = arith.constant dense<0.000000e+00> : vector<8x8xf32>
    %174 = tpu.matmul %170, %173, %cst_66 {dimension_numbers = #tpu.dot_dimension_numbers<[1], [0], [0], [1], [0, 0, 1, 1], [], []>} : vector<8x16xf32>, vector<16x8xf32>, vector<8x8xf32> -> vector<8x8xf32>
    %175 = tpu.concatenate %172, %174 in 0 : vector<8x8xf32>, vector<8x8xf32> -> vector<16x8xf32>
    %c2_i32_67 = arith.constant 2 : i32
    %176 = vector.broadcast %c2_i32_67 : i32 to vector<8x16xi32>
    %177 = arith.muli %176, %161 : vector<8x16xi32>
    %c0_i32_68 = arith.constant 0 : i32
    %178 = vector.broadcast %c0_i32_68 : i32 to vector<8x16xi32>
    %179 = arith.addi %177, %178 : vector<8x16xi32>
    %180 = arith.cmpi eq, %162, %179 : vector<8x16xi32>
    %cst_69 = arith.constant 1.000000e+00 : f32
    %cst_70 = arith.constant 0.000000e+00 : f32
    %181 = vector.broadcast %cst_69 : f32 to vector<8x16xf32>
    %182 = vector.broadcast %cst_70 : f32 to vector<8x16xf32>
    %183 = arith.select %180, %181, %182 : vector<8x16xi1>, vector<8x16xf32>
    %184 = vector.extract_strided_slice %134 {offsets = [0, 0], sizes = [16, 8], strides = [1, 1]} : vector<32x8xf32> to vector<16x8xf32>
    %cst_71 = arith.constant dense<0.000000e+00> : vector<8x8xf32>
    %185 = tpu.matmul %183, %184, %cst_71 {dimension_numbers = #tpu.dot_dimension_numbers<[1], [0], [0], [1], [0, 0, 1, 1], [], []>} : vector<8x16xf32>, vector<16x8xf32>, vector<8x8xf32> -> vector<8x8xf32>
    %186 = vector.extract_strided_slice %134 {offsets = [16, 0], sizes = [16, 8], strides = [1, 1]} : vector<32x8xf32> to vector<16x8xf32>
    %cst_72 = arith.constant dense<0.000000e+00> : vector<8x8xf32>
    %187 = tpu.matmul %183, %186, %cst_72 {dimension_numbers = #tpu.dot_dimension_numbers<[1], [0], [0], [1], [0, 0, 1, 1], [], []>} : vector<8x16xf32>, vector<16x8xf32>, vector<8x8xf32> -> vector<8x8xf32>
    %188 = tpu.concatenate %185, %187 in 0 : vector<8x8xf32>, vector<8x8xf32> -> vector<16x8xf32>
    %c2_i32_73 = arith.constant 2 : i32
    %189 = vector.broadcast %c2_i32_73 : i32 to vector<8x16xi32>
    %190 = arith.muli %189, %161 : vector<8x16xi32>
    %c1_i32 = arith.constant 1 : i32
    %191 = vector.broadcast %c1_i32 : i32 to vector<8x16xi32>
    %192 = arith.addi %190, %191 : vector<8x16xi32>
    %193 = arith.cmpi eq, %162, %192 : vector<8x16xi32>
    %cst_74 = arith.constant 1.000000e+00 : f32
    %cst_75 = arith.constant 0.000000e+00 : f32
    %194 = vector.broadcast %cst_74 : f32 to vector<8x16xf32>
    %195 = vector.broadcast %cst_75 : f32 to vector<8x16xf32>
    %196 = arith.select %193, %194, %195 : vector<8x16xi1>, vector<8x16xf32>
    %197 = vector.extract_strided_slice %134 {offsets = [0, 0], sizes = [16, 8], strides = [1, 1]} : vector<32x8xf32> to vector<16x8xf32>
    %cst_76 = arith.constant dense<0.000000e+00> : vector<8x8xf32>
    %198 = tpu.matmul %196, %197, %cst_76 {dimension_numbers = #tpu.dot_dimension_numbers<[1], [0], [0], [1], [0, 0, 1, 1], [], []>} : vector<8x16xf32>, vector<16x8xf32>, vector<8x8xf32> -> vector<8x8xf32>
    %199 = vector.extract_strided_slice %134 {offsets = [16, 0], sizes = [16, 8], strides = [1, 1]} : vector<32x8xf32> to vector<16x8xf32>
    %cst_77 = arith.constant dense<0.000000e+00> : vector<8x8xf32>
    %200 = tpu.matmul %196, %199, %cst_77 {dimension_numbers = #tpu.dot_dimension_numbers<[1], [0], [0], [1], [0, 0, 1, 1], [], []>} : vector<8x16xf32>, vector<16x8xf32>, vector<8x8xf32> -> vector<8x8xf32>
    %201 = tpu.concatenate %198, %200 in 0 : vector<8x8xf32>, vector<8x8xf32> -> vector<16x8xf32>
    %202 = tpu.concatenate %175, %188, %201 in 1 : vector<16x8xf32>, vector<16x8xf32>, vector<16x8xf32> -> vector<16x24xf32>
    %cst_78 = arith.constant dense<0.000000e+00> : vector<16x16xf32>
    %203 = tpu.matmul %202, %158, %cst_78 {dimension_numbers = #tpu.dot_dimension_numbers<[1], [0], [0], [1], [0, 0, 1, 1], [], []>} : vector<16x24xf32>, vector<24x16xf32>, vector<16x16xf32> -> vector<16x16xf32>
    %204 = vector.broadcast %159 : vector<1x16xf32> to vector<16x16xf32>
    %205 = arith.mulf %203, %204 : vector<16x16xf32>
    %206 = vector.broadcast %160 : vector<1x16xf32> to vector<16x16xf32>
    %207 = arith.addf %205, %206 : vector<16x16xf32>
    %cst_79 = arith.constant 0.000000e+00 : f32
    %208 = vector.broadcast %cst_79 : f32 to vector<16x16xf32>
    %209 = arith.maximumf %207, %208 : vector<16x16xf32>
    %c0_80 = arith.constant 0 : index
    %c0_81 = arith.constant 0 : index
    %210 = vector.load %arg22[%c0_80, %c0_81] : memref<48x16xf32, #tpu.memory_space<vmem>>, vector<48x16xf32>
    %c0_82 = arith.constant 0 : index
    %c0_83 = arith.constant 0 : index
    %211 = vector.load %arg23[%c0_82, %c0_83] : memref<1x16xf32, #tpu.memory_space<vmem>>, vector<1x16xf32>
    %c0_84 = arith.constant 0 : index
    %c0_85 = arith.constant 0 : index
    %212 = vector.load %arg24[%c0_84, %c0_85] : memref<1x16xf32, #tpu.memory_space<vmem>>, vector<1x16xf32>
    %cst_86 = arith.constant 0.000000e+00 : f32
    %213 = vector.broadcast %cst_86 : f32 to vector<1x16xf32>
    %214 = vector.extract_strided_slice %209 {offsets = [0, 0], sizes = [8, 16], strides = [1, 1]} : vector<16x16xf32> to vector<8x16xf32>
    %215 = vector.extract_strided_slice %209 {offsets = [8, 0], sizes = [8, 16], strides = [1, 1]} : vector<16x16xf32> to vector<8x16xf32>
    %216 = tpu.concatenate %213, %214, %213, %213, %215, %213 in 0 : vector<1x16xf32>, vector<8x16xf32>, vector<1x16xf32>, vector<1x16xf32>, vector<8x16xf32>, vector<1x16xf32> -> vector<20x16xf32>
    %217 = vector.extract_strided_slice %216 {offsets = [0, 0], sizes = [8, 16], strides = [1, 1]} : vector<20x16xf32> to vector<8x16xf32>
    %218 = vector.extract_strided_slice %216 {offsets = [10, 0], sizes = [8, 16], strides = [1, 1]} : vector<20x16xf32> to vector<8x16xf32>
    %219 = tpu.concatenate %217, %218 in 0 : vector<8x16xf32>, vector<8x16xf32> -> vector<16x16xf32>
    %220 = vector.extract_strided_slice %216 {offsets = [1, 0], sizes = [8, 16], strides = [1, 1]} : vector<20x16xf32> to vector<8x16xf32>
    %221 = vector.extract_strided_slice %216 {offsets = [11, 0], sizes = [8, 16], strides = [1, 1]} : vector<20x16xf32> to vector<8x16xf32>
    %222 = tpu.concatenate %220, %221 in 0 : vector<8x16xf32>, vector<8x16xf32> -> vector<16x16xf32>
    %223 = vector.extract_strided_slice %216 {offsets = [2, 0], sizes = [8, 16], strides = [1, 1]} : vector<20x16xf32> to vector<8x16xf32>
    %224 = vector.extract_strided_slice %216 {offsets = [12, 0], sizes = [8, 16], strides = [1, 1]} : vector<20x16xf32> to vector<8x16xf32>
    %225 = tpu.concatenate %223, %224 in 0 : vector<8x16xf32>, vector<8x16xf32> -> vector<16x16xf32>
    %226 = tpu.concatenate %219, %222, %225 in 1 : vector<16x16xf32>, vector<16x16xf32>, vector<16x16xf32> -> vector<16x48xf32>
    %cst_87 = arith.constant dense<0.000000e+00> : vector<16x16xf32>
    %227 = tpu.matmul %226, %210, %cst_87 {dimension_numbers = #tpu.dot_dimension_numbers<[1], [0], [0], [1], [0, 0, 1, 1], [], []>} : vector<16x48xf32>, vector<48x16xf32>, vector<16x16xf32> -> vector<16x16xf32>
    %228 = vector.broadcast %211 : vector<1x16xf32> to vector<16x16xf32>
    %229 = arith.mulf %227, %228 : vector<16x16xf32>
    %230 = vector.broadcast %212 : vector<1x16xf32> to vector<16x16xf32>
    %231 = arith.addf %229, %230 : vector<16x16xf32>
    %232 = arith.addf %231, %157 : vector<16x16xf32>
    %cst_88 = arith.constant 0.000000e+00 : f32
    %233 = vector.broadcast %cst_88 : f32 to vector<16x16xf32>
    %234 = arith.maximumf %232, %233 : vector<16x16xf32>
    %c0_89 = arith.constant 0 : index
    %c0_90 = arith.constant 0 : index
    %235 = vector.load %arg25[%c0_89, %c0_90] : memref<48x16xf32, #tpu.memory_space<vmem>>, vector<48x16xf32>
    %c0_91 = arith.constant 0 : index
    %c0_92 = arith.constant 0 : index
    %236 = vector.load %arg26[%c0_91, %c0_92] : memref<1x16xf32, #tpu.memory_space<vmem>>, vector<1x16xf32>
    %c0_93 = arith.constant 0 : index
    %c0_94 = arith.constant 0 : index
    %237 = vector.load %arg27[%c0_93, %c0_94] : memref<1x16xf32, #tpu.memory_space<vmem>>, vector<1x16xf32>
    %cst_95 = arith.constant 0.000000e+00 : f32
    %238 = vector.broadcast %cst_95 : f32 to vector<1x16xf32>
    %239 = vector.extract_strided_slice %234 {offsets = [0, 0], sizes = [8, 16], strides = [1, 1]} : vector<16x16xf32> to vector<8x16xf32>
    %240 = vector.extract_strided_slice %234 {offsets = [8, 0], sizes = [8, 16], strides = [1, 1]} : vector<16x16xf32> to vector<8x16xf32>
    %241 = tpu.concatenate %238, %239, %238, %238, %240, %238 in 0 : vector<1x16xf32>, vector<8x16xf32>, vector<1x16xf32>, vector<1x16xf32>, vector<8x16xf32>, vector<1x16xf32> -> vector<20x16xf32>
    %242 = vector.extract_strided_slice %241 {offsets = [0, 0], sizes = [8, 16], strides = [1, 1]} : vector<20x16xf32> to vector<8x16xf32>
    %243 = vector.extract_strided_slice %241 {offsets = [10, 0], sizes = [8, 16], strides = [1, 1]} : vector<20x16xf32> to vector<8x16xf32>
    %244 = tpu.concatenate %242, %243 in 0 : vector<8x16xf32>, vector<8x16xf32> -> vector<16x16xf32>
    %245 = vector.extract_strided_slice %241 {offsets = [1, 0], sizes = [8, 16], strides = [1, 1]} : vector<20x16xf32> to vector<8x16xf32>
    %246 = vector.extract_strided_slice %241 {offsets = [11, 0], sizes = [8, 16], strides = [1, 1]} : vector<20x16xf32> to vector<8x16xf32>
    %247 = tpu.concatenate %245, %246 in 0 : vector<8x16xf32>, vector<8x16xf32> -> vector<16x16xf32>
    %248 = vector.extract_strided_slice %241 {offsets = [2, 0], sizes = [8, 16], strides = [1, 1]} : vector<20x16xf32> to vector<8x16xf32>
    %249 = vector.extract_strided_slice %241 {offsets = [12, 0], sizes = [8, 16], strides = [1, 1]} : vector<20x16xf32> to vector<8x16xf32>
    %250 = tpu.concatenate %248, %249 in 0 : vector<8x16xf32>, vector<8x16xf32> -> vector<16x16xf32>
    %251 = tpu.concatenate %244, %247, %250 in 1 : vector<16x16xf32>, vector<16x16xf32>, vector<16x16xf32> -> vector<16x48xf32>
    %cst_96 = arith.constant dense<0.000000e+00> : vector<16x16xf32>
    %252 = tpu.matmul %251, %235, %cst_96 {dimension_numbers = #tpu.dot_dimension_numbers<[1], [0], [0], [1], [0, 0, 1, 1], [], []>} : vector<16x48xf32>, vector<48x16xf32>, vector<16x16xf32> -> vector<16x16xf32>
    %253 = vector.broadcast %236 : vector<1x16xf32> to vector<16x16xf32>
    %254 = arith.mulf %252, %253 : vector<16x16xf32>
    %255 = vector.broadcast %237 : vector<1x16xf32> to vector<16x16xf32>
    %256 = arith.addf %254, %255 : vector<16x16xf32>
    %cst_97 = arith.constant 0.000000e+00 : f32
    %257 = vector.broadcast %cst_97 : f32 to vector<16x16xf32>
    %258 = arith.maximumf %256, %257 : vector<16x16xf32>
    %c0_98 = arith.constant 0 : index
    %c0_99 = arith.constant 0 : index
    %259 = vector.load %arg28[%c0_98, %c0_99] : memref<48x16xf32, #tpu.memory_space<vmem>>, vector<48x16xf32>
    %c0_100 = arith.constant 0 : index
    %c0_101 = arith.constant 0 : index
    %260 = vector.load %arg29[%c0_100, %c0_101] : memref<1x16xf32, #tpu.memory_space<vmem>>, vector<1x16xf32>
    %c0_102 = arith.constant 0 : index
    %c0_103 = arith.constant 0 : index
    %261 = vector.load %arg30[%c0_102, %c0_103] : memref<1x16xf32, #tpu.memory_space<vmem>>, vector<1x16xf32>
    %cst_104 = arith.constant 0.000000e+00 : f32
    %262 = vector.broadcast %cst_104 : f32 to vector<1x16xf32>
    %263 = vector.extract_strided_slice %258 {offsets = [0, 0], sizes = [8, 16], strides = [1, 1]} : vector<16x16xf32> to vector<8x16xf32>
    %264 = vector.extract_strided_slice %258 {offsets = [8, 0], sizes = [8, 16], strides = [1, 1]} : vector<16x16xf32> to vector<8x16xf32>
    %265 = tpu.concatenate %262, %263, %262, %262, %264, %262 in 0 : vector<1x16xf32>, vector<8x16xf32>, vector<1x16xf32>, vector<1x16xf32>, vector<8x16xf32>, vector<1x16xf32> -> vector<20x16xf32>
    %266 = vector.extract_strided_slice %265 {offsets = [0, 0], sizes = [8, 16], strides = [1, 1]} : vector<20x16xf32> to vector<8x16xf32>
    %267 = vector.extract_strided_slice %265 {offsets = [10, 0], sizes = [8, 16], strides = [1, 1]} : vector<20x16xf32> to vector<8x16xf32>
    %268 = tpu.concatenate %266, %267 in 0 : vector<8x16xf32>, vector<8x16xf32> -> vector<16x16xf32>
    %269 = vector.extract_strided_slice %265 {offsets = [1, 0], sizes = [8, 16], strides = [1, 1]} : vector<20x16xf32> to vector<8x16xf32>
    %270 = vector.extract_strided_slice %265 {offsets = [11, 0], sizes = [8, 16], strides = [1, 1]} : vector<20x16xf32> to vector<8x16xf32>
    %271 = tpu.concatenate %269, %270 in 0 : vector<8x16xf32>, vector<8x16xf32> -> vector<16x16xf32>
    %272 = vector.extract_strided_slice %265 {offsets = [2, 0], sizes = [8, 16], strides = [1, 1]} : vector<20x16xf32> to vector<8x16xf32>
    %273 = vector.extract_strided_slice %265 {offsets = [12, 0], sizes = [8, 16], strides = [1, 1]} : vector<20x16xf32> to vector<8x16xf32>
    %274 = tpu.concatenate %272, %273 in 0 : vector<8x16xf32>, vector<8x16xf32> -> vector<16x16xf32>
    %275 = tpu.concatenate %268, %271, %274 in 1 : vector<16x16xf32>, vector<16x16xf32>, vector<16x16xf32> -> vector<16x48xf32>
    %cst_105 = arith.constant dense<0.000000e+00> : vector<16x16xf32>
    %276 = tpu.matmul %275, %259, %cst_105 {dimension_numbers = #tpu.dot_dimension_numbers<[1], [0], [0], [1], [0, 0, 1, 1], [], []>} : vector<16x48xf32>, vector<48x16xf32>, vector<16x16xf32> -> vector<16x16xf32>
    %277 = vector.broadcast %260 : vector<1x16xf32> to vector<16x16xf32>
    %278 = arith.mulf %276, %277 : vector<16x16xf32>
    %279 = vector.broadcast %261 : vector<1x16xf32> to vector<16x16xf32>
    %280 = arith.addf %278, %279 : vector<16x16xf32>
    %281 = arith.addf %280, %234 : vector<16x16xf32>
    %cst_106 = arith.constant 0.000000e+00 : f32
    %282 = vector.broadcast %cst_106 : f32 to vector<16x16xf32>
    %283 = arith.maximumf %281, %282 : vector<16x16xf32>
    %c0_107 = arith.constant 0 : index
    %c0_108 = arith.constant 0 : index
    %284 = vector.load %arg31[%c0_107, %c0_108] : memref<16x32xf32, #tpu.memory_space<vmem>>, vector<16x32xf32>
    %c0_109 = arith.constant 0 : index
    %c0_110 = arith.constant 0 : index
    %285 = vector.load %arg32[%c0_109, %c0_110] : memref<1x32xf32, #tpu.memory_space<vmem>>, vector<1x32xf32>
    %c0_111 = arith.constant 0 : index
    %c0_112 = arith.constant 0 : index
    %286 = vector.load %arg33[%c0_111, %c0_112] : memref<1x32xf32, #tpu.memory_space<vmem>>, vector<1x32xf32>
    %287 = tpu.iota {dimensions = array<i32: 0>} : vector<4x8xi32>
    %288 = tpu.iota {dimensions = array<i32: 1>} : vector<4x8xi32>
    %c2_i32_113 = arith.constant 2 : i32
    %289 = vector.broadcast %c2_i32_113 : i32 to vector<4x8xi32>
    %290 = arith.muli %289, %287 : vector<4x8xi32>
    %c0_i32_114 = arith.constant 0 : i32
    %291 = vector.broadcast %c0_i32_114 : i32 to vector<4x8xi32>
    %292 = arith.addi %290, %291 : vector<4x8xi32>
    %293 = arith.cmpi eq, %288, %292 : vector<4x8xi32>
    %cst_115 = arith.constant 1.000000e+00 : f32
    %cst_116 = arith.constant 0.000000e+00 : f32
    %294 = vector.broadcast %cst_115 : f32 to vector<4x8xf32>
    %295 = vector.broadcast %cst_116 : f32 to vector<4x8xf32>
    %296 = arith.select %293, %294, %295 : vector<4x8xi1>, vector<4x8xf32>
    %297 = vector.extract_strided_slice %283 {offsets = [0, 0], sizes = [8, 16], strides = [1, 1]} : vector<16x16xf32> to vector<8x16xf32>
    %cst_117 = arith.constant dense<0.000000e+00> : vector<4x16xf32>
    %298 = tpu.matmul %296, %297, %cst_117 {dimension_numbers = #tpu.dot_dimension_numbers<[1], [0], [0], [1], [0, 0, 1, 1], [], []>} : vector<4x8xf32>, vector<8x16xf32>, vector<4x16xf32> -> vector<4x16xf32>
    %299 = vector.extract_strided_slice %283 {offsets = [8, 0], sizes = [8, 16], strides = [1, 1]} : vector<16x16xf32> to vector<8x16xf32>
    %cst_118 = arith.constant dense<0.000000e+00> : vector<4x16xf32>
    %300 = tpu.matmul %296, %299, %cst_118 {dimension_numbers = #tpu.dot_dimension_numbers<[1], [0], [0], [1], [0, 0, 1, 1], [], []>} : vector<4x8xf32>, vector<8x16xf32>, vector<4x16xf32> -> vector<4x16xf32>
    %301 = tpu.concatenate %298, %300 in 0 : vector<4x16xf32>, vector<4x16xf32> -> vector<8x16xf32>
    %cst_119 = arith.constant dense<0.000000e+00> : vector<8x32xf32>
    %302 = tpu.matmul %301, %284, %cst_119 {dimension_numbers = #tpu.dot_dimension_numbers<[1], [0], [0], [1], [0, 0, 1, 1], [], []>} : vector<8x16xf32>, vector<16x32xf32>, vector<8x32xf32> -> vector<8x32xf32>
    %303 = vector.broadcast %285 : vector<1x32xf32> to vector<8x32xf32>
    %304 = arith.mulf %302, %303 : vector<8x32xf32>
    %305 = vector.broadcast %286 : vector<1x32xf32> to vector<8x32xf32>
    %306 = arith.addf %304, %305 : vector<8x32xf32>
    %c0_120 = arith.constant 0 : index
    %c0_121 = arith.constant 0 : index
    %307 = vector.load %arg34[%c0_120, %c0_121] : memref<48x32xf32, #tpu.memory_space<vmem>>, vector<48x32xf32>
    %c0_122 = arith.constant 0 : index
    %c0_123 = arith.constant 0 : index
    %308 = vector.load %arg35[%c0_122, %c0_123] : memref<1x32xf32, #tpu.memory_space<vmem>>, vector<1x32xf32>
    %c0_124 = arith.constant 0 : index
    %c0_125 = arith.constant 0 : index
    %309 = vector.load %arg36[%c0_124, %c0_125] : memref<1x32xf32, #tpu.memory_space<vmem>>, vector<1x32xf32>
    %310 = tpu.iota {dimensions = array<i32: 0>} : vector<4x8xi32>
    %311 = tpu.iota {dimensions = array<i32: 1>} : vector<4x8xi32>
    %c2_i32_126 = arith.constant 2 : i32
    %312 = vector.broadcast %c2_i32_126 : i32 to vector<4x8xi32>
    %313 = arith.muli %312, %310 : vector<4x8xi32>
    %c-1_i32_127 = arith.constant -1 : i32
    %314 = vector.broadcast %c-1_i32_127 : i32 to vector<4x8xi32>
    %315 = arith.addi %313, %314 : vector<4x8xi32>
    %316 = arith.cmpi eq, %311, %315 : vector<4x8xi32>
    %cst_128 = arith.constant 1.000000e+00 : f32
    %cst_129 = arith.constant 0.000000e+00 : f32
    %317 = vector.broadcast %cst_128 : f32 to vector<4x8xf32>
    %318 = vector.broadcast %cst_129 : f32 to vector<4x8xf32>
    %319 = arith.select %316, %317, %318 : vector<4x8xi1>, vector<4x8xf32>
    %320 = vector.extract_strided_slice %283 {offsets = [0, 0], sizes = [8, 16], strides = [1, 1]} : vector<16x16xf32> to vector<8x16xf32>
    %cst_130 = arith.constant dense<0.000000e+00> : vector<4x16xf32>
    %321 = tpu.matmul %319, %320, %cst_130 {dimension_numbers = #tpu.dot_dimension_numbers<[1], [0], [0], [1], [0, 0, 1, 1], [], []>} : vector<4x8xf32>, vector<8x16xf32>, vector<4x16xf32> -> vector<4x16xf32>
    %322 = vector.extract_strided_slice %283 {offsets = [8, 0], sizes = [8, 16], strides = [1, 1]} : vector<16x16xf32> to vector<8x16xf32>
    %cst_131 = arith.constant dense<0.000000e+00> : vector<4x16xf32>
    %323 = tpu.matmul %319, %322, %cst_131 {dimension_numbers = #tpu.dot_dimension_numbers<[1], [0], [0], [1], [0, 0, 1, 1], [], []>} : vector<4x8xf32>, vector<8x16xf32>, vector<4x16xf32> -> vector<4x16xf32>
    %324 = tpu.concatenate %321, %323 in 0 : vector<4x16xf32>, vector<4x16xf32> -> vector<8x16xf32>
    %c2_i32_132 = arith.constant 2 : i32
    %325 = vector.broadcast %c2_i32_132 : i32 to vector<4x8xi32>
    %326 = arith.muli %325, %310 : vector<4x8xi32>
    %c0_i32_133 = arith.constant 0 : i32
    %327 = vector.broadcast %c0_i32_133 : i32 to vector<4x8xi32>
    %328 = arith.addi %326, %327 : vector<4x8xi32>
    %329 = arith.cmpi eq, %311, %328 : vector<4x8xi32>
    %cst_134 = arith.constant 1.000000e+00 : f32
    %cst_135 = arith.constant 0.000000e+00 : f32
    %330 = vector.broadcast %cst_134 : f32 to vector<4x8xf32>
    %331 = vector.broadcast %cst_135 : f32 to vector<4x8xf32>
    %332 = arith.select %329, %330, %331 : vector<4x8xi1>, vector<4x8xf32>
    %333 = vector.extract_strided_slice %283 {offsets = [0, 0], sizes = [8, 16], strides = [1, 1]} : vector<16x16xf32> to vector<8x16xf32>
    %cst_136 = arith.constant dense<0.000000e+00> : vector<4x16xf32>
    %334 = tpu.matmul %332, %333, %cst_136 {dimension_numbers = #tpu.dot_dimension_numbers<[1], [0], [0], [1], [0, 0, 1, 1], [], []>} : vector<4x8xf32>, vector<8x16xf32>, vector<4x16xf32> -> vector<4x16xf32>
    %335 = vector.extract_strided_slice %283 {offsets = [8, 0], sizes = [8, 16], strides = [1, 1]} : vector<16x16xf32> to vector<8x16xf32>
    %cst_137 = arith.constant dense<0.000000e+00> : vector<4x16xf32>
    %336 = tpu.matmul %332, %335, %cst_137 {dimension_numbers = #tpu.dot_dimension_numbers<[1], [0], [0], [1], [0, 0, 1, 1], [], []>} : vector<4x8xf32>, vector<8x16xf32>, vector<4x16xf32> -> vector<4x16xf32>
    %337 = tpu.concatenate %334, %336 in 0 : vector<4x16xf32>, vector<4x16xf32> -> vector<8x16xf32>
    %c2_i32_138 = arith.constant 2 : i32
    %338 = vector.broadcast %c2_i32_138 : i32 to vector<4x8xi32>
    %339 = arith.muli %338, %310 : vector<4x8xi32>
    %c1_i32_139 = arith.constant 1 : i32
    %340 = vector.broadcast %c1_i32_139 : i32 to vector<4x8xi32>
    %341 = arith.addi %339, %340 : vector<4x8xi32>
    %342 = arith.cmpi eq, %311, %341 : vector<4x8xi32>
    %cst_140 = arith.constant 1.000000e+00 : f32
    %cst_141 = arith.constant 0.000000e+00 : f32
    %343 = vector.broadcast %cst_140 : f32 to vector<4x8xf32>
    %344 = vector.broadcast %cst_141 : f32 to vector<4x8xf32>
    %345 = arith.select %342, %343, %344 : vector<4x8xi1>, vector<4x8xf32>
    %346 = vector.extract_strided_slice %283 {offsets = [0, 0], sizes = [8, 16], strides = [1, 1]} : vector<16x16xf32> to vector<8x16xf32>
    %cst_142 = arith.constant dense<0.000000e+00> : vector<4x16xf32>
    %347 = tpu.matmul %345, %346, %cst_142 {dimension_numbers = #tpu.dot_dimension_numbers<[1], [0], [0], [1], [0, 0, 1, 1], [], []>} : vector<4x8xf32>, vector<8x16xf32>, vector<4x16xf32> -> vector<4x16xf32>
    %348 = vector.extract_strided_slice %283 {offsets = [8, 0], sizes = [8, 16], strides = [1, 1]} : vector<16x16xf32> to vector<8x16xf32>
    %cst_143 = arith.constant dense<0.000000e+00> : vector<4x16xf32>
    %349 = tpu.matmul %345, %348, %cst_143 {dimension_numbers = #tpu.dot_dimension_numbers<[1], [0], [0], [1], [0, 0, 1, 1], [], []>} : vector<4x8xf32>, vector<8x16xf32>, vector<4x16xf32> -> vector<4x16xf32>
    %350 = tpu.concatenate %347, %349 in 0 : vector<4x16xf32>, vector<4x16xf32> -> vector<8x16xf32>
    %351 = tpu.concatenate %324, %337, %350 in 1 : vector<8x16xf32>, vector<8x16xf32>, vector<8x16xf32> -> vector<8x48xf32>
    %cst_144 = arith.constant dense<0.000000e+00> : vector<8x32xf32>
    %352 = tpu.matmul %351, %307, %cst_144 {dimension_numbers = #tpu.dot_dimension_numbers<[1], [0], [0], [1], [0, 0, 1, 1], [], []>} : vector<8x48xf32>, vector<48x32xf32>, vector<8x32xf32> -> vector<8x32xf32>
    %353 = vector.broadcast %308 : vector<1x32xf32> to vector<8x32xf32>
    %354 = arith.mulf %352, %353 : vector<8x32xf32>
    %355 = vector.broadcast %309 : vector<1x32xf32> to vector<8x32xf32>
    %356 = arith.addf %354, %355 : vector<8x32xf32>
    %cst_145 = arith.constant 0.000000e+00 : f32
    %357 = vector.broadcast %cst_145 : f32 to vector<8x32xf32>
    %358 = arith.maximumf %356, %357 : vector<8x32xf32>
    %c0_146 = arith.constant 0 : index
    %c0_147 = arith.constant 0 : index
    %359 = vector.load %arg37[%c0_146, %c0_147] : memref<96x32xf32, #tpu.memory_space<vmem>>, vector<96x32xf32>
    %c0_148 = arith.constant 0 : index
    %c0_149 = arith.constant 0 : index
    %360 = vector.load %arg38[%c0_148, %c0_149] : memref<1x32xf32, #tpu.memory_space<vmem>>, vector<1x32xf32>
    %c0_150 = arith.constant 0 : index
    %c0_151 = arith.constant 0 : index
    %361 = vector.load %arg39[%c0_150, %c0_151] : memref<1x32xf32, #tpu.memory_space<vmem>>, vector<1x32xf32>
    %cst_152 = arith.constant 0.000000e+00 : f32
    %362 = vector.broadcast %cst_152 : f32 to vector<1x32xf32>
    %363 = vector.extract_strided_slice %358 {offsets = [0, 0], sizes = [4, 32], strides = [1, 1]} : vector<8x32xf32> to vector<4x32xf32>
    %364 = vector.extract_strided_slice %358 {offsets = [4, 0], sizes = [4, 32], strides = [1, 1]} : vector<8x32xf32> to vector<4x32xf32>
    %365 = tpu.concatenate %362, %363, %362, %362, %364, %362 in 0 : vector<1x32xf32>, vector<4x32xf32>, vector<1x32xf32>, vector<1x32xf32>, vector<4x32xf32>, vector<1x32xf32> -> vector<12x32xf32>
    %366 = vector.extract_strided_slice %365 {offsets = [0, 0], sizes = [4, 32], strides = [1, 1]} : vector<12x32xf32> to vector<4x32xf32>
    %367 = vector.extract_strided_slice %365 {offsets = [6, 0], sizes = [4, 32], strides = [1, 1]} : vector<12x32xf32> to vector<4x32xf32>
    %368 = tpu.concatenate %366, %367 in 0 : vector<4x32xf32>, vector<4x32xf32> -> vector<8x32xf32>
    %369 = vector.extract_strided_slice %365 {offsets = [1, 0], sizes = [4, 32], strides = [1, 1]} : vector<12x32xf32> to vector<4x32xf32>
    %370 = vector.extract_strided_slice %365 {offsets = [7, 0], sizes = [4, 32], strides = [1, 1]} : vector<12x32xf32> to vector<4x32xf32>
    %371 = tpu.concatenate %369, %370 in 0 : vector<4x32xf32>, vector<4x32xf32> -> vector<8x32xf32>
    %372 = vector.extract_strided_slice %365 {offsets = [2, 0], sizes = [4, 32], strides = [1, 1]} : vector<12x32xf32> to vector<4x32xf32>
    %373 = vector.extract_strided_slice %365 {offsets = [8, 0], sizes = [4, 32], strides = [1, 1]} : vector<12x32xf32> to vector<4x32xf32>
    %374 = tpu.concatenate %372, %373 in 0 : vector<4x32xf32>, vector<4x32xf32> -> vector<8x32xf32>
    %375 = tpu.concatenate %368, %371, %374 in 1 : vector<8x32xf32>, vector<8x32xf32>, vector<8x32xf32> -> vector<8x96xf32>
    %cst_153 = arith.constant dense<0.000000e+00> : vector<8x32xf32>
    %376 = tpu.matmul %375, %359, %cst_153 {dimension_numbers = #tpu.dot_dimension_numbers<[1], [0], [0], [1], [0, 0, 1, 1], [], []>} : vector<8x96xf32>, vector<96x32xf32>, vector<8x32xf32> -> vector<8x32xf32>
    %377 = vector.broadcast %360 : vector<1x32xf32> to vector<8x32xf32>
    %378 = arith.mulf %376, %377 : vector<8x32xf32>
    %379 = vector.broadcast %361 : vector<1x32xf32> to vector<8x32xf32>
    %380 = arith.addf %378, %379 : vector<8x32xf32>
    %381 = arith.addf %380, %306 : vector<8x32xf32>
    %cst_154 = arith.constant 0.000000e+00 : f32
    %382 = vector.broadcast %cst_154 : f32 to vector<8x32xf32>
    %383 = arith.maximumf %381, %382 : vector<8x32xf32>
    %c0_155 = arith.constant 0 : index
    %c0_156 = arith.constant 0 : index
    %384 = vector.load %arg40[%c0_155, %c0_156] : memref<96x32xf32, #tpu.memory_space<vmem>>, vector<96x32xf32>
    %c0_157 = arith.constant 0 : index
    %c0_158 = arith.constant 0 : index
    %385 = vector.load %arg41[%c0_157, %c0_158] : memref<1x32xf32, #tpu.memory_space<vmem>>, vector<1x32xf32>
    %c0_159 = arith.constant 0 : index
    %c0_160 = arith.constant 0 : index
    %386 = vector.load %arg42[%c0_159, %c0_160] : memref<1x32xf32, #tpu.memory_space<vmem>>, vector<1x32xf32>
    %cst_161 = arith.constant 0.000000e+00 : f32
    %387 = vector.broadcast %cst_161 : f32 to vector<1x32xf32>
    %388 = vector.extract_strided_slice %383 {offsets = [0, 0], sizes = [4, 32], strides = [1, 1]} : vector<8x32xf32> to vector<4x32xf32>
    %389 = vector.extract_strided_slice %383 {offsets = [4, 0], sizes = [4, 32], strides = [1, 1]} : vector<8x32xf32> to vector<4x32xf32>
    %390 = tpu.concatenate %387, %388, %387, %387, %389, %387 in 0 : vector<1x32xf32>, vector<4x32xf32>, vector<1x32xf32>, vector<1x32xf32>, vector<4x32xf32>, vector<1x32xf32> -> vector<12x32xf32>
    %391 = vector.extract_strided_slice %390 {offsets = [0, 0], sizes = [4, 32], strides = [1, 1]} : vector<12x32xf32> to vector<4x32xf32>
    %392 = vector.extract_strided_slice %390 {offsets = [6, 0], sizes = [4, 32], strides = [1, 1]} : vector<12x32xf32> to vector<4x32xf32>
    %393 = tpu.concatenate %391, %392 in 0 : vector<4x32xf32>, vector<4x32xf32> -> vector<8x32xf32>
    %394 = vector.extract_strided_slice %390 {offsets = [1, 0], sizes = [4, 32], strides = [1, 1]} : vector<12x32xf32> to vector<4x32xf32>
    %395 = vector.extract_strided_slice %390 {offsets = [7, 0], sizes = [4, 32], strides = [1, 1]} : vector<12x32xf32> to vector<4x32xf32>
    %396 = tpu.concatenate %394, %395 in 0 : vector<4x32xf32>, vector<4x32xf32> -> vector<8x32xf32>
    %397 = vector.extract_strided_slice %390 {offsets = [2, 0], sizes = [4, 32], strides = [1, 1]} : vector<12x32xf32> to vector<4x32xf32>
    %398 = vector.extract_strided_slice %390 {offsets = [8, 0], sizes = [4, 32], strides = [1, 1]} : vector<12x32xf32> to vector<4x32xf32>
    %399 = tpu.concatenate %397, %398 in 0 : vector<4x32xf32>, vector<4x32xf32> -> vector<8x32xf32>
    %400 = tpu.concatenate %393, %396, %399 in 1 : vector<8x32xf32>, vector<8x32xf32>, vector<8x32xf32> -> vector<8x96xf32>
    %cst_162 = arith.constant dense<0.000000e+00> : vector<8x32xf32>
    %401 = tpu.matmul %400, %384, %cst_162 {dimension_numbers = #tpu.dot_dimension_numbers<[1], [0], [0], [1], [0, 0, 1, 1], [], []>} : vector<8x96xf32>, vector<96x32xf32>, vector<8x32xf32> -> vector<8x32xf32>
    %402 = vector.broadcast %385 : vector<1x32xf32> to vector<8x32xf32>
    %403 = arith.mulf %401, %402 : vector<8x32xf32>
    %404 = vector.broadcast %386 : vector<1x32xf32> to vector<8x32xf32>
    %405 = arith.addf %403, %404 : vector<8x32xf32>
    %cst_163 = arith.constant 0.000000e+00 : f32
    %406 = vector.broadcast %cst_163 : f32 to vector<8x32xf32>
    %407 = arith.maximumf %405, %406 : vector<8x32xf32>
    %c0_164 = arith.constant 0 : index
    %c0_165 = arith.constant 0 : index
    %408 = vector.load %arg43[%c0_164, %c0_165] : memref<96x32xf32, #tpu.memory_space<vmem>>, vector<96x32xf32>
    %c0_166 = arith.constant 0 : index
    %c0_167 = arith.constant 0 : index
    %409 = vector.load %arg44[%c0_166, %c0_167] : memref<1x32xf32, #tpu.memory_space<vmem>>, vector<1x32xf32>
    %c0_168 = arith.constant 0 : index
    %c0_169 = arith.constant 0 : index
    %410 = vector.load %arg45[%c0_168, %c0_169] : memref<1x32xf32, #tpu.memory_space<vmem>>, vector<1x32xf32>
    %cst_170 = arith.constant 0.000000e+00 : f32
    %411 = vector.broadcast %cst_170 : f32 to vector<1x32xf32>
    %412 = vector.extract_strided_slice %407 {offsets = [0, 0], sizes = [4, 32], strides = [1, 1]} : vector<8x32xf32> to vector<4x32xf32>
    %413 = vector.extract_strided_slice %407 {offsets = [4, 0], sizes = [4, 32], strides = [1, 1]} : vector<8x32xf32> to vector<4x32xf32>
    %414 = tpu.concatenate %411, %412, %411, %411, %413, %411 in 0 : vector<1x32xf32>, vector<4x32xf32>, vector<1x32xf32>, vector<1x32xf32>, vector<4x32xf32>, vector<1x32xf32> -> vector<12x32xf32>
    %415 = vector.extract_strided_slice %414 {offsets = [0, 0], sizes = [4, 32], strides = [1, 1]} : vector<12x32xf32> to vector<4x32xf32>
    %416 = vector.extract_strided_slice %414 {offsets = [6, 0], sizes = [4, 32], strides = [1, 1]} : vector<12x32xf32> to vector<4x32xf32>
    %417 = tpu.concatenate %415, %416 in 0 : vector<4x32xf32>, vector<4x32xf32> -> vector<8x32xf32>
    %418 = vector.extract_strided_slice %414 {offsets = [1, 0], sizes = [4, 32], strides = [1, 1]} : vector<12x32xf32> to vector<4x32xf32>
    %419 = vector.extract_strided_slice %414 {offsets = [7, 0], sizes = [4, 32], strides = [1, 1]} : vector<12x32xf32> to vector<4x32xf32>
    %420 = tpu.concatenate %418, %419 in 0 : vector<4x32xf32>, vector<4x32xf32> -> vector<8x32xf32>
    %421 = vector.extract_strided_slice %414 {offsets = [2, 0], sizes = [4, 32], strides = [1, 1]} : vector<12x32xf32> to vector<4x32xf32>
    %422 = vector.extract_strided_slice %414 {offsets = [8, 0], sizes = [4, 32], strides = [1, 1]} : vector<12x32xf32> to vector<4x32xf32>
    %423 = tpu.concatenate %421, %422 in 0 : vector<4x32xf32>, vector<4x32xf32> -> vector<8x32xf32>
    %424 = tpu.concatenate %417, %420, %423 in 1 : vector<8x32xf32>, vector<8x32xf32>, vector<8x32xf32> -> vector<8x96xf32>
    %cst_171 = arith.constant dense<0.000000e+00> : vector<8x32xf32>
    %425 = tpu.matmul %424, %408, %cst_171 {dimension_numbers = #tpu.dot_dimension_numbers<[1], [0], [0], [1], [0, 0, 1, 1], [], []>} : vector<8x96xf32>, vector<96x32xf32>, vector<8x32xf32> -> vector<8x32xf32>
    %426 = vector.broadcast %409 : vector<1x32xf32> to vector<8x32xf32>
    %427 = arith.mulf %425, %426 : vector<8x32xf32>
    %428 = vector.broadcast %410 : vector<1x32xf32> to vector<8x32xf32>
    %429 = arith.addf %427, %428 : vector<8x32xf32>
    %430 = arith.addf %429, %383 : vector<8x32xf32>
    %cst_172 = arith.constant 0.000000e+00 : f32
    %431 = vector.broadcast %cst_172 : f32 to vector<8x32xf32>
    %432 = arith.maximumf %430, %431 : vector<8x32xf32>
    %c0_173 = arith.constant 0 : index
    %c0_174 = arith.constant 0 : index
    %433 = vector.load %arg46[%c0_173, %c0_174] : memref<32x64xf32, #tpu.memory_space<vmem>>, vector<32x64xf32>
    %c0_175 = arith.constant 0 : index
    %c0_176 = arith.constant 0 : index
    %434 = vector.load %arg47[%c0_175, %c0_176] : memref<1x64xf32, #tpu.memory_space<vmem>>, vector<1x64xf32>
    %c0_177 = arith.constant 0 : index
    %c0_178 = arith.constant 0 : index
    %435 = vector.load %arg48[%c0_177, %c0_178] : memref<1x64xf32, #tpu.memory_space<vmem>>, vector<1x64xf32>
    %436 = tpu.iota {dimensions = array<i32: 0>} : vector<2x4xi32>
    %437 = tpu.iota {dimensions = array<i32: 1>} : vector<2x4xi32>
    %c2_i32_179 = arith.constant 2 : i32
    %438 = vector.broadcast %c2_i32_179 : i32 to vector<2x4xi32>
    %439 = arith.muli %438, %436 : vector<2x4xi32>
    %c0_i32_180 = arith.constant 0 : i32
    %440 = vector.broadcast %c0_i32_180 : i32 to vector<2x4xi32>
    %441 = arith.addi %439, %440 : vector<2x4xi32>
    %442 = arith.cmpi eq, %437, %441 : vector<2x4xi32>
    %cst_181 = arith.constant 1.000000e+00 : f32
    %cst_182 = arith.constant 0.000000e+00 : f32
    %443 = vector.broadcast %cst_181 : f32 to vector<2x4xf32>
    %444 = vector.broadcast %cst_182 : f32 to vector<2x4xf32>
    %445 = arith.select %442, %443, %444 : vector<2x4xi1>, vector<2x4xf32>
    %446 = vector.extract_strided_slice %432 {offsets = [0, 0], sizes = [4, 32], strides = [1, 1]} : vector<8x32xf32> to vector<4x32xf32>
    %cst_183 = arith.constant dense<0.000000e+00> : vector<2x32xf32>
    %447 = tpu.matmul %445, %446, %cst_183 {dimension_numbers = #tpu.dot_dimension_numbers<[1], [0], [0], [1], [0, 0, 1, 1], [], []>} : vector<2x4xf32>, vector<4x32xf32>, vector<2x32xf32> -> vector<2x32xf32>
    %448 = vector.extract_strided_slice %432 {offsets = [4, 0], sizes = [4, 32], strides = [1, 1]} : vector<8x32xf32> to vector<4x32xf32>
    %cst_184 = arith.constant dense<0.000000e+00> : vector<2x32xf32>
    %449 = tpu.matmul %445, %448, %cst_184 {dimension_numbers = #tpu.dot_dimension_numbers<[1], [0], [0], [1], [0, 0, 1, 1], [], []>} : vector<2x4xf32>, vector<4x32xf32>, vector<2x32xf32> -> vector<2x32xf32>
    %450 = tpu.concatenate %447, %449 in 0 : vector<2x32xf32>, vector<2x32xf32> -> vector<4x32xf32>
    %cst_185 = arith.constant dense<0.000000e+00> : vector<4x64xf32>
    %451 = tpu.matmul %450, %433, %cst_185 {dimension_numbers = #tpu.dot_dimension_numbers<[1], [0], [0], [1], [0, 0, 1, 1], [], []>} : vector<4x32xf32>, vector<32x64xf32>, vector<4x64xf32> -> vector<4x64xf32>
    %452 = vector.broadcast %434 : vector<1x64xf32> to vector<4x64xf32>
    %453 = arith.mulf %451, %452 : vector<4x64xf32>
    %454 = vector.broadcast %435 : vector<1x64xf32> to vector<4x64xf32>
    %455 = arith.addf %453, %454 : vector<4x64xf32>
    %c0_186 = arith.constant 0 : index
    %c0_187 = arith.constant 0 : index
    %456 = vector.load %arg49[%c0_186, %c0_187] : memref<96x64xf32, #tpu.memory_space<vmem>>, vector<96x64xf32>
    %c0_188 = arith.constant 0 : index
    %c0_189 = arith.constant 0 : index
    %457 = vector.load %arg50[%c0_188, %c0_189] : memref<1x64xf32, #tpu.memory_space<vmem>>, vector<1x64xf32>
    %c0_190 = arith.constant 0 : index
    %c0_191 = arith.constant 0 : index
    %458 = vector.load %arg51[%c0_190, %c0_191] : memref<1x64xf32, #tpu.memory_space<vmem>>, vector<1x64xf32>
    %459 = tpu.iota {dimensions = array<i32: 0>} : vector<2x4xi32>
    %460 = tpu.iota {dimensions = array<i32: 1>} : vector<2x4xi32>
    %c2_i32_192 = arith.constant 2 : i32
    %461 = vector.broadcast %c2_i32_192 : i32 to vector<2x4xi32>
    %462 = arith.muli %461, %459 : vector<2x4xi32>
    %c-1_i32_193 = arith.constant -1 : i32
    %463 = vector.broadcast %c-1_i32_193 : i32 to vector<2x4xi32>
    %464 = arith.addi %462, %463 : vector<2x4xi32>
    %465 = arith.cmpi eq, %460, %464 : vector<2x4xi32>
    %cst_194 = arith.constant 1.000000e+00 : f32
    %cst_195 = arith.constant 0.000000e+00 : f32
    %466 = vector.broadcast %cst_194 : f32 to vector<2x4xf32>
    %467 = vector.broadcast %cst_195 : f32 to vector<2x4xf32>
    %468 = arith.select %465, %466, %467 : vector<2x4xi1>, vector<2x4xf32>
    %469 = vector.extract_strided_slice %432 {offsets = [0, 0], sizes = [4, 32], strides = [1, 1]} : vector<8x32xf32> to vector<4x32xf32>
    %cst_196 = arith.constant dense<0.000000e+00> : vector<2x32xf32>
    %470 = tpu.matmul %468, %469, %cst_196 {dimension_numbers = #tpu.dot_dimension_numbers<[1], [0], [0], [1], [0, 0, 1, 1], [], []>} : vector<2x4xf32>, vector<4x32xf32>, vector<2x32xf32> -> vector<2x32xf32>
    %471 = vector.extract_strided_slice %432 {offsets = [4, 0], sizes = [4, 32], strides = [1, 1]} : vector<8x32xf32> to vector<4x32xf32>
    %cst_197 = arith.constant dense<0.000000e+00> : vector<2x32xf32>
    %472 = tpu.matmul %468, %471, %cst_197 {dimension_numbers = #tpu.dot_dimension_numbers<[1], [0], [0], [1], [0, 0, 1, 1], [], []>} : vector<2x4xf32>, vector<4x32xf32>, vector<2x32xf32> -> vector<2x32xf32>
    %473 = tpu.concatenate %470, %472 in 0 : vector<2x32xf32>, vector<2x32xf32> -> vector<4x32xf32>
    %c2_i32_198 = arith.constant 2 : i32
    %474 = vector.broadcast %c2_i32_198 : i32 to vector<2x4xi32>
    %475 = arith.muli %474, %459 : vector<2x4xi32>
    %c0_i32_199 = arith.constant 0 : i32
    %476 = vector.broadcast %c0_i32_199 : i32 to vector<2x4xi32>
    %477 = arith.addi %475, %476 : vector<2x4xi32>
    %478 = arith.cmpi eq, %460, %477 : vector<2x4xi32>
    %cst_200 = arith.constant 1.000000e+00 : f32
    %cst_201 = arith.constant 0.000000e+00 : f32
    %479 = vector.broadcast %cst_200 : f32 to vector<2x4xf32>
    %480 = vector.broadcast %cst_201 : f32 to vector<2x4xf32>
    %481 = arith.select %478, %479, %480 : vector<2x4xi1>, vector<2x4xf32>
    %482 = vector.extract_strided_slice %432 {offsets = [0, 0], sizes = [4, 32], strides = [1, 1]} : vector<8x32xf32> to vector<4x32xf32>
    %cst_202 = arith.constant dense<0.000000e+00> : vector<2x32xf32>
    %483 = tpu.matmul %481, %482, %cst_202 {dimension_numbers = #tpu.dot_dimension_numbers<[1], [0], [0], [1], [0, 0, 1, 1], [], []>} : vector<2x4xf32>, vector<4x32xf32>, vector<2x32xf32> -> vector<2x32xf32>
    %484 = vector.extract_strided_slice %432 {offsets = [4, 0], sizes = [4, 32], strides = [1, 1]} : vector<8x32xf32> to vector<4x32xf32>
    %cst_203 = arith.constant dense<0.000000e+00> : vector<2x32xf32>
    %485 = tpu.matmul %481, %484, %cst_203 {dimension_numbers = #tpu.dot_dimension_numbers<[1], [0], [0], [1], [0, 0, 1, 1], [], []>} : vector<2x4xf32>, vector<4x32xf32>, vector<2x32xf32> -> vector<2x32xf32>
    %486 = tpu.concatenate %483, %485 in 0 : vector<2x32xf32>, vector<2x32xf32> -> vector<4x32xf32>
    %c2_i32_204 = arith.constant 2 : i32
    %487 = vector.broadcast %c2_i32_204 : i32 to vector<2x4xi32>
    %488 = arith.muli %487, %459 : vector<2x4xi32>
    %c1_i32_205 = arith.constant 1 : i32
    %489 = vector.broadcast %c1_i32_205 : i32 to vector<2x4xi32>
    %490 = arith.addi %488, %489 : vector<2x4xi32>
    %491 = arith.cmpi eq, %460, %490 : vector<2x4xi32>
    %cst_206 = arith.constant 1.000000e+00 : f32
    %cst_207 = arith.constant 0.000000e+00 : f32
    %492 = vector.broadcast %cst_206 : f32 to vector<2x4xf32>
    %493 = vector.broadcast %cst_207 : f32 to vector<2x4xf32>
    %494 = arith.select %491, %492, %493 : vector<2x4xi1>, vector<2x4xf32>
    %495 = vector.extract_strided_slice %432 {offsets = [0, 0], sizes = [4, 32], strides = [1, 1]} : vector<8x32xf32> to vector<4x32xf32>
    %cst_208 = arith.constant dense<0.000000e+00> : vector<2x32xf32>
    %496 = tpu.matmul %494, %495, %cst_208 {dimension_numbers = #tpu.dot_dimension_numbers<[1], [0], [0], [1], [0, 0, 1, 1], [], []>} : vector<2x4xf32>, vector<4x32xf32>, vector<2x32xf32> -> vector<2x32xf32>
    %497 = vector.extract_strided_slice %432 {offsets = [4, 0], sizes = [4, 32], strides = [1, 1]} : vector<8x32xf32> to vector<4x32xf32>
    %cst_209 = arith.constant dense<0.000000e+00> : vector<2x32xf32>
    %498 = tpu.matmul %494, %497, %cst_209 {dimension_numbers = #tpu.dot_dimension_numbers<[1], [0], [0], [1], [0, 0, 1, 1], [], []>} : vector<2x4xf32>, vector<4x32xf32>, vector<2x32xf32> -> vector<2x32xf32>
    %499 = tpu.concatenate %496, %498 in 0 : vector<2x32xf32>, vector<2x32xf32> -> vector<4x32xf32>
    %500 = tpu.concatenate %473, %486, %499 in 1 : vector<4x32xf32>, vector<4x32xf32>, vector<4x32xf32> -> vector<4x96xf32>
    %cst_210 = arith.constant dense<0.000000e+00> : vector<4x64xf32>
    %501 = tpu.matmul %500, %456, %cst_210 {dimension_numbers = #tpu.dot_dimension_numbers<[1], [0], [0], [1], [0, 0, 1, 1], [], []>} : vector<4x96xf32>, vector<96x64xf32>, vector<4x64xf32> -> vector<4x64xf32>
    %502 = vector.broadcast %457 : vector<1x64xf32> to vector<4x64xf32>
    %503 = arith.mulf %501, %502 : vector<4x64xf32>
    %504 = vector.broadcast %458 : vector<1x64xf32> to vector<4x64xf32>
    %505 = arith.addf %503, %504 : vector<4x64xf32>
    %cst_211 = arith.constant 0.000000e+00 : f32
    %506 = vector.broadcast %cst_211 : f32 to vector<4x64xf32>
    %507 = arith.maximumf %505, %506 : vector<4x64xf32>
    %c0_212 = arith.constant 0 : index
    %c0_213 = arith.constant 0 : index
    %508 = vector.load %arg52[%c0_212, %c0_213] : memref<192x64xf32, #tpu.memory_space<vmem>>, vector<192x64xf32>
    %c0_214 = arith.constant 0 : index
    %c0_215 = arith.constant 0 : index
    %509 = vector.load %arg53[%c0_214, %c0_215] : memref<1x64xf32, #tpu.memory_space<vmem>>, vector<1x64xf32>
    %c0_216 = arith.constant 0 : index
    %c0_217 = arith.constant 0 : index
    %510 = vector.load %arg54[%c0_216, %c0_217] : memref<1x64xf32, #tpu.memory_space<vmem>>, vector<1x64xf32>
    %cst_218 = arith.constant 0.000000e+00 : f32
    %511 = vector.broadcast %cst_218 : f32 to vector<1x64xf32>
    %512 = vector.extract_strided_slice %507 {offsets = [0, 0], sizes = [2, 64], strides = [1, 1]} : vector<4x64xf32> to vector<2x64xf32>
    %513 = vector.extract_strided_slice %507 {offsets = [2, 0], sizes = [2, 64], strides = [1, 1]} : vector<4x64xf32> to vector<2x64xf32>
    %514 = tpu.concatenate %511, %512, %511, %511, %513, %511 in 0 : vector<1x64xf32>, vector<2x64xf32>, vector<1x64xf32>, vector<1x64xf32>, vector<2x64xf32>, vector<1x64xf32> -> vector<8x64xf32>
    %515 = vector.extract_strided_slice %514 {offsets = [0, 0], sizes = [2, 64], strides = [1, 1]} : vector<8x64xf32> to vector<2x64xf32>
    %516 = vector.extract_strided_slice %514 {offsets = [4, 0], sizes = [2, 64], strides = [1, 1]} : vector<8x64xf32> to vector<2x64xf32>
    %517 = tpu.concatenate %515, %516 in 0 : vector<2x64xf32>, vector<2x64xf32> -> vector<4x64xf32>
    %518 = vector.extract_strided_slice %514 {offsets = [1, 0], sizes = [2, 64], strides = [1, 1]} : vector<8x64xf32> to vector<2x64xf32>
    %519 = vector.extract_strided_slice %514 {offsets = [5, 0], sizes = [2, 64], strides = [1, 1]} : vector<8x64xf32> to vector<2x64xf32>
    %520 = tpu.concatenate %518, %519 in 0 : vector<2x64xf32>, vector<2x64xf32> -> vector<4x64xf32>
    %521 = vector.extract_strided_slice %514 {offsets = [2, 0], sizes = [2, 64], strides = [1, 1]} : vector<8x64xf32> to vector<2x64xf32>
    %522 = vector.extract_strided_slice %514 {offsets = [6, 0], sizes = [2, 64], strides = [1, 1]} : vector<8x64xf32> to vector<2x64xf32>
    %523 = tpu.concatenate %521, %522 in 0 : vector<2x64xf32>, vector<2x64xf32> -> vector<4x64xf32>
    %524 = tpu.concatenate %517, %520, %523 in 1 : vector<4x64xf32>, vector<4x64xf32>, vector<4x64xf32> -> vector<4x192xf32>
    %cst_219 = arith.constant dense<0.000000e+00> : vector<4x64xf32>
    %525 = tpu.matmul %524, %508, %cst_219 {dimension_numbers = #tpu.dot_dimension_numbers<[1], [0], [0], [1], [0, 0, 1, 1], [], []>} : vector<4x192xf32>, vector<192x64xf32>, vector<4x64xf32> -> vector<4x64xf32>
    %526 = vector.broadcast %509 : vector<1x64xf32> to vector<4x64xf32>
    %527 = arith.mulf %525, %526 : vector<4x64xf32>
    %528 = vector.broadcast %510 : vector<1x64xf32> to vector<4x64xf32>
    %529 = arith.addf %527, %528 : vector<4x64xf32>
    %530 = arith.addf %529, %455 : vector<4x64xf32>
    %cst_220 = arith.constant 0.000000e+00 : f32
    %531 = vector.broadcast %cst_220 : f32 to vector<4x64xf32>
    %532 = arith.maximumf %530, %531 : vector<4x64xf32>
    %c0_221 = arith.constant 0 : index
    %c0_222 = arith.constant 0 : index
    %533 = vector.load %arg55[%c0_221, %c0_222] : memref<192x64xf32, #tpu.memory_space<vmem>>, vector<192x64xf32>
    %c0_223 = arith.constant 0 : index
    %c0_224 = arith.constant 0 : index
    %534 = vector.load %arg56[%c0_223, %c0_224] : memref<1x64xf32, #tpu.memory_space<vmem>>, vector<1x64xf32>
    %c0_225 = arith.constant 0 : index
    %c0_226 = arith.constant 0 : index
    %535 = vector.load %arg57[%c0_225, %c0_226] : memref<1x64xf32, #tpu.memory_space<vmem>>, vector<1x64xf32>
    %cst_227 = arith.constant 0.000000e+00 : f32
    %536 = vector.broadcast %cst_227 : f32 to vector<1x64xf32>
    %537 = vector.extract_strided_slice %532 {offsets = [0, 0], sizes = [2, 64], strides = [1, 1]} : vector<4x64xf32> to vector<2x64xf32>
    %538 = vector.extract_strided_slice %532 {offsets = [2, 0], sizes = [2, 64], strides = [1, 1]} : vector<4x64xf32> to vector<2x64xf32>
    %539 = tpu.concatenate %536, %537, %536, %536, %538, %536 in 0 : vector<1x64xf32>, vector<2x64xf32>, vector<1x64xf32>, vector<1x64xf32>, vector<2x64xf32>, vector<1x64xf32> -> vector<8x64xf32>
    %540 = vector.extract_strided_slice %539 {offsets = [0, 0], sizes = [2, 64], strides = [1, 1]} : vector<8x64xf32> to vector<2x64xf32>
    %541 = vector.extract_strided_slice %539 {offsets = [4, 0], sizes = [2, 64], strides = [1, 1]} : vector<8x64xf32> to vector<2x64xf32>
    %542 = tpu.concatenate %540, %541 in 0 : vector<2x64xf32>, vector<2x64xf32> -> vector<4x64xf32>
    %543 = vector.extract_strided_slice %539 {offsets = [1, 0], sizes = [2, 64], strides = [1, 1]} : vector<8x64xf32> to vector<2x64xf32>
    %544 = vector.extract_strided_slice %539 {offsets = [5, 0], sizes = [2, 64], strides = [1, 1]} : vector<8x64xf32> to vector<2x64xf32>
    %545 = tpu.concatenate %543, %544 in 0 : vector<2x64xf32>, vector<2x64xf32> -> vector<4x64xf32>
    %546 = vector.extract_strided_slice %539 {offsets = [2, 0], sizes = [2, 64], strides = [1, 1]} : vector<8x64xf32> to vector<2x64xf32>
    %547 = vector.extract_strided_slice %539 {offsets = [6, 0], sizes = [2, 64], strides = [1, 1]} : vector<8x64xf32> to vector<2x64xf32>
    %548 = tpu.concatenate %546, %547 in 0 : vector<2x64xf32>, vector<2x64xf32> -> vector<4x64xf32>
    %549 = tpu.concatenate %542, %545, %548 in 1 : vector<4x64xf32>, vector<4x64xf32>, vector<4x64xf32> -> vector<4x192xf32>
    %cst_228 = arith.constant dense<0.000000e+00> : vector<4x64xf32>
    %550 = tpu.matmul %549, %533, %cst_228 {dimension_numbers = #tpu.dot_dimension_numbers<[1], [0], [0], [1], [0, 0, 1, 1], [], []>} : vector<4x192xf32>, vector<192x64xf32>, vector<4x64xf32> -> vector<4x64xf32>
    %551 = vector.broadcast %534 : vector<1x64xf32> to vector<4x64xf32>
    %552 = arith.mulf %550, %551 : vector<4x64xf32>
    %553 = vector.broadcast %535 : vector<1x64xf32> to vector<4x64xf32>
    %554 = arith.addf %552, %553 : vector<4x64xf32>
    %cst_229 = arith.constant 0.000000e+00 : f32
    %555 = vector.broadcast %cst_229 : f32 to vector<4x64xf32>
    %556 = arith.maximumf %554, %555 : vector<4x64xf32>
    %c0_230 = arith.constant 0 : index
    %c0_231 = arith.constant 0 : index
    %557 = vector.load %arg58[%c0_230, %c0_231] : memref<192x64xf32, #tpu.memory_space<vmem>>, vector<192x64xf32>
    %c0_232 = arith.constant 0 : index
    %c0_233 = arith.constant 0 : index
    %558 = vector.load %arg59[%c0_232, %c0_233] : memref<1x64xf32, #tpu.memory_space<vmem>>, vector<1x64xf32>
    %c0_234 = arith.constant 0 : index
    %c0_235 = arith.constant 0 : index
    %559 = vector.load %arg60[%c0_234, %c0_235] : memref<1x64xf32, #tpu.memory_space<vmem>>, vector<1x64xf32>
    %cst_236 = arith.constant 0.000000e+00 : f32
    %560 = vector.broadcast %cst_236 : f32 to vector<1x64xf32>
    %561 = vector.extract_strided_slice %556 {offsets = [0, 0], sizes = [2, 64], strides = [1, 1]} : vector<4x64xf32> to vector<2x64xf32>
    %562 = vector.extract_strided_slice %556 {offsets = [2, 0], sizes = [2, 64], strides = [1, 1]} : vector<4x64xf32> to vector<2x64xf32>
    %563 = tpu.concatenate %560, %561, %560, %560, %562, %560 in 0 : vector<1x64xf32>, vector<2x64xf32>, vector<1x64xf32>, vector<1x64xf32>, vector<2x64xf32>, vector<1x64xf32> -> vector<8x64xf32>
    %564 = vector.extract_strided_slice %563 {offsets = [0, 0], sizes = [2, 64], strides = [1, 1]} : vector<8x64xf32> to vector<2x64xf32>
    %565 = vector.extract_strided_slice %563 {offsets = [4, 0], sizes = [2, 64], strides = [1, 1]} : vector<8x64xf32> to vector<2x64xf32>
    %566 = tpu.concatenate %564, %565 in 0 : vector<2x64xf32>, vector<2x64xf32> -> vector<4x64xf32>
    %567 = vector.extract_strided_slice %563 {offsets = [1, 0], sizes = [2, 64], strides = [1, 1]} : vector<8x64xf32> to vector<2x64xf32>
    %568 = vector.extract_strided_slice %563 {offsets = [5, 0], sizes = [2, 64], strides = [1, 1]} : vector<8x64xf32> to vector<2x64xf32>
    %569 = tpu.concatenate %567, %568 in 0 : vector<2x64xf32>, vector<2x64xf32> -> vector<4x64xf32>
    %570 = vector.extract_strided_slice %563 {offsets = [2, 0], sizes = [2, 64], strides = [1, 1]} : vector<8x64xf32> to vector<2x64xf32>
    %571 = vector.extract_strided_slice %563 {offsets = [6, 0], sizes = [2, 64], strides = [1, 1]} : vector<8x64xf32> to vector<2x64xf32>
    %572 = tpu.concatenate %570, %571 in 0 : vector<2x64xf32>, vector<2x64xf32> -> vector<4x64xf32>
    %573 = tpu.concatenate %566, %569, %572 in 1 : vector<4x64xf32>, vector<4x64xf32>, vector<4x64xf32> -> vector<4x192xf32>
    %cst_237 = arith.constant dense<0.000000e+00> : vector<4x64xf32>
    %574 = tpu.matmul %573, %557, %cst_237 {dimension_numbers = #tpu.dot_dimension_numbers<[1], [0], [0], [1], [0, 0, 1, 1], [], []>} : vector<4x192xf32>, vector<192x64xf32>, vector<4x64xf32> -> vector<4x64xf32>
    %575 = vector.broadcast %558 : vector<1x64xf32> to vector<4x64xf32>
    %576 = arith.mulf %574, %575 : vector<4x64xf32>
    %577 = vector.broadcast %559 : vector<1x64xf32> to vector<4x64xf32>
    %578 = arith.addf %576, %577 : vector<4x64xf32>
    %579 = arith.addf %578, %532 : vector<4x64xf32>
    %cst_238 = arith.constant 0.000000e+00 : f32
    %580 = vector.broadcast %cst_238 : f32 to vector<4x64xf32>
    %581 = arith.maximumf %579, %580 : vector<4x64xf32>
    %c0_239 = arith.constant 0 : index
    %c0_240 = arith.constant 0 : index
    %582 = vector.load %arg61[%c0_239, %c0_240] : memref<64x3xf32, #tpu.memory_space<vmem>>, vector<64x3xf32>
    %c0_241 = arith.constant 0 : index
    %c0_242 = arith.constant 0 : index
    %583 = vector.load %arg62[%c0_241, %c0_242] : memref<1x3xf32, #tpu.memory_space<vmem>>, vector<1x3xf32>
    %584 = vector.extract_strided_slice %581 {offsets = [0, 0], sizes = [2, 64], strides = [1, 1]} : vector<4x64xf32> to vector<2x64xf32>
    %cst_243 = arith.constant dense<0.000000e+00> : vector<64xf32>
    %585 = vector.multi_reduction <add>, %584, %cst_243 [0] : vector<2x64xf32> to vector<64xf32>
    %586 = vector.shape_cast %585 : vector<64xf32> to vector<1x64xf32>
    %cst_244 = arith.constant 2.000000e+00 : f32
    %587 = vector.broadcast %cst_244 : f32 to vector<1x64xf32>
    %588 = arith.divf %586, %587 : vector<1x64xf32>
    %589 = vector.extract_strided_slice %581 {offsets = [2, 0], sizes = [2, 64], strides = [1, 1]} : vector<4x64xf32> to vector<2x64xf32>
    %cst_245 = arith.constant dense<0.000000e+00> : vector<64xf32>
    %590 = vector.multi_reduction <add>, %589, %cst_245 [0] : vector<2x64xf32> to vector<64xf32>
    %591 = vector.shape_cast %590 : vector<64xf32> to vector<1x64xf32>
    %cst_246 = arith.constant 2.000000e+00 : f32
    %592 = vector.broadcast %cst_246 : f32 to vector<1x64xf32>
    %593 = arith.divf %591, %592 : vector<1x64xf32>
    %594 = tpu.concatenate %588, %593 in 0 : vector<1x64xf32>, vector<1x64xf32> -> vector<2x64xf32>
    %cst_247 = arith.constant dense<0.000000e+00> : vector<2x3xf32>
    %595 = tpu.matmul %594, %582, %cst_247 {dimension_numbers = #tpu.dot_dimension_numbers<[1], [0], [0], [1], [0, 0, 1, 1], [], []>} : vector<2x64xf32>, vector<64x3xf32>, vector<2x3xf32> -> vector<2x3xf32>
    %596 = vector.broadcast %583 : vector<1x3xf32> to vector<2x3xf32>
    %597 = arith.addf %595, %596 : vector<2x3xf32>
    %c0_248 = arith.constant 0 : index
    %c0_249 = arith.constant 0 : index
    %598 = vector.load %arg63[%c0_248, %c0_249] : memref<2x3xf32, #tpu.memory_space<vmem>>, vector<2x3xf32>
    tpu.vector_store %arg63[%c0_248, %c0_249], %597 {strides = array<i32>} : memref<2x3xf32, #tpu.memory_space<vmem>>, vector<2x3xf32>,
    return
  }
}

</mosaic_0001>

<llo_original>
// kernel: forward.1
$region0: #{forward.1}
  #allocation0 [shape = 'u32[]', space=smem, size = 0x4, offset = 0x4, fixed_abs, tag = 'smem constant byte address 0x4 - core index']
  #allocation1 [shape = 'u32[72,128]{1,0:T(1,128)}', space=vmem, size = 0x9000, scoped, tag = 'internal scratch']
  %s0 = inlined_call_operand.smem [shape: u32[64], index: -1, kind: input, shape index: {}]
  %s1 = sld [smem:[%s0]]
  %s2 = scalar_lea.smem %s0, 1
  %s3 = sld [smem:[%s2]]
  %s4 = scalar_lea.smem %s0, 2
  %s5 = sld [smem:[%s4]]
  %s6 = scalar_lea.smem %s0, 3
  %s7 = sld [smem:[%s6]]
  %s8 = scalar_lea.smem %s0, 4
  %s9 = sld [smem:[%s8]]
  %s10 = scalar_lea.smem %s0, 5
  %s11 = sld [smem:[%s10]]
  %s12 = scalar_lea.smem %s0, 6
  %s13 = sld [smem:[%s12]]
  %s14 = scalar_lea.smem %s0, 7
  %s15 = sld [smem:[%s14]]
  %s16 = scalar_lea.smem %s0, 8
  %s17 = sld [smem:[%s16]]
  %s18 = scalar_lea.smem %s0, 9
  %s19 = sld [smem:[%s18]]
  %s20 = scalar_lea.smem %s0, 10
  %s21 = sld [smem:[%s20]]
  %s22 = scalar_lea.smem %s0, 11
  %s23 = sld [smem:[%s22]]
  %s24 = scalar_lea.smem %s0, 12
  %s25 = sld [smem:[%s24]]
  %s26 = scalar_lea.smem %s0, 13
  %s27 = sld [smem:[%s26]]
  %s28 = scalar_lea.smem %s0, 14
  %s29 = sld [smem:[%s28]]
  %s30 = scalar_lea.smem %s0, 15
  %s31 = sld [smem:[%s30]]
  %s32 = scalar_lea.smem %s0, 16
  %s33 = sld [smem:[%s32]]
  %s34 = scalar_lea.smem %s0, 17
  %s35 = sld [smem:[%s34]]
  %s36 = scalar_lea.smem %s0, 18
  %s37 = sld [smem:[%s36]]
  %s38 = scalar_lea.smem %s0, 19
  %s39 = sld [smem:[%s38]]
  %s40 = scalar_lea.smem %s0, 20
  %s41 = sld [smem:[%s40]]
  %s42 = scalar_lea.smem %s0, 21
  %s43 = sld [smem:[%s42]]
  %s44 = scalar_lea.smem %s0, 22
  %s45 = sld [smem:[%s44]]
  %s46 = scalar_lea.smem %s0, 23
  %s47 = sld [smem:[%s46]]
  %s48 = scalar_lea.smem %s0, 24
  %s49 = sld [smem:[%s48]]
  %s50 = scalar_lea.smem %s0, 25
  %s51 = sld [smem:[%s50]]
  %s52 = scalar_lea.smem %s0, 26
  %s53 = sld [smem:[%s52]]
  %s54 = scalar_lea.smem %s0, 27
  %s55 = sld [smem:[%s54]]
  %s56 = scalar_lea.smem %s0, 28
  %s57 = sld [smem:[%s56]]
  %s58 = scalar_lea.smem %s0, 29
  %s59 = sld [smem:[%s58]]
  %s60 = scalar_lea.smem %s0, 30
  %s61 = sld [smem:[%s60]]
  %s62 = scalar_lea.smem %s0, 31
  %s63 = sld [smem:[%s62]]
  %s64 = scalar_lea.smem %s0, 32
  %s65 = sld [smem:[%s64]]
  %s66 = scalar_lea.smem %s0, 33
  %s67 = sld [smem:[%s66]]
  %s68 = scalar_lea.smem %s0, 34
  %s69 = sld [smem:[%s68]]
  %s70 = scalar_lea.smem %s0, 35
  %s71 = sld [smem:[%s70]]
  %s72 = scalar_lea.smem %s0, 36
  %s73 = sld [smem:[%s72]]
  %s74 = scalar_lea.smem %s0, 37
  %s75 = sld [smem:[%s74]]
  %s76 = scalar_lea.smem %s0, 38
  %s77 = sld [smem:[%s76]]
  %s78 = scalar_lea.smem %s0, 39
  %s79 = sld [smem:[%s78]]
  %s80 = scalar_lea.smem %s0, 40
  %s81 = sld [smem:[%s80]]
  %s82 = scalar_lea.smem %s0, 41
  %s83 = sld [smem:[%s82]]
  %s84 = scalar_lea.smem %s0, 42
  %s85 = sld [smem:[%s84]]
  %s86 = scalar_lea.smem %s0, 43
  %s87 = sld [smem:[%s86]]
  %s88 = scalar_lea.smem %s0, 44
  %s89 = sld [smem:[%s88]]
  %s90 = scalar_lea.smem %s0, 45
  %s91 = sld [smem:[%s90]]
  %s92 = scalar_lea.smem %s0, 46
  %s93 = sld [smem:[%s92]]
  %s94 = scalar_lea.smem %s0, 47
  %s95 = sld [smem:[%s94]]
  %s96 = scalar_lea.smem %s0, 48
  %s97 = sld [smem:[%s96]]
  %s98 = scalar_lea.smem %s0, 49
  %s99 = sld [smem:[%s98]]
  %s100 = scalar_lea.smem %s0, 50
  %s101 = sld [smem:[%s100]]
  %s102 = scalar_lea.smem %s0, 51
  %s103 = sld [smem:[%s102]]
  %s104 = scalar_lea.smem %s0, 52
  %s105 = sld [smem:[%s104]]
  %s106 = scalar_lea.smem %s0, 53
  %s107 = sld [smem:[%s106]]
  %s108 = scalar_lea.smem %s0, 54
  %s109 = sld [smem:[%s108]]
  %s110 = scalar_lea.smem %s0, 55
  %s111 = sld [smem:[%s110]]
  %s112 = scalar_lea.smem %s0, 56
  %s113 = sld [smem:[%s112]]
  %s114 = scalar_lea.smem %s0, 57
  %s115 = sld [smem:[%s114]]
  %s116 = scalar_lea.smem %s0, 58
  %s117 = sld [smem:[%s116]]
  %s118 = scalar_lea.smem %s0, 59
  %s119 = sld [smem:[%s118]]
  %s120 = scalar_lea.smem %s0, 60
  %s121 = sld [smem:[%s120]]
  %s122 = scalar_lea.smem %s0, 61
  %s123 = sld [smem:[%s122]]
  %s124 = scalar_lea.smem %s0, 62
  %s125 = sld [smem:[%s124]]
  %s126 = scalar_lea.smem %s0, 63
  %s127 = sld [smem:[%s126]]
  %s128 = sld [smem:[#allocation0]]
  $region286: #{forward.1} parent=0
    _
  %s130 = ssub.s32 1, %s128
  %s131 = scalar_select 0, %s130, %s128
  $region1: #{forward.1} parent=0
    #allocation2 [shape = 'u8[512]{0}', space=vmem, size = 0x400, scoped, tag = 'input window, operand 54, single buffered']
    #allocation3 [shape = 's32[1]{0}', space=sflag, size = 0x4, scoped, tag = 'scoped memory for forward.1']
    #allocation4 [shape = 's32[1]{0}', space=sflag, size = 0x4, scoped, tag = 'scoped memory for forward.1']
    #allocation5 [shape = 'u8[512]{0}', space=vmem, size = 0x400, scoped, tag = 'input window, operand 56, single buffered']
    #allocation6 [shape = 's32[1]{0}', space=sflag, size = 0x4, scoped, tag = 'scoped memory for forward.1']
    #allocation7 [shape = 'u8[512]{0}', space=vmem, size = 0x400, scoped, tag = 'input window, operand 57, single buffered']
    #allocation8 [shape = 'u8[512]{0}', space=vmem, size = 0x400, scoped, tag = 'input window, operand 59, single buffered']
    #allocation9 [shape = 's32[1]{0}', space=sflag, size = 0x4, scoped, tag = 'scoped memory for forward.1']
    #allocation10 [shape = 'u8[512]{0}', space=vmem, size = 0x400, scoped, tag = 'input window, operand 60, single buffered']
    #allocation11 [shape = 'u8[512]{0}', space=vmem, size = 0x400, scoped, tag = 'input window, operand 62, single buffered']
    #allocation12 [shape = 's32[1]{0}', space=sflag, size = 0x4, scoped, tag = 'scoped memory for forward.1']
    #allocation13 [shape = 'u8[1024]{0}', space=vmem, size = 0x400, scoped, tag = 'output window, operand 0, single buffered']
    %132 = vsyncpa [#allocation3], 0
    %133 = vsyncpa [#allocation6], 0
    %134 = vsyncpa [#allocation9], 0
    %135 = vsyncpa [#allocation12], 0
    %136 = vsyncpa [#allocation4], 0
    // Predicated region
    $region2: #{forward.1} parent=1 // pred_check
      _
    $region3: #{forward.1} parent=1 // pred_check_branch
      %138 = sbr.rel (0) target = $region5
    $region4: #{forward.1} parent=1 // pred_region
      _
    $region5: #{forward.1} parent=1 // pred_fallthru
      _
    // Predicated region
    $region6: #{forward.1} parent=1 // pred_check
      _
    $region7: #{forward.1} parent=1 // pred_check_branch
      %140 = sbr.rel (0) target = $region9
    $region8: #{forward.1} parent=1 // pred_region
      _
    $region9: #{forward.1} parent=1 // pred_fallthru
      _
    // Predicated region
    $region10: #{forward.1} parent=1 // pred_check
      _
    $region11: #{forward.1} parent=1 // pred_check_branch
      %142 = sbr.rel (0) target = $region13
    $region12: #{forward.1} parent=1 // pred_region
      _
    $region13: #{forward.1} parent=1 // pred_fallthru
      _
    // Predicated region
    $region14: #{forward.1} parent=1 // pred_check
      _
    $region15: #{forward.1} parent=1 // pred_check_branch
      %144 = sbr.rel (0) target = $region17
    $region16: #{forward.1} parent=1 // pred_region
      _
    $region17: #{forward.1} parent=1 // pred_fallthru
      _
    // Predicated region
    $region18: #{forward.1} parent=1 // pred_check
      _
    $region19: #{forward.1} parent=1 // pred_check_branch
      %146 = sbr.rel (0) target = $region21
    $region20: #{forward.1} parent=1 // pred_region
      _
    $region21: #{forward.1} parent=1 // pred_fallthru
      _
    // Predicated region
    $region22: #{forward.1} parent=1 // pred_check
      _
    $region23: #{forward.1} parent=1 // pred_check_branch
      %148 = sbr.rel (0) target = $region25
    $region24: #{forward.1} parent=1 // pred_region
      _
    $region25: #{forward.1} parent=1 // pred_fallthru
      _
    // Predicated region
    $region26: #{forward.1} parent=1 // pred_check
      _
    $region27: #{forward.1} parent=1 // pred_check_branch
      %150 = sbr.rel (0) target = $region29
    $region28: #{forward.1} parent=1 // pred_region
      _
    $region29: #{forward.1} parent=1 // pred_fallthru
      _
    // Predicated region
    $region30: #{forward.1} parent=1 // pred_check
      _
    $region31: #{forward.1} parent=1 // pred_check_branch
      %152 = sbr.rel (0) target = $region33
    $region32: #{forward.1} parent=1 // pred_region
      _
    $region33: #{forward.1} parent=1 // pred_fallthru
      _
    // Predicated region
    $region34: #{forward.1} parent=1 // pred_check
      _
    $region35: #{forward.1} parent=1 // pred_check_branch
      %154 = sbr.rel (0) target = $region37
    $region36: #{forward.1} parent=1 // pred_region
      _
    $region37: #{forward.1} parent=1 // pred_fallthru
      _
    // Predicated region
    $region38: #{forward.1} parent=1 // pred_check
      _
    $region39: #{forward.1} parent=1 // pred_check_branch
      %156 = sbr.rel (0) target = $region41
    $region40: #{forward.1} parent=1 // pred_region
      _
    $region41: #{forward.1} parent=1 // pred_fallthru
      _
    // Predicated region
    $region42: #{forward.1} parent=1 // pred_check
      _
    $region43: #{forward.1} parent=1 // pred_check_branch
      %158 = sbr.rel (0) target = $region45
    $region44: #{forward.1} parent=1 // pred_region
      _
    $region45: #{forward.1} parent=1 // pred_fallthru
      _
    // Predicated region
    $region46: #{forward.1} parent=1 // pred_check
      _
    $region47: #{forward.1} parent=1 // pred_check_branch
      %160 = sbr.rel (0) target = $region49
    $region48: #{forward.1} parent=1 // pred_region
      _
    $region49: #{forward.1} parent=1 // pred_fallthru
      _
    // Predicated region
    $region50: #{forward.1} parent=1 // pred_check
      _
    $region51: #{forward.1} parent=1 // pred_check_branch
      %162 = sbr.rel (0) target = $region53
    $region52: #{forward.1} parent=1 // pred_region
      _
    $region53: #{forward.1} parent=1 // pred_fallthru
      _
    // Predicated region
    $region54: #{forward.1} parent=1 // pred_check
      _
    $region55: #{forward.1} parent=1 // pred_check_branch
      %164 = sbr.rel (0) target = $region57
    $region56: #{forward.1} parent=1 // pred_region
      _
    $region57: #{forward.1} parent=1 // pred_fallthru
      _
    // Predicated region
    $region58: #{forward.1} parent=1 // pred_check
      _
    $region59: #{forward.1} parent=1 // pred_check_branch
      %166 = sbr.rel (0) target = $region61
    $region60: #{forward.1} parent=1 // pred_region
      _
    $region61: #{forward.1} parent=1 // pred_fallthru
      _
    // Predicated region
    $region62: #{forward.1} parent=1 // pred_check
      _
    $region63: #{forward.1} parent=1 // pred_check_branch
      %168 = sbr.rel (0) target = $region65
    $region64: #{forward.1} parent=1 // pred_region
      _
    $region65: #{forward.1} parent=1 // pred_fallthru
      _
    // Predicated region
    $region66: #{forward.1} parent=1 // pred_check
      _
    $region67: #{forward.1} parent=1 // pred_check_branch
      %170 = sbr.rel (0) target = $region69
    $region68: #{forward.1} parent=1 // pred_region
      _
    $region69: #{forward.1} parent=1 // pred_fallthru
      _
    // Predicated region
    $region70: #{forward.1} parent=1 // pred_check
      _
    $region71: #{forward.1} parent=1 // pred_check_branch
      %172 = sbr.rel (0) target = $region73
    $region72: #{forward.1} parent=1 // pred_region
      _
    $region73: #{forward.1} parent=1 // pred_fallthru
      _
    // Predicated region
    $region74: #{forward.1} parent=1 // pred_check
      _
    $region75: #{forward.1} parent=1 // pred_check_branch
      %174 = sbr.rel (0) target = $region77
    $region76: #{forward.1} parent=1 // pred_region
      _
    $region77: #{forward.1} parent=1 // pred_fallthru
      _
    // Predicated region
    $region78: #{forward.1} parent=1 // pred_check
      _
    $region79: #{forward.1} parent=1 // pred_check_branch
      %176 = sbr.rel (0) target = $region81
    $region80: #{forward.1} parent=1 // pred_region
      _
    $region81: #{forward.1} parent=1 // pred_fallthru
      _
    // Predicated region
    $region82: #{forward.1} parent=1 // pred_check
      _
    $region83: #{forward.1} parent=1 // pred_check_branch
      %178 = sbr.rel (0) target = $region85
    $region84: #{forward.1} parent=1 // pred_region
      _
    $region85: #{forward.1} parent=1 // pred_fallthru
      _
    // Predicated region
    $region86: #{forward.1} parent=1 // pred_check
      _
    $region87: #{forward.1} parent=1 // pred_check_branch
      %180 = sbr.rel (0) target = $region89
    $region88: #{forward.1} parent=1 // pred_region
      _
    $region89: #{forward.1} parent=1 // pred_fallthru
      _
    // Predicated region
    $region90: #{forward.1} parent=1 // pred_check
      _
    $region91: #{forward.1} parent=1 // pred_check_branch
      %182 = sbr.rel (0) target = $region93
    $region92: #{forward.1} parent=1 // pred_region
      _
    $region93: #{forward.1} parent=1 // pred_fallthru
      _
    // Predicated region
    $region94: #{forward.1} parent=1 // pred_check
      _
    $region95: #{forward.1} parent=1 // pred_check_branch
      %184 = sbr.rel (0) target = $region97
    $region96: #{forward.1} parent=1 // pred_region
      _
    $region97: #{forward.1} parent=1 // pred_fallthru
      _
    // Predicated region
    $region98: #{forward.1} parent=1 // pred_check
      _
    $region99: #{forward.1} parent=1 // pred_check_branch
      %186 = sbr.rel (0) target = $region101
    $region100: #{forward.1} parent=1 // pred_region
      _
    $region101: #{forward.1} parent=1 // pred_fallthru
      _
    // Predicated region
    $region102: #{forward.1} parent=1 // pred_check
      _
    $region103: #{forward.1} parent=1 // pred_check_branch
      %188 = sbr.rel (0) target = $region105
    $region104: #{forward.1} parent=1 // pred_region
      _
    $region105: #{forward.1} parent=1 // pred_fallthru
      _
    // Predicated region
    $region106: #{forward.1} parent=1 // pred_check
      _
    $region107: #{forward.1} parent=1 // pred_check_branch
      %190 = sbr.rel (0) target = $region109
    $region108: #{forward.1} parent=1 // pred_region
      _
    $region109: #{forward.1} parent=1 // pred_fallthru
      _
    // Predicated region
    $region110: #{forward.1} parent=1 // pred_check
      _
    $region111: #{forward.1} parent=1 // pred_check_branch
      %192 = sbr.rel (0) target = $region113
    $region112: #{forward.1} parent=1 // pred_region
      _
    $region113: #{forward.1} parent=1 // pred_fallthru
      _
    // Predicated region
    $region114: #{forward.1} parent=1 // pred_check
      _
    $region115: #{forward.1} parent=1 // pred_check_branch
      %194 = sbr.rel (0) target = $region117
    $region116: #{forward.1} parent=1 // pred_region
      _
    $region117: #{forward.1} parent=1 // pred_fallthru
      _
    // Predicated region
    $region118: #{forward.1} parent=1 // pred_check
      _
    $region119: #{forward.1} parent=1 // pred_check_branch
      %196 = sbr.rel (0) target = $region121
    $region120: #{forward.1} parent=1 // pred_region
      _
    $region121: #{forward.1} parent=1 // pred_fallthru
      _
    // Predicated region
    $region122: #{forward.1} parent=1 // pred_check
      _
    $region123: #{forward.1} parent=1 // pred_check_branch
      %198 = sbr.rel (0) target = $region125
    $region124: #{forward.1} parent=1 // pred_region
      _
    $region125: #{forward.1} parent=1 // pred_fallthru
      _
    // Predicated region
    $region126: #{forward.1} parent=1 // pred_check
      _
    $region127: #{forward.1} parent=1 // pred_check_branch
      %200 = sbr.rel (0) target = $region129
    $region128: #{forward.1} parent=1 // pred_region
      _
    $region129: #{forward.1} parent=1 // pred_fallthru
      _
    // Predicated region
    $region130: #{forward.1} parent=1 // pred_check
      _
    $region131: #{forward.1} parent=1 // pred_check_branch
      %202 = sbr.rel (0) target = $region133
    $region132: #{forward.1} parent=1 // pred_region
      _
    $region133: #{forward.1} parent=1 // pred_fallthru
      _
    // Predicated region
    $region134: #{forward.1} parent=1 // pred_check
      _
    $region135: #{forward.1} parent=1 // pred_check_branch
      %204 = sbr.rel (0) target = $region137
    $region136: #{forward.1} parent=1 // pred_region
      _
    $region137: #{forward.1} parent=1 // pred_fallthru
      _
    // Predicated region
    $region138: #{forward.1} parent=1 // pred_check
      _
    $region139: #{forward.1} parent=1 // pred_check_branch
      %206 = sbr.rel (0) target = $region141
    $region140: #{forward.1} parent=1 // pred_region
      _
    $region141: #{forward.1} parent=1 // pred_fallthru
      _
    // Predicated region
    $region142: #{forward.1} parent=1 // pred_check
      _
    $region143: #{forward.1} parent=1 // pred_check_branch
      %208 = sbr.rel (0) target = $region145
    $region144: #{forward.1} parent=1 // pred_region
      _
    $region145: #{forward.1} parent=1 // pred_fallthru
      _
    // Predicated region
    $region146: #{forward.1} parent=1 // pred_check
      _
    $region147: #{forward.1} parent=1 // pred_check_branch
      %210 = sbr.rel (0) target = $region149
    $region148: #{forward.1} parent=1 // pred_region
      _
    $region149: #{forward.1} parent=1 // pred_fallthru
      _
    // Predicated region
    $region150: #{forward.1} parent=1 // pred_check
      _
    $region151: #{forward.1} parent=1 // pred_check_branch
      %212 = sbr.rel (0) target = $region153
    $region152: #{forward.1} parent=1 // pred_region
      _
    $region153: #{forward.1} parent=1 // pred_fallthru
      _
    // Predicated region
    $region154: #{forward.1} parent=1 // pred_check
      _
    $region155: #{forward.1} parent=1 // pred_check_branch
      %214 = sbr.rel (0) target = $region157
    $region156: #{forward.1} parent=1 // pred_region
      _
    $region157: #{forward.1} parent=1 // pred_fallthru
      _
    // Predicated region
    $region158: #{forward.1} parent=1 // pred_check
      _
    $region159: #{forward.1} parent=1 // pred_check_branch
      %216 = sbr.rel (0) target = $region161
    $region160: #{forward.1} parent=1 // pred_region
      _
    $region161: #{forward.1} parent=1 // pred_fallthru
      _
    // Predicated region
    $region162: #{forward.1} parent=1 // pred_check
      _
    $region163: #{forward.1} parent=1 // pred_check_branch
      %218 = sbr.rel (0) target = $region165
    $region164: #{forward.1} parent=1 // pred_region
      _
    $region165: #{forward.1} parent=1 // pred_fallthru
      _
    // Predicated region
    $region166: #{forward.1} parent=1 // pred_check
      _
    $region167: #{forward.1} parent=1 // pred_check_branch
      %220 = sbr.rel (0) target = $region169
    $region168: #{forward.1} parent=1 // pred_region
      _
    $region169: #{forward.1} parent=1 // pred_fallthru
      _
    // Predicated region
    $region170: #{forward.1} parent=1 // pred_check
      _
    $region171: #{forward.1} parent=1 // pred_check_branch
      %222 = sbr.rel (0) target = $region173
    $region172: #{forward.1} parent=1 // pred_region
      _
    $region173: #{forward.1} parent=1 // pred_fallthru
      _
    // Predicated region
    $region174: #{forward.1} parent=1 // pred_check
      _
    $region175: #{forward.1} parent=1 // pred_check_branch
      %224 = sbr.rel (0) target = $region177
    $region176: #{forward.1} parent=1 // pred_region
      _
    $region177: #{forward.1} parent=1 // pred_fallthru
      _
    // Predicated region
    $region178: #{forward.1} parent=1 // pred_check
      _
    $region179: #{forward.1} parent=1 // pred_check_branch
      %226 = sbr.rel (0) target = $region181
    $region180: #{forward.1} parent=1 // pred_region
      _
    $region181: #{forward.1} parent=1 // pred_fallthru
      _
    // Predicated region
    $region182: #{forward.1} parent=1 // pred_check
      _
    $region183: #{forward.1} parent=1 // pred_check_branch
      %228 = sbr.rel (0) target = $region185
    $region184: #{forward.1} parent=1 // pred_region
      _
    $region185: #{forward.1} parent=1 // pred_fallthru
      _
    // Predicated region
    $region186: #{forward.1} parent=1 // pred_check
      _
    $region187: #{forward.1} parent=1 // pred_check_branch
      %230 = sbr.rel (0) target = $region189
    $region188: #{forward.1} parent=1 // pred_region
      _
    $region189: #{forward.1} parent=1 // pred_fallthru
      _
    // Predicated region
    $region190: #{forward.1} parent=1 // pred_check
      _
    $region191: #{forward.1} parent=1 // pred_check_branch
      %232 = sbr.rel (0) target = $region193
    $region192: #{forward.1} parent=1 // pred_region
      _
    $region193: #{forward.1} parent=1 // pred_fallthru
      _
    // Predicated region
    $region194: #{forward.1} parent=1 // pred_check
      _
    $region195: #{forward.1} parent=1 // pred_check_branch
      %234 = sbr.rel (0) target = $region197
    $region196: #{forward.1} parent=1 // pred_region
      _
    $region197: #{forward.1} parent=1 // pred_fallthru
      _
    // Predicated region
    $region198: #{forward.1} parent=1 // pred_check
      _
    $region199: #{forward.1} parent=1 // pred_check_branch
      %236 = sbr.rel (0) target = $region201
    $region200: #{forward.1} parent=1 // pred_region
      _
    $region201: #{forward.1} parent=1 // pred_fallthru
      _
    // Predicated region
    $region202: #{forward.1} parent=1 // pred_check
      _
    $region203: #{forward.1} parent=1 // pred_check_branch
      %238 = sbr.rel (0) target = $region205
    $region204: #{forward.1} parent=1 // pred_region
      _
    $region205: #{forward.1} parent=1 // pred_fallthru
      _
    // Predicated region
    $region206: #{forward.1} parent=1 // pred_check
      _
    $region207: #{forward.1} parent=1 // pred_check_branch
      %240 = sbr.rel (0) target = $region209
    $region208: #{forward.1} parent=1 // pred_region
      _
    $region209: #{forward.1} parent=1 // pred_fallthru
      _
    // Predicated region
    $region210: #{forward.1} parent=1 // pred_check
      _
    $region211: #{forward.1} parent=1 // pred_check_branch
      %242 = sbr.rel (0) target = $region213
    $region212: #{forward.1} parent=1 // pred_region
      _
    $region213: #{forward.1} parent=1 // pred_fallthru
      _
    // Predicated region
    $region214: #{forward.1} parent=1 // pred_check
      _
    $region215: #{forward.1} parent=1 // pred_check_branch
      %244 = sbr.rel (0) target = $region217
    $region216: #{forward.1} parent=1 // pred_region
      _
    $region217: #{forward.1} parent=1 // pred_fallthru
      _
    // Predicated region
    $region218: #{forward.1} parent=1 // pred_check
      _
    $region219: #{forward.1} parent=1 // pred_check_branch
      %246 = sbr.rel (0) target = $region221
    $region220: #{forward.1} parent=1 // pred_region
      %248 = vsyncadd [#allocation3], 0
      %s250 = sshll.u32 %s109, 4
      %s251 = int_to_ptr.hbm [resolvable:$true] %s250
      %s252 = sshll.u32 [#allocation2], 4
      %s253 = int_to_ptr.vmem [resolvable:$true] %s252
      %255 = dma.hbm_to_vmem [thread:$0]  %s251, 16, %s253, [#allocation3]
    $region221: #{forward.1} parent=1 // pred_fallthru
      _
    // Predicated region
    $region222: #{forward.1} parent=1 // pred_check
      _
    $region223: #{forward.1} parent=1 // pred_check_branch
      %257 = sbr.rel (0) target = $region225
    $region224: #{forward.1} parent=1 // pred_region
      _
    $region225: #{forward.1} parent=1 // pred_fallthru
      _
    // Predicated region
    $region226: #{forward.1} parent=1 // pred_check
      _
    $region227: #{forward.1} parent=1 // pred_check_branch
      %259 = sbr.rel (0) target = $region229
    $region228: #{forward.1} parent=1 // pred_region
      %261 = vsyncadd [#allocation6], 0
      %s263 = sshll.u32 %s113, 4
      %s264 = int_to_ptr.hbm [resolvable:$true] %s263
      %s265 = sshll.u32 [#allocation5], 4
      %s266 = int_to_ptr.vmem [resolvable:$true] %s265
      %268 = dma.hbm_to_vmem [thread:$0]  %s264, 16, %s266, [#allocation6]
    $region229: #{forward.1} parent=1 // pred_fallthru
      _
    // Predicated region
    $region230: #{forward.1} parent=1 // pred_check
      _
    $region231: #{forward.1} parent=1 // pred_check_branch
      %270 = sbr.rel (0) target = $region233
    $region232: #{forward.1} parent=1 // pred_region
      %272 = vsyncadd [#allocation6], 0
      %s274 = sshll.u32 %s115, 4
      %s275 = int_to_ptr.hbm [resolvable:$true] %s274
      %s276 = sshll.u32 [#allocation7], 4
      %s277 = int_to_ptr.vmem [resolvable:$true] %s276
      %279 = dma.hbm_to_vmem [thread:$0]  %s275, 16, %s277, [#allocation6]
    $region233: #{forward.1} parent=1 // pred_fallthru
      _
    // Predicated region
    $region234: #{forward.1} parent=1 // pred_check
      _
    $region235: #{forward.1} parent=1 // pred_check_branch
      %281 = sbr.rel (0) target = $region237
    $region236: #{forward.1} parent=1 // pred_region
      _
    $region237: #{forward.1} parent=1 // pred_fallthru
      _
    // Predicated region
    $region238: #{forward.1} parent=1 // pred_check
      _
    $region239: #{forward.1} parent=1 // pred_check_branch
      %283 = sbr.rel (0) target = $region241
    $region240: #{forward.1} parent=1 // pred_region
      %285 = vsyncadd [#allocation9], 0
      %s287 = sshll.u32 %s119, 4
      %s288 = int_to_ptr.hbm [resolvable:$true] %s287
      %s289 = sshll.u32 [#allocation8], 4
      %s290 = int_to_ptr.vmem [resolvable:$true] %s289
      %292 = dma.hbm_to_vmem [thread:$0]  %s288, 16, %s290, [#allocation9]
    $region241: #{forward.1} parent=1 // pred_fallthru
      _
    // Predicated region
    $region242: #{forward.1} parent=1 // pred_check
      _
    $region243: #{forward.1} parent=1 // pred_check_branch
      %294 = sbr.rel (0) target = $region245
    $region244: #{forward.1} parent=1 // pred_region
      %296 = vsyncadd [#allocation9], 0
      %s298 = sshll.u32 %s121, 4
      %s299 = int_to_ptr.hbm [resolvable:$true] %s298
      %s300 = sshll.u32 [#allocation10], 4
      %s301 = int_to_ptr.vmem [resolvable:$true] %s300
      %303 = dma.hbm_to_vmem [thread:$0]  %s299, 16, %s301, [#allocation9]
    $region245: #{forward.1} parent=1 // pred_fallthru
      _
    // Predicated region
    $region246: #{forward.1} parent=1 // pred_check
      _
    $region247: #{forward.1} parent=1 // pred_check_branch
      %305 = sbr.rel (0) target = $region249
    $region248: #{forward.1} parent=1 // pred_region
      _
    $region249: #{forward.1} parent=1 // pred_fallthru
      _
    // Predicated region
    $region250: #{forward.1} parent=1 // pred_check
      _
    $region251: #{forward.1} parent=1 // pred_check_branch
      %307 = sbr.rel (0) target = $region253
    $region252: #{forward.1} parent=1 // pred_region
      %309 = vsyncadd [#allocation12], 0
      %s311 = sshll.u32 %s125, 4
      %s312 = int_to_ptr.hbm [resolvable:$true] %s311
      %s313 = sshll.u32 [#allocation11], 4
      %s314 = int_to_ptr.vmem [resolvable:$true] %s313
      %316 = dma.hbm_to_vmem [thread:$0]  %s312, 16, %s314, [#allocation12]
    $region253: #{forward.1} parent=1 // pred_fallthru
      _
    // Predicated region
    $region254: #{forward.1} parent=1 // pred_check
      _
    $region255: #{forward.1} parent=1 // pred_check_branch
      %318 = sbr.rel (0) target = $region257
    $region256: #{forward.1} parent=1 // pred_region
      %320 = dma.done [#allocation3], 16
    $region257: #{forward.1} parent=1 // pred_fallthru
      _
    // Predicated region
    $region258: #{forward.1} parent=1 // pred_check
      _
    $region259: #{forward.1} parent=1 // pred_check_branch
      %322 = sbr.rel (0) target = $region261
    $region260: #{forward.1} parent=1 // pred_region
      %324 = dma.done [#allocation6], 16
    $region261: #{forward.1} parent=1 // pred_fallthru
      _
    // Predicated region
    $region262: #{forward.1} parent=1 // pred_check
      _
    $region263: #{forward.1} parent=1 // pred_check_branch
      %326 = sbr.rel (0) target = $region265
    $region264: #{forward.1} parent=1 // pred_region
      %328 = dma.done [#allocation6], 16
    $region265: #{forward.1} parent=1 // pred_fallthru
      _
    // Predicated region
    $region266: #{forward.1} parent=1 // pred_check
      _
    $region267: #{forward.1} parent=1 // pred_check_branch
      %330 = sbr.rel (0) target = $region269
    $region268: #{forward.1} parent=1 // pred_region
      %332 = dma.done [#allocation9], 16
    $region269: #{forward.1} parent=1 // pred_fallthru
      _
    // Predicated region
    $region270: #{forward.1} parent=1 // pred_check
      _
    $region271: #{forward.1} parent=1 // pred_check_branch
      %334 = sbr.rel (0) target = $region273
    $region272: #{forward.1} parent=1 // pred_region
      %336 = dma.done [#allocation9], 16
    $region273: #{forward.1} parent=1 // pred_fallthru
      _
    // Predicated region
    $region274: #{forward.1} parent=1 // pred_check
      _
    $region275: #{forward.1} parent=1 // pred_check_branch
      %338 = sbr.rel (0) target = $region277
    $region276: #{forward.1} parent=1 // pred_region
      %340 = dma.done [#allocation12], 16
    $region277: #{forward.1} parent=1 // pred_fallthru
      _
    %v341 = vld [vmem:[%s1] sm:$0xff]
    %v342 = vld [vmem:[%s1 + $0x8] sm:$0xff]
    %v343 = vld [vmem:[%s1 + $0x10] sm:$0xff]
    %v344 = vld [vmem:[%s1 + $0x18] sm:$0xff]
    %v345 = vld [vmem:[%s3] sm:$0xff]
    %v346 = vld [vmem:[%s3 + $0x8] sm:$0xff]
    %v347 = vld [vmem:[%s3 + $0x10] sm:$0xff]
    %v348 = vld [vmem:[%s3 + $0x18] sm:$0xf]
    %v349 = vld [vmem:[%s5] sm:$0x1]
    %v350 = vld [vmem:[%s7] sm:$0x1]
    %vm353 = vcmask 1042432
    %v354 = vrot.slane %v341, 5
    %v355 = vrot.slane %v342, 5
    %v356 = vsel %vm353, %v354, %v355
    %vm362 = vcmask 1040384
    %v363 = vrot.slane %v343, 7
    %v364 = vrot.slane %v344, 7
    %v365 = vsel %vm362, %v363, %v364
    %v368 = vsel %vm353, 0.0, %v354
    %v369 = vsel %vm353, %v355, 0.0
    %vm370 = vcmask 1045504
    %v371 = vsel %vm370, %v369, 0.0
    %v372 = vsel %vm362, 0.0, %v363
    %v373 = vsel %vm362, %v364, 0.0
    %vm376 = vcmask 1041408
    %v377 = vrot.slane %v371, 6
    %v378 = vrot.slane %v372, 6
    %v379 = vsel %vm376, %v377, %v378
    %v380 = vrot.slane %v365, 6
    %v381 = vsel %vm376, %v378, %v380
    %vm385 = vcmask 1046528
    %v386 = vrot.slane %v368, 1
    %v387 = vrot.slane %v356, 1
    %v388 = vsel %vm385, %v386, %v387
    %v389 = vrot.slane %v371, 1
    %v390 = vsel %vm385, %v387, %v389
    %v391 = vrot.slane %v371, 7
    %v392 = vrot.slane %v372, 7
    %v393 = vsel %vm362, %v391, %v392
    %v394 = vrot.slane %v365, 7
    %v395 = vsel %vm362, %v392, %v394
    %v396 = vrot.slane %v368, 2
    %v397 = vrot.slane %v356, 2
    %v398 = vsel %vm370, %v396, %v397
    %v399 = vrot.slane %v371, 2
    %v400 = vsel %vm370, %v397, %v399
    %vm401 = vcmask 1044480
    %v402 = vrot.slane %v368, 3
    %v403 = vrot.slane %v356, 3
    %v404 = vsel %vm401, %v402, %v403
    %v405 = vrot.slane %v371, 3
    %v406 = vsel %vm401, %v403, %v405
    %v408 = vrot.slane %v372, 1
    %v409 = vrot.slane %v365, 1
    %v410 = vsel %vm385, %v408, %v409
    %v411 = vrot.slane %v373, 1
    %v412 = vsel %vm385, %v409, %v411
    %vm413 = vcmask 1043456
    %v414 = vrot.slane %v368, 4
    %v415 = vrot.slane %v356, 4
    %v416 = vsel %vm413, %v414, %v415
    %v417 = vrot.slane %v371, 4
    %v418 = vsel %vm413, %v415, %v417
    %v419 = vrot.slane %v372, 2
    %v420 = vrot.slane %v365, 2
    %v421 = vsel %vm370, %v419, %v420
    %v422 = vrot.slane %v373, 2
    %v423 = vsel %vm370, %v420, %v422
    %v424 = vrot.slane %v368, 5
    %v425 = vrot.slane %v356, 5
    %v426 = vsel %vm353, %v424, %v425
    %v427 = vrot.slane %v371, 5
    %v428 = vsel %vm353, %v425, %v427
    %v429 = vrot.slane %v372, 3
    %v430 = vrot.slane %v365, 3
    %v431 = vsel %vm401, %v429, %v430
    %v432 = vrot.slane %v373, 3
    %v433 = vsel %vm401, %v430, %v432
    %v434 = vrot.slane %v368, 6
    %v435 = vrot.slane %v356, 6
    %v436 = vsel %vm376, %v434, %v435
    %v437 = vsel %vm376, %v435, %v377
    %v438 = vrot.slane %v372, 4
    %v439 = vrot.slane %v365, 4
    %v440 = vsel %vm413, %v438, %v439
    %v441 = vrot.slane %v373, 4
    %v442 = vsel %vm413, %v439, %v441
    %443 = vrot.lane.b32.xlu0 %v388, 4
    %v444 = vpop.permute.xlu0 %443
    %445 = vrot.lane.b32.xlu0 %v390, 4
    %v446 = vpop.permute.xlu0 %445
    %447 = vrot.lane.b32.xlu0 %v393, 4
    %v448 = vpop.permute.xlu0 %447
    %449 = vrot.lane.b32.xlu0 %v395, 4
    %v450 = vpop.permute.xlu0 %449
    %455 = vrot.lane.b32.xlu0 %v398, 8
    %v456 = vpop.permute.xlu0 %455
    %457 = vrot.lane.b32.xlu0 %v400, 8
    %v458 = vpop.permute.xlu0 %457
    %459 = vrot.lane.b32.xlu0 %v372, 8
    %v460 = vpop.permute.xlu0 %459
    %461 = vrot.lane.b32.xlu0 %v365, 8
    %v462 = vpop.permute.xlu0 %461
    %467 = vrot.lane.b32.xlu0 %v404, 12
    %v468 = vpop.permute.xlu0 %467
    %469 = vrot.lane.b32.xlu0 %v406, 12
    %v470 = vpop.permute.xlu0 %469
    %471 = vrot.lane.b32.xlu0 %v410, 12
    %v472 = vpop.permute.xlu0 %471
    %473 = vrot.lane.b32.xlu0 %v412, 12
    %v474 = vpop.permute.xlu0 %473
    %479 = vrot.lane.b32.xlu0 %v416, 16
    %v480 = vpop.permute.xlu0 %479
    %481 = vrot.lane.b32.xlu0 %v418, 16
    %v482 = vpop.permute.xlu0 %481
    %483 = vrot.lane.b32.xlu0 %v421, 16
    %v484 = vpop.permute.xlu0 %483
    %485 = vrot.lane.b32.xlu0 %v423, 16
    %v486 = vpop.permute.xlu0 %485
    %491 = vrot.lane.b32.xlu0 %v426, 20
    %v492 = vpop.permute.xlu0 %491
    %493 = vrot.lane.b32.xlu0 %v428, 20
    %v494 = vpop.permute.xlu0 %493
    %495 = vrot.lane.b32.xlu0 %v431, 20
    %v496 = vpop.permute.xlu0 %495
    %497 = vrot.lane.b32.xlu0 %v433, 20
    %v498 = vpop.permute.xlu0 %497
    %503 = vrot.lane.b32.xlu0 %v436, 24
    %v504 = vpop.permute.xlu0 %503
    %505 = vrot.lane.b32.xlu0 %v437, 24
    %v506 = vpop.permute.xlu0 %505
    %507 = vrot.lane.b32.xlu0 %v440, 24
    %v508 = vpop.permute.xlu0 %507
    %509 = vrot.lane.b32.xlu0 %v442, 24
    %v510 = vpop.permute.xlu0 %509
    %vm515 = vcmask 31744
    %v516 = vsel %vm515, %v368, %v444
    %v517 = vsel %vm515, %v356, %v446
    %v518 = vsel %vm515, %v379, %v448
    %v519 = vsel %vm515, %v381, %v450
    %vm520 = vcmask 64512
    %v521 = vsel %vm520, %v516, %v456
    %v522 = vsel %vm520, %v517, %v458
    %v523 = vsel %vm520, %v518, %v460
    %v524 = vsel %vm520, %v519, %v462
    %vm525 = vcmask 97280
    %v526 = vsel %vm525, %v521, %v468
    %v527 = vsel %vm525, %v522, %v470
    %v528 = vsel %vm525, %v523, %v472
    %v529 = vsel %vm525, %v524, %v474
    %vm530 = vcmask 130048
    %v531 = vsel %vm530, %v526, %v480
    %v532 = vsel %vm530, %v527, %v482
    %v533 = vsel %vm530, %v528, %v484
    %v534 = vsel %vm530, %v529, %v486
    %vm535 = vcmask 162816
    %v536 = vsel %vm535, %v531, %v492
    %v537 = vsel %vm535, %v532, %v494
    %v538 = vsel %vm535, %v533, %v496
    %v539 = vsel %vm535, %v534, %v498
    %vm540 = vcmask 195584
    %v541 = vsel %vm540, %v536, %v504
    %v542 = vsel %vm540, %v537, %v506
    %v543 = vsel %vm540, %v538, %v508
    %v544 = vsel %vm540, %v539, %v510
    %vm545 = vcmask 228352
    %v547 = vsel %vm545, %v541, 0
    %v550 = vsel %vm545, %v542, 0
    %v553 = vsel %vm545, %v543, 0
    %v556 = vsel %vm545, %v544, 0
    %v559 = vsel %vm413, %v348, 0
    %561 = vmatpush.msra.mxu0 0.0
    %562 = vmatpush.msra.mxu0 0.0
    %563 = vmatpush.msra.mxu0 0.0
    %564 = vmatpush.msra.mxu0 0.0
    %565 = vmatpush.msra.mxu0 0.0
    %566 = vmatpush.msra.mxu0 0.0
    %567 = vmatpush.msra.mxu0 0.0
    %568 = vmatpush.msra.mxu0 0.0
    %569 = vmatpush.msra.mxu0 0.0
    %570 = vmatpush.msra.mxu0 0.0
    %571 = vmatpush.msra.mxu0 0.0
    %572 = vmatpush.msra.mxu0 0.0
    %573 = vmatpush.msra.mxu0 %v559
    %574 = vmatpush.msra.mxu0 %v347
    %575 = vmatpush.msra.mxu0 %v346
    %576 = vmatpush.msra.mxu0 %v345
    %577 = vmatmul.f32.gmra.mxu0 %v547
    %v578 = vpop.f32.mrf.mxu0
    %v579 = vadd.f32 0.0, %v578
    %580 = vmatmul.f32.gmra.mxu0 %v550
    %v581 = vpop.f32.mrf.mxu0
    %v582 = vadd.f32 0.0, %v581
    %583 = vmatmul.f32.gmra.mxu0 %v553
    %v584 = vpop.f32.mrf.mxu0
    %v585 = vadd.f32 0.0, %v584
    %586 = vmatmul.f32.gmra.mxu0 %v556
    %v587 = vpop.f32.mrf.mxu0
    %v588 = vadd.f32 0.0, %v587
    %589 = vdwg.mxu0
    %v591 = vperm.slane %v349, 0
    %v593 = vmul.f32 %v579, %v591
    %v594 = vmul.f32 %v582, %v591
    %v595 = vmul.f32 %v585, %v591
    %v596 = vmul.f32 %v588, %v591
    %v598 = vperm.slane %v350, 0
    %v600 = vadd.f32 %v593, %v598
    %v601 = vadd.f32 %v594, %v598
    %v602 = vadd.f32 %v595, %v598
    %v603 = vadd.f32 %v596, %v598
    %v604 = vmax.f32 %v600, 0.0
    %v605 = vmax.f32 %v601, 0.0
    %v606 = vmax.f32 %v602, 0.0
    %v607 = vmax.f32 %v603, 0.0
    %v608 = vld [vmem:[%s9] sm:$0xff]
    %v609 = vld [vmem:[%s9 + $0x8] sm:$0xff]
    %v610 = vld [vmem:[%s9 + $0x10] sm:$0xff]
    %v611 = vld [vmem:[%s11] sm:$0x1]
    %v612 = vld [vmem:[%s13] sm:$0x1]
    %v615 = vrot.slane %v604, 7
    %v616 = vrot.slane %v605, 7
    %v617 = vsel %vm362, %v615, %v616
    %v623 = vrot.slane %v606, 5
    %v624 = vrot.slane %v607, 5
    %v625 = vsel %vm353, %v623, %v624
    %v628 = vsel %vm362, 0.0, %v615
    %v629 = vsel %vm362, %v616, 0.0
    %v630 = vsel %vm376, %v629, 0.0
    %v631 = vsel %vm353, %v630, %v623
    %v632 = vsel %vm353, %v624, 0.0
    %v635 = vrot.slane %v631, 2
    %v636 = vrot.slane %v625, 2
    %v637 = vsel %vm370, %v635, %v636
    %v638 = vrot.slane %v632, 2
    %v639 = vsel %vm370, %v636, %v638
    %v643 = vrot.slane %v628, 1
    %v644 = vrot.slane %v617, 1
    %v645 = vsel %vm385, %v643, %v644
    %v646 = vrot.slane %v631, 1
    %v647 = vsel %vm385, %v644, %v646
    %v648 = vrot.slane %v631, 3
    %v649 = vrot.slane %v625, 3
    %v650 = vsel %vm401, %v648, %v649
    %v651 = vrot.slane %v632, 3
    %v652 = vsel %vm401, %v649, %v651
    %v653 = vrot.slane %v628, 2
    %v654 = vrot.slane %v617, 2
    %v655 = vsel %vm370, %v653, %v654
    %v656 = vsel %vm370, %v654, %v635
    %v657 = vrot.slane %v631, 4
    %v658 = vrot.slane %v625, 4
    %v659 = vsel %vm413, %v657, %v658
    %v660 = vrot.slane %v632, 4
    %v661 = vsel %vm413, %v658, %v660
    %662 = vrot.lane.b32.xlu0 %v645, 8
    %v663 = vpop.permute.xlu0 %662
    %664 = vrot.lane.b32.xlu0 %v647, 8
    %v665 = vpop.permute.xlu0 %664
    %666 = vrot.lane.b32.xlu0 %v650, 8
    %v667 = vpop.permute.xlu0 %666
    %668 = vrot.lane.b32.xlu0 %v652, 8
    %v669 = vpop.permute.xlu0 %668
    %674 = vrot.lane.b32.xlu0 %v655, 16
    %v675 = vpop.permute.xlu0 %674
    %676 = vrot.lane.b32.xlu0 %v656, 16
    %v677 = vpop.permute.xlu0 %676
    %678 = vrot.lane.b32.xlu0 %v659, 16
    %v679 = vpop.permute.xlu0 %678
    %680 = vrot.lane.b32.xlu0 %v661, 16
    %v681 = vpop.permute.xlu0 %680
    %v686 = vsel %vm520, %v628, %v663
    %v687 = vsel %vm520, %v617, %v665
    %v688 = vsel %vm520, %v637, %v667
    %v689 = vsel %vm520, %v639, %v669
    %v690 = vsel %vm530, %v686, %v675
    %v691 = vsel %vm530, %v687, %v677
    %v692 = vsel %vm530, %v688, %v679
    %v693 = vsel %vm530, %v689, %v681
    %v695 = vsel %vm540, %v690, 0
    %v698 = vsel %vm540, %v691, 0
    %v701 = vsel %vm540, %v692, 0
    %v704 = vsel %vm540, %v693, 0
    %706 = vmatpush.msra.mxu0 0.0
    %707 = vmatpush.msra.mxu0 0.0
    %708 = vmatpush.msra.mxu0 0.0
    %709 = vmatpush.msra.mxu0 0.0
    %710 = vmatpush.msra.mxu0 0.0
    %711 = vmatpush.msra.mxu0 0.0
    %712 = vmatpush.msra.mxu0 0.0
    %713 = vmatpush.msra.mxu0 0.0
    %714 = vmatpush.msra.mxu0 0.0
    %715 = vmatpush.msra.mxu0 0.0
    %716 = vmatpush.msra.mxu0 0.0
    %717 = vmatpush.msra.mxu0 0.0
    %718 = vmatpush.msra.mxu0 0.0
    %719 = vmatpush.msra.mxu0 %v610
    %720 = vmatpush.msra.mxu0 %v609
    %721 = vmatpush.msra.mxu0 %v608
    %722 = vmatmul.f32.gmra.mxu0 %v695
    %v723 = vpop.f32.mrf.mxu0
    %v724 = vadd.f32 0.0, %v723
    %725 = vmatmul.f32.gmra.mxu0 %v698
    %v726 = vpop.f32.mrf.mxu0
    %v727 = vadd.f32 0.0, %v726
    %728 = vmatmul.f32.gmra.mxu0 %v701
    %v729 = vpop.f32.mrf.mxu0
    %v730 = vadd.f32 0.0, %v729
    %731 = vmatmul.f32.gmra.mxu0 %v704
    %v732 = vpop.f32.mrf.mxu0
    %v733 = vadd.f32 0.0, %v732
    %734 = vdwg.mxu0
    %v736 = vperm.slane %v611, 0
    %v738 = vmul.f32 %v724, %v736
    %v739 = vmul.f32 %v727, %v736
    %v740 = vmul.f32 %v730, %v736
    %v741 = vmul.f32 %v733, %v736
    %v743 = vperm.slane %v612, 0
    %v745 = vadd.f32 %v738, %v743
    %v746 = vadd.f32 %v739, %v743
    %v747 = vadd.f32 %v740, %v743
    %v748 = vadd.f32 %v741, %v743
    %v749 = vmax.f32 %v745, 0.0
    %v750 = vmax.f32 %v746, 0.0
    %v751 = vmax.f32 %v747, 0.0
    %v752 = vmax.f32 %v748, 0.0
    %v753 = vld [vmem:[%s15] sm:$0xff]
    %v754 = vld [vmem:[%s15 + $0x8] sm:$0xff]
    %v755 = vld [vmem:[%s15 + $0x10] sm:$0xff]
    %v756 = vld [vmem:[%s17] sm:$0x1]
    %v757 = vld [vmem:[%s19] sm:$0x1]
    %v760 = vrot.slane %v749, 7
    %v761 = vrot.slane %v750, 7
    %v762 = vsel %vm362, %v760, %v761
    %v768 = vrot.slane %v751, 5
    %v769 = vrot.slane %v752, 5
    %v770 = vsel %vm353, %v768, %v769
    %v773 = vsel %vm362, 0.0, %v760
    %v774 = vsel %vm362, %v761, 0.0
    %v775 = vsel %vm376, %v774, 0.0
    %v776 = vsel %vm353, %v775, %v768
    %v777 = vsel %vm353, %v769, 0.0
    %v780 = vrot.slane %v776, 2
    %v781 = vrot.slane %v770, 2
    %v782 = vsel %vm370, %v780, %v781
    %v783 = vrot.slane %v777, 2
    %v784 = vsel %vm370, %v781, %v783
    %v788 = vrot.slane %v773, 1
    %v789 = vrot.slane %v762, 1
    %v790 = vsel %vm385, %v788, %v789
    %v791 = vrot.slane %v776, 1
    %v792 = vsel %vm385, %v789, %v791
    %v793 = vrot.slane %v776, 3
    %v794 = vrot.slane %v770, 3
    %v795 = vsel %vm401, %v793, %v794
    %v796 = vrot.slane %v777, 3
    %v797 = vsel %vm401, %v794, %v796
    %v798 = vrot.slane %v773, 2
    %v799 = vrot.slane %v762, 2
    %v800 = vsel %vm370, %v798, %v799
    %v801 = vsel %vm370, %v799, %v780
    %v802 = vrot.slane %v776, 4
    %v803 = vrot.slane %v770, 4
    %v804 = vsel %vm413, %v802, %v803
    %v805 = vrot.slane %v777, 4
    %v806 = vsel %vm413, %v803, %v805
    %807 = vrot.lane.b32.xlu0 %v790, 8
    %v808 = vpop.permute.xlu0 %807
    %809 = vrot.lane.b32.xlu0 %v792, 8
    %v810 = vpop.permute.xlu0 %809
    %811 = vrot.lane.b32.xlu0 %v795, 8
    %v812 = vpop.permute.xlu0 %811
    %813 = vrot.lane.b32.xlu0 %v797, 8
    %v814 = vpop.permute.xlu0 %813
    %819 = vrot.lane.b32.xlu0 %v800, 16
    %v820 = vpop.permute.xlu0 %819
    %821 = vrot.lane.b32.xlu0 %v801, 16
    %v822 = vpop.permute.xlu0 %821
    %823 = vrot.lane.b32.xlu0 %v804, 16
    %v824 = vpop.permute.xlu0 %823
    %825 = vrot.lane.b32.xlu0 %v806, 16
    %v826 = vpop.permute.xlu0 %825
    %v831 = vsel %vm520, %v773, %v808
    %v832 = vsel %vm520, %v762, %v810
    %v833 = vsel %vm520, %v782, %v812
    %v834 = vsel %vm520, %v784, %v814
    %v835 = vsel %vm530, %v831, %v820
    %v836 = vsel %vm530, %v832, %v822
    %v837 = vsel %vm530, %v833, %v824
    %v838 = vsel %vm530, %v834, %v826
    %v840 = vsel %vm540, %v835, 0
    %v843 = vsel %vm540, %v836, 0
    %v846 = vsel %vm540, %v837, 0
    %v849 = vsel %vm540, %v838, 0
    %851 = vmatpush.msra.mxu0 0.0
    %852 = vmatpush.msra.mxu0 0.0
    %853 = vmatpush.msra.mxu0 0.0
    %854 = vmatpush.msra.mxu0 0.0
    %855 = vmatpush.msra.mxu0 0.0
    %856 = vmatpush.msra.mxu0 0.0
    %857 = vmatpush.msra.mxu0 0.0
    %858 = vmatpush.msra.mxu0 0.0
    %859 = vmatpush.msra.mxu0 0.0
    %860 = vmatpush.msra.mxu0 0.0
    %861 = vmatpush.msra.mxu0 0.0
    %862 = vmatpush.msra.mxu0 0.0
    %863 = vmatpush.msra.mxu0 0.0
    %864 = vmatpush.msra.mxu0 %v755
    %865 = vmatpush.msra.mxu0 %v754
    %866 = vmatpush.msra.mxu0 %v753
    %867 = vmatmul.f32.gmra.mxu0 %v840
    %v868 = vpop.f32.mrf.mxu0
    %v869 = vadd.f32 0.0, %v868
    %870 = vmatmul.f32.gmra.mxu0 %v843
    %v871 = vpop.f32.mrf.mxu0
    %v872 = vadd.f32 0.0, %v871
    %873 = vmatmul.f32.gmra.mxu0 %v846
    %v874 = vpop.f32.mrf.mxu0
    %v875 = vadd.f32 0.0, %v874
    %876 = vmatmul.f32.gmra.mxu0 %v849
    %v877 = vpop.f32.mrf.mxu0
    %v878 = vadd.f32 0.0, %v877
    %879 = vdwg.mxu0
    %v881 = vperm.slane %v756, 0
    %v883 = vmul.f32 %v869, %v881
    %v884 = vmul.f32 %v872, %v881
    %v885 = vmul.f32 %v875, %v881
    %v886 = vmul.f32 %v878, %v881
    %v888 = vperm.slane %v757, 0
    %v890 = vadd.f32 %v883, %v888
    %v891 = vadd.f32 %v884, %v888
    %v892 = vadd.f32 %v885, %v888
    %v893 = vadd.f32 %v886, %v888
    %v894 = vadd.f32 %v890, %v604
    %v895 = vadd.f32 %v891, %v605
    %v896 = vadd.f32 %v892, %v606
    %v897 = vadd.f32 %v893, %v607
    %v898 = vmax.f32 %v894, 0.0
    %v899 = vmax.f32 %v895, 0.0
    %v900 = vmax.f32 %v896, 0.0
    %v901 = vmax.f32 %v897, 0.0
    %v902 = vld [vmem:[%s21] sm:$0xff]
    %v903 = vld [vmem:[%s21 + $0x8] sm:$0xff]
    %v904 = vld [vmem:[%s21 + $0x10] sm:$0xff]
    %v905 = vld [vmem:[%s23] sm:$0x1]
    %v906 = vld [vmem:[%s25] sm:$0x1]
    %v909 = vrot.slane %v898, 7
    %v910 = vrot.slane %v899, 7
    %v911 = vsel %vm362, %v909, %v910
    %v917 = vrot.slane %v900, 5
    %v918 = vrot.slane %v901, 5
    %v919 = vsel %vm353, %v917, %v918
    %v922 = vsel %vm362, 0.0, %v909
    %v923 = vsel %vm362, %v910, 0.0
    %v924 = vsel %vm376, %v923, 0.0
    %v925 = vsel %vm353, %v924, %v917
    %v926 = vsel %vm353, %v918, 0.0
    %v929 = vrot.slane %v925, 2
    %v930 = vrot.slane %v919, 2
    %v931 = vsel %vm370, %v929, %v930
    %v932 = vrot.slane %v926, 2
    %v933 = vsel %vm370, %v930, %v932
    %v937 = vrot.slane %v922, 1
    %v938 = vrot.slane %v911, 1
    %v939 = vsel %vm385, %v937, %v938
    %v940 = vrot.slane %v925, 1
    %v941 = vsel %vm385, %v938, %v940
    %v942 = vrot.slane %v925, 3
    %v943 = vrot.slane %v919, 3
    %v944 = vsel %vm401, %v942, %v943
    %v945 = vrot.slane %v926, 3
    %v946 = vsel %vm401, %v943, %v945
    %v947 = vrot.slane %v922, 2
    %v948 = vrot.slane %v911, 2
    %v949 = vsel %vm370, %v947, %v948
    %v950 = vsel %vm370, %v948, %v929
    %v951 = vrot.slane %v925, 4
    %v952 = vrot.slane %v919, 4
    %v953 = vsel %vm413, %v951, %v952
    %v954 = vrot.slane %v926, 4
    %v955 = vsel %vm413, %v952, %v954
    %956 = vrot.lane.b32.xlu0 %v939, 8
    %v957 = vpop.permute.xlu0 %956
    %958 = vrot.lane.b32.xlu0 %v941, 8
    %v959 = vpop.permute.xlu0 %958
    %960 = vrot.lane.b32.xlu0 %v944, 8
    %v961 = vpop.permute.xlu0 %960
    %962 = vrot.lane.b32.xlu0 %v946, 8
    %v963 = vpop.permute.xlu0 %962
    %968 = vrot.lane.b32.xlu0 %v949, 16
    %v969 = vpop.permute.xlu0 %968
    %970 = vrot.lane.b32.xlu0 %v950, 16
    %v971 = vpop.permute.xlu0 %970
    %972 = vrot.lane.b32.xlu0 %v953, 16
    %v973 = vpop.permute.xlu0 %972
    %974 = vrot.lane.b32.xlu0 %v955, 16
    %v975 = vpop.permute.xlu0 %974
    %v980 = vsel %vm520, %v922, %v957
    %v981 = vsel %vm520, %v911, %v959
    %v982 = vsel %vm520, %v931, %v961
    %v983 = vsel %vm520, %v933, %v963
    %v984 = vsel %vm530, %v980, %v969
    %v985 = vsel %vm530, %v981, %v971
    %v986 = vsel %vm530, %v982, %v973
    %v987 = vsel %vm530, %v983, %v975
    %v989 = vsel %vm540, %v984, 0
    %v992 = vsel %vm540, %v985, 0
    %v995 = vsel %vm540, %v986, 0
    %v998 = vsel %vm540, %v987, 0
    %1000 = vmatpush.msra.mxu0 0.0
    %1001 = vmatpush.msra.mxu0 0.0
    %1002 = vmatpush.msra.mxu0 0.0
    %1003 = vmatpush.msra.mxu0 0.0
    %1004 = vmatpush.msra.mxu0 0.0
    %1005 = vmatpush.msra.mxu0 0.0
    %1006 = vmatpush.msra.mxu0 0.0
    %1007 = vmatpush.msra.mxu0 0.0
    %1008 = vmatpush.msra.mxu0 0.0
    %1009 = vmatpush.msra.mxu0 0.0
    %1010 = vmatpush.msra.mxu0 0.0
    %1011 = vmatpush.msra.mxu0 0.0
    %1012 = vmatpush.msra.mxu0 0.0
    %1013 = vmatpush.msra.mxu0 %v904
    %1014 = vmatpush.msra.mxu0 %v903
    %1015 = vmatpush.msra.mxu0 %v902
    %1016 = vmatmul.f32.gmra.mxu0 %v989
    %v1017 = vpop.f32.mrf.mxu0
    %v1018 = vadd.f32 0.0, %v1017
    %1019 = vmatmul.f32.gmra.mxu0 %v992
    %v1020 = vpop.f32.mrf.mxu0
    %v1021 = vadd.f32 0.0, %v1020
    %1022 = vmatmul.f32.gmra.mxu0 %v995
    %v1023 = vpop.f32.mrf.mxu0
    %v1024 = vadd.f32 0.0, %v1023
    %1025 = vmatmul.f32.gmra.mxu0 %v998
    %v1026 = vpop.f32.mrf.mxu0
    %v1027 = vadd.f32 0.0, %v1026
    %1028 = vdwg.mxu0
    %v1030 = vperm.slane %v905, 0
    %v1032 = vmul.f32 %v1018, %v1030
    %v1033 = vmul.f32 %v1021, %v1030
    %v1034 = vmul.f32 %v1024, %v1030
    %v1035 = vmul.f32 %v1027, %v1030
    %v1037 = vperm.slane %v906, 0
    %v1039 = vadd.f32 %v1032, %v1037
    %v1040 = vadd.f32 %v1033, %v1037
    %v1041 = vadd.f32 %v1034, %v1037
    %v1042 = vadd.f32 %v1035, %v1037
    %v1043 = vmax.f32 %v1039, 0.0
    %v1044 = vmax.f32 %v1040, 0.0
    %v1045 = vmax.f32 %v1041, 0.0
    %v1046 = vmax.f32 %v1042, 0.0
    %v1047 = vld [vmem:[%s27] sm:$0xff]
    %v1048 = vld [vmem:[%s27 + $0x8] sm:$0xff]
    %v1049 = vld [vmem:[%s27 + $0x10] sm:$0xff]
    %v1050 = vld [vmem:[%s29] sm:$0x1]
    %v1051 = vld [vmem:[%s31] sm:$0x1]
    %v1054 = vrot.slane %v1043, 7
    %v1055 = vrot.slane %v1044, 7
    %v1056 = vsel %vm362, %v1054, %v1055
    %v1062 = vrot.slane %v1045, 5
    %v1063 = vrot.slane %v1046, 5
    %v1064 = vsel %vm353, %v1062, %v1063
    %v1067 = vsel %vm362, 0.0, %v1054
    %v1068 = vsel %vm362, %v1055, 0.0
    %v1069 = vsel %vm376, %v1068, 0.0
    %v1070 = vsel %vm353, %v1069, %v1062
    %v1071 = vsel %vm353, %v1063, 0.0
    %v1074 = vrot.slane %v1070, 2
    %v1075 = vrot.slane %v1064, 2
    %v1076 = vsel %vm370, %v1074, %v1075
    %v1077 = vrot.slane %v1071, 2
    %v1078 = vsel %vm370, %v1075, %v1077
    %v1082 = vrot.slane %v1067, 1
    %v1083 = vrot.slane %v1056, 1
    %v1084 = vsel %vm385, %v1082, %v1083
    %v1085 = vrot.slane %v1070, 1
    %v1086 = vsel %vm385, %v1083, %v1085
    %v1087 = vrot.slane %v1070, 3
    %v1088 = vrot.slane %v1064, 3
    %v1089 = vsel %vm401, %v1087, %v1088
    %v1090 = vrot.slane %v1071, 3
    %v1091 = vsel %vm401, %v1088, %v1090
    %v1092 = vrot.slane %v1067, 2
    %v1093 = vrot.slane %v1056, 2
    %v1094 = vsel %vm370, %v1092, %v1093
    %v1095 = vsel %vm370, %v1093, %v1074
    %v1096 = vrot.slane %v1070, 4
    %v1097 = vrot.slane %v1064, 4
    %v1098 = vsel %vm413, %v1096, %v1097
    %v1099 = vrot.slane %v1071, 4
    %v1100 = vsel %vm413, %v1097, %v1099
    %1101 = vrot.lane.b32.xlu0 %v1084, 8
    %v1102 = vpop.permute.xlu0 %1101
    %1103 = vrot.lane.b32.xlu0 %v1086, 8
    %v1104 = vpop.permute.xlu0 %1103
    %1105 = vrot.lane.b32.xlu0 %v1089, 8
    %v1106 = vpop.permute.xlu0 %1105
    %1107 = vrot.lane.b32.xlu0 %v1091, 8
    %v1108 = vpop.permute.xlu0 %1107
    %1113 = vrot.lane.b32.xlu0 %v1094, 16
    %v1114 = vpop.permute.xlu0 %1113
    %1115 = vrot.lane.b32.xlu0 %v1095, 16
    %v1116 = vpop.permute.xlu0 %1115
    %1117 = vrot.lane.b32.xlu0 %v1098, 16
    %v1118 = vpop.permute.xlu0 %1117
    %1119 = vrot.lane.b32.xlu0 %v1100, 16
    %v1120 = vpop.permute.xlu0 %1119
    %v1125 = vsel %vm520, %v1067, %v1102
    %v1126 = vsel %vm520, %v1056, %v1104
    %v1127 = vsel %vm520, %v1076, %v1106
    %v1128 = vsel %vm520, %v1078, %v1108
    %v1129 = vsel %vm530, %v1125, %v1114
    %v1130 = vsel %vm530, %v1126, %v1116
    %v1131 = vsel %vm530, %v1127, %v1118
    %v1132 = vsel %vm530, %v1128, %v1120
    %v1134 = vsel %vm540, %v1129, 0
    %v1137 = vsel %vm540, %v1130, 0
    %v1140 = vsel %vm540, %v1131, 0
    %v1143 = vsel %vm540, %v1132, 0
    %1145 = vmatpush.msra.mxu0 0.0
    %1146 = vmatpush.msra.mxu0 0.0
    %1147 = vmatpush.msra.mxu0 0.0
    %1148 = vmatpush.msra.mxu0 0.0
    %1149 = vmatpush.msra.mxu0 0.0
    %1150 = vmatpush.msra.mxu0 0.0
    %1151 = vmatpush.msra.mxu0 0.0
    %1152 = vmatpush.msra.mxu0 0.0
    %1153 = vmatpush.msra.mxu0 0.0
    %1154 = vmatpush.msra.mxu0 0.0
    %1155 = vmatpush.msra.mxu0 0.0
    %1156 = vmatpush.msra.mxu0 0.0
    %1157 = vmatpush.msra.mxu0 0.0
    %1158 = vmatpush.msra.mxu0 %v1049
    %1159 = vmatpush.msra.mxu0 %v1048
    %1160 = vmatpush.msra.mxu0 %v1047
    %1161 = vmatmul.f32.gmra.mxu0 %v1134
    %v1162 = vpop.f32.mrf.mxu0
    %v1163 = vadd.f32 0.0, %v1162
    %1164 = vmatmul.f32.gmra.mxu0 %v1137
    %v1165 = vpop.f32.mrf.mxu0
    %v1166 = vadd.f32 0.0, %v1165
    %1167 = vmatmul.f32.gmra.mxu0 %v1140
    %v1168 = vpop.f32.mrf.mxu0
    %v1169 = vadd.f32 0.0, %v1168
    %1170 = vmatmul.f32.gmra.mxu0 %v1143
    %v1171 = vpop.f32.mrf.mxu0
    %v1172 = vadd.f32 0.0, %v1171
    %1173 = vdwg.mxu0
    %v1175 = vperm.slane %v1050, 0
    %v1177 = vmul.f32 %v1163, %v1175
    %v1178 = vmul.f32 %v1166, %v1175
    %v1179 = vmul.f32 %v1169, %v1175
    %v1180 = vmul.f32 %v1172, %v1175
    %v1182 = vperm.slane %v1051, 0
    %v1184 = vadd.f32 %v1177, %v1182
    %v1185 = vadd.f32 %v1178, %v1182
    %v1186 = vadd.f32 %v1179, %v1182
    %v1187 = vadd.f32 %v1180, %v1182
    %v1188 = vadd.f32 %v1184, %v898
    %v1189 = vadd.f32 %v1185, %v899
    %v1190 = vadd.f32 %v1186, %v900
    %v1191 = vadd.f32 %v1187, %v901
    %v1192 = vmax.f32 %v1188, 0.0
    %v1193 = vmax.f32 %v1189, 0.0
    %v1194 = vmax.f32 %v1190, 0.0
    %v1195 = vmax.f32 %v1191, 0.0
    %v1196 = vld [vmem:[%s33] sm:$0xff]
    %v1197 = vld [vmem:[%s35] sm:$0x1]
    %v1198 = vld [vmem:[%s37] sm:$0x1]
    %v1199 = vlaneseq
    %v1200 = vshrl.u32 %v1199, 7
    %v1201 = vlaneseq
    %v1202 = vand.u32 %v1201, 127
    %v1203 = vmul.u32 %v1200, 2
    %vm1204 = vcmp.eq.s32.totalorder %v1202, %v1203
    %v1205 = vsel %vm1204, 1.0, 0.0
    %v1207 = vsel %vm530, %v1205, 0
    %1209 = vmatpush.msra.mxu0 0.0
    %1210 = vmatpush.msra.mxu0 0.0
    %1211 = vmatpush.msra.mxu0 0.0
    %1212 = vmatpush.msra.mxu0 0.0
    %1213 = vmatpush.msra.mxu0 0.0
    %1214 = vmatpush.msra.mxu0 0.0
    %1215 = vmatpush.msra.mxu0 0.0
    %1216 = vmatpush.msra.mxu0 0.0
    %1217 = vmatpush.msra.mxu0 0.0
    %1218 = vmatpush.msra.mxu0 0.0
    %1219 = vmatpush.msra.mxu0 0.0
    %1220 = vmatpush.msra.mxu0 0.0
    %1221 = vmatpush.msra.mxu0 0.0
    %1222 = vmatpush.msra.mxu0 0.0
    %1223 = vmatpush.msra.mxu0 %v1193
    %1224 = vmatpush.msra.mxu0 %v1192
    %1225 = vmatmul.f32.gmra.mxu0 %v1207
    %v1226 = vpop.f32.mrf.mxu0
    %v1227 = vadd.f32 0.0, %v1226
    %1228 = vdwg.mxu0
    %1229 = vmatpush.msra.mxu0 0.0
    %1230 = vmatpush.msra.mxu0 0.0
    %1231 = vmatpush.msra.mxu0 0.0
    %1232 = vmatpush.msra.mxu0 0.0
    %1233 = vmatpush.msra.mxu0 0.0
    %1234 = vmatpush.msra.mxu0 0.0
    %1235 = vmatpush.msra.mxu0 0.0
    %1236 = vmatpush.msra.mxu0 0.0
    %1237 = vmatpush.msra.mxu0 0.0
    %1238 = vmatpush.msra.mxu0 0.0
    %1239 = vmatpush.msra.mxu0 0.0
    %1240 = vmatpush.msra.mxu0 0.0
    %1241 = vmatpush.msra.mxu0 0.0
    %1242 = vmatpush.msra.mxu0 0.0
    %1243 = vmatpush.msra.mxu0 %v1195
    %1244 = vmatpush.msra.mxu0 %v1194
    %1245 = vmatmul.f32.gmra.mxu0 %v1207
    %v1246 = vpop.f32.mrf.mxu0
    %v1247 = vadd.f32 0.0, %v1246
    %1248 = vdwg.mxu0
    %v1250 = vsel %vm520, %v1227, 0
    %v1253 = vsel %vm520, %v1247, 0
    %1255 = vmatpush.msra.mxu0 0.0
    %1256 = vmatpush.msra.mxu0 0.0
    %1257 = vmatpush.msra.mxu0 0.0
    %1258 = vmatpush.msra.mxu0 0.0
    %1259 = vmatpush.msra.mxu0 0.0
    %1260 = vmatpush.msra.mxu0 0.0
    %1261 = vmatpush.msra.mxu0 0.0
    %1262 = vmatpush.msra.mxu0 0.0
    %1263 = vmatpush.msra.mxu0 0.0
    %1264 = vmatpush.msra.mxu0 0.0
    %1265 = vmatpush.msra.mxu0 0.0
    %1266 = vmatpush.msra.mxu0 0.0
    %1267 = vmatpush.msra.mxu0 0.0
    %1268 = vmatpush.msra.mxu0 0.0
    %1269 = vmatpush.msra.mxu0 0.0
    %1270 = vmatpush.msra.mxu0 %v1196
    %1271 = vmatmul.f32.gmra.mxu0 %v1250
    %v1272 = vpop.f32.mrf.mxu0
    %v1273 = vadd.f32 0.0, %v1272
    %1274 = vmatmul.f32.gmra.mxu0 %v1253
    %v1275 = vpop.f32.mrf.mxu0
    %v1276 = vadd.f32 0.0, %v1275
    %1277 = vdwg.mxu0
    %v1279 = vperm.slane %v1197, 0
    %v1281 = vmul.f32 %v1273, %v1279
    %v1282 = vmul.f32 %v1276, %v1279
    %v1284 = vperm.slane %v1198, 0
    %v1286 = vadd.f32 %v1281, %v1284
    %v1287 = vadd.f32 %v1282, %v1284
    %v1288 = vld [vmem:[%s39] sm:$0xff]
    %v1289 = vld [vmem:[%s39 + $0x8] sm:$0xff]
    %v1290 = vld [vmem:[%s39 + $0x10] sm:$0xff]
    %v1291 = vld [vmem:[%s41] sm:$0x1]
    %v1292 = vld [vmem:[%s43] sm:$0x1]
    %v1293 = vadd.s32 %v1203, 4294967295
    %vm1294 = vcmp.eq.s32.totalorder %v1202, %v1293
    %v1295 = vsel %vm1294, 1.0, 0.0
    %v1297 = vsel %vm530, %v1295, 0
    %1299 = vmatpush.msra.mxu0 0.0
    %1300 = vmatpush.msra.mxu0 0.0
    %1301 = vmatpush.msra.mxu0 0.0
    %1302 = vmatpush.msra.mxu0 0.0
    %1303 = vmatpush.msra.mxu0 0.0
    %1304 = vmatpush.msra.mxu0 0.0
    %1305 = vmatpush.msra.mxu0 0.0
    %1306 = vmatpush.msra.mxu0 0.0
    %1307 = vmatpush.msra.mxu0 0.0
    %1308 = vmatpush.msra.mxu0 0.0
    %1309 = vmatpush.msra.mxu0 0.0
    %1310 = vmatpush.msra.mxu0 0.0
    %1311 = vmatpush.msra.mxu0 0.0
    %1312 = vmatpush.msra.mxu0 0.0
    %1313 = vmatpush.msra.mxu0 %v1193
    %1314 = vmatpush.msra.mxu0 %v1192
    %1315 = vmatmul.f32.gmra.mxu0 %v1297
    %v1316 = vpop.f32.mrf.mxu0
    %v1317 = vadd.f32 0.0, %v1316
    %1318 = vdwg.mxu0
    %1319 = vmatpush.msra.mxu0 0.0
    %1320 = vmatpush.msra.mxu0 0.0
    %1321 = vmatpush.msra.mxu0 0.0
    %1322 = vmatpush.msra.mxu0 0.0
    %1323 = vmatpush.msra.mxu0 0.0
    %1324 = vmatpush.msra.mxu0 0.0
    %1325 = vmatpush.msra.mxu0 0.0
    %1326 = vmatpush.msra.mxu0 0.0
    %1327 = vmatpush.msra.mxu0 0.0
    %1328 = vmatpush.msra.mxu0 0.0
    %1329 = vmatpush.msra.mxu0 0.0
    %1330 = vmatpush.msra.mxu0 0.0
    %1331 = vmatpush.msra.mxu0 0.0
    %1332 = vmatpush.msra.mxu0 0.0
    %1333 = vmatpush.msra.mxu0 %v1195
    %1334 = vmatpush.msra.mxu0 %v1194
    %1335 = vmatmul.f32.gmra.mxu0 %v1297
    %v1336 = vpop.f32.mrf.mxu0
    %v1337 = vadd.f32 0.0, %v1336
    %1338 = vdwg.mxu0
    %v1339 = vadd.s32 %v1203, 1
    %vm1340 = vcmp.eq.s32.totalorder %v1202, %v1339
    %v1341 = vsel %vm1340, 1.0, 0.0
    %v1343 = vsel %vm530, %v1341, 0
    %1345 = vmatpush.msra.mxu0 0.0
    %1346 = vmatpush.msra.mxu0 0.0
    %1347 = vmatpush.msra.mxu0 0.0
    %1348 = vmatpush.msra.mxu0 0.0
    %1349 = vmatpush.msra.mxu0 0.0
    %1350 = vmatpush.msra.mxu0 0.0
    %1351 = vmatpush.msra.mxu0 0.0
    %1352 = vmatpush.msra.mxu0 0.0
    %1353 = vmatpush.msra.mxu0 0.0
    %1354 = vmatpush.msra.mxu0 0.0
    %1355 = vmatpush.msra.mxu0 0.0
    %1356 = vmatpush.msra.mxu0 0.0
    %1357 = vmatpush.msra.mxu0 0.0
    %1358 = vmatpush.msra.mxu0 0.0
    %1359 = vmatpush.msra.mxu0 %v1193
    %1360 = vmatpush.msra.mxu0 %v1192
    %1361 = vmatmul.f32.gmra.mxu0 %v1343
    %v1362 = vpop.f32.mrf.mxu0
    %v1363 = vadd.f32 0.0, %v1362
    %1364 = vdwg.mxu0
    %1365 = vmatpush.msra.mxu0 0.0
    %1366 = vmatpush.msra.mxu0 0.0
    %1367 = vmatpush.msra.mxu0 0.0
    %1368 = vmatpush.msra.mxu0 0.0
    %1369 = vmatpush.msra.mxu0 0.0
    %1370 = vmatpush.msra.mxu0 0.0
    %1371 = vmatpush.msra.mxu0 0.0
    %1372 = vmatpush.msra.mxu0 0.0
    %1373 = vmatpush.msra.mxu0 0.0
    %1374 = vmatpush.msra.mxu0 0.0
    %1375 = vmatpush.msra.mxu0 0.0
    %1376 = vmatpush.msra.mxu0 0.0
    %1377 = vmatpush.msra.mxu0 0.0
    %1378 = vmatpush.msra.mxu0 0.0
    %1379 = vmatpush.msra.mxu0 %v1195
    %1380 = vmatpush.msra.mxu0 %v1194
    %1381 = vmatmul.f32.gmra.mxu0 %v1343
    %v1382 = vpop.f32.mrf.mxu0
    %v1383 = vadd.f32 0.0, %v1382
    %1384 = vdwg.mxu0
    %1385 = vrot.lane.b32.xlu0 %v1227, 8
    %v1386 = vpop.permute.xlu0 %1385
    %1387 = vrot.lane.b32.xlu0 %v1247, 8
    %v1388 = vpop.permute.xlu0 %1387
    %1393 = vrot.lane.b32.xlu0 %v1363, 16
    %v1394 = vpop.permute.xlu0 %1393
    %1395 = vrot.lane.b32.xlu0 %v1383, 16
    %v1396 = vpop.permute.xlu0 %1395
    %v1399 = vsel %vm520, %v1317, %v1386
    %v1400 = vsel %vm520, %v1337, %v1388
    %v1401 = vsel %vm530, %v1399, %v1394
    %v1402 = vsel %vm530, %v1400, %v1396
    %v1404 = vsel %vm540, %v1401, 0
    %v1407 = vsel %vm540, %v1402, 0
    %1409 = vmatpush.msra.mxu0 0.0
    %1410 = vmatpush.msra.mxu0 0.0
    %1411 = vmatpush.msra.mxu0 0.0
    %1412 = vmatpush.msra.mxu0 0.0
    %1413 = vmatpush.msra.mxu0 0.0
    %1414 = vmatpush.msra.mxu0 0.0
    %1415 = vmatpush.msra.mxu0 0.0
    %1416 = vmatpush.msra.mxu0 0.0
    %1417 = vmatpush.msra.mxu0 0.0
    %1418 = vmatpush.msra.mxu0 0.0
    %1419 = vmatpush.msra.mxu0 0.0
    %1420 = vmatpush.msra.mxu0 0.0
    %1421 = vmatpush.msra.mxu0 0.0
    %1422 = vmatpush.msra.mxu0 %v1290
    %1423 = vmatpush.msra.mxu0 %v1289
    %1424 = vmatpush.msra.mxu0 %v1288
    %1425 = vmatmul.f32.gmra.mxu0 %v1404
    %v1426 = vpop.f32.mrf.mxu0
    %v1427 = vadd.f32 0.0, %v1426
    %1428 = vmatmul.f32.gmra.mxu0 %v1407
    %v1429 = vpop.f32.mrf.mxu0
    %v1430 = vadd.f32 0.0, %v1429
    %1431 = vdwg.mxu0
    %v1433 = vperm.slane %v1291, 0
    %v1435 = vmul.f32 %v1427, %v1433
    %v1436 = vmul.f32 %v1430, %v1433
    %v1438 = vperm.slane %v1292, 0
    %v1440 = vadd.f32 %v1435, %v1438
    %v1441 = vadd.f32 %v1436, %v1438
    %v1442 = vmax.f32 %v1440, 0.0
    %v1443 = vmax.f32 %v1441, 0.0
    %v1444 = vld [vmem:[%s45] sm:$0xff]
    %v1445 = vld [vmem:[%s45 + $0x8] sm:$0xff]
    %v1446 = vld [vmem:[%s45 + $0x10] sm:$0xff]
    %v1447 = vld [vmem:[%s45 + $0x18] sm:$0xff]
    %v1448 = vld [vmem:[%s45 + $0x20] sm:$0xff]
    %v1449 = vld [vmem:[%s45 + $0x28] sm:$0xff]
    %v1450 = vld [vmem:[%s47] sm:$0x1]
    %v1451 = vld [vmem:[%s49] sm:$0x1]
    %v1453 = vrot.slane %v1442, 7
    %v1456 = vrot.slane %v1443, 5
    %v1458 = vsel %vm362, 0.0, %v1453
    %v1459 = vsel %vm362, %v1453, 0.0
    %v1460 = vsel %vm376, %v1459, 0.0
    %v1461 = vsel %vm353, %v1460, %v1456
    %v1462 = vsel %vm353, %v1456, 0.0
    %v1465 = vrot.slane %v1461, 2
    %v1466 = vrot.slane %v1462, 2
    %v1467 = vsel %vm370, %v1465, %v1466
    %v1470 = vrot.slane %v1458, 1
    %v1471 = vrot.slane %v1461, 1
    %v1472 = vsel %vm385, %v1470, %v1471
    %v1473 = vrot.slane %v1461, 3
    %v1474 = vrot.slane %v1462, 3
    %v1475 = vsel %vm401, %v1473, %v1474
    %v1476 = vrot.slane %v1458, 2
    %v1477 = vsel %vm370, %v1476, %v1465
    %v1478 = vrot.slane %v1461, 4
    %v1479 = vrot.slane %v1462, 4
    %v1480 = vsel %vm413, %v1478, %v1479
    %1481 = vrot.lane.b32.xlu0 %v1472, 16
    %v1482 = vpop.permute.xlu0 %1481
    %1483 = vrot.lane.b32.xlu0 %v1475, 16
    %v1484 = vpop.permute.xlu0 %1483
    %1487 = vrot.lane.b32.xlu0 %v1477, 32
    %v1488 = vpop.permute.xlu0 %1487
    %1489 = vrot.lane.b32.xlu0 %v1480, 32
    %v1490 = vpop.permute.xlu0 %1489
    %v1493 = vsel %vm530, %v1458, %v1482
    %v1494 = vsel %vm530, %v1467, %v1484
    %vm1495 = vcmask 261120
    %v1496 = vsel %vm1495, %v1493, %v1488
    %v1497 = vsel %vm1495, %v1494, %v1490
    %vm1498 = vcmask 392192
    %v1500 = vsel %vm1498, %v1496, 0
    %v1503 = vsel %vm1498, %v1497, 0
    %1505 = vmatpush.msra.mxu0 0.0
    %1506 = vmatpush.msra.mxu0 0.0
    %1507 = vmatpush.msra.mxu0 0.0
    %1508 = vmatpush.msra.mxu0 0.0
    %1509 = vmatpush.msra.mxu0 0.0
    %1510 = vmatpush.msra.mxu0 0.0
    %1511 = vmatpush.msra.mxu0 0.0
    %1512 = vmatpush.msra.mxu0 0.0
    %1513 = vmatpush.msra.mxu0 0.0
    %1514 = vmatpush.msra.mxu0 0.0
    %1515 = vmatpush.msra.mxu0 %v1449
    %1516 = vmatpush.msra.mxu0 %v1448
    %1517 = vmatpush.msra.mxu0 %v1447
    %1518 = vmatpush.msra.mxu0 %v1446
    %1519 = vmatpush.msra.mxu0 %v1445
    %1520 = vmatpush.msra.mxu0 %v1444
    %1521 = vmatmul.f32.gmra.mxu0 %v1500
    %v1522 = vpop.f32.mrf.mxu0
    %v1523 = vadd.f32 0.0, %v1522
    %1524 = vmatmul.f32.gmra.mxu0 %v1503
    %v1525 = vpop.f32.mrf.mxu0
    %v1526 = vadd.f32 0.0, %v1525
    %1527 = vdwg.mxu0
    %v1529 = vperm.slane %v1450, 0
    %v1531 = vmul.f32 %v1523, %v1529
    %v1532 = vmul.f32 %v1526, %v1529
    %v1534 = vperm.slane %v1451, 0
    %v1536 = vadd.f32 %v1531, %v1534
    %v1537 = vadd.f32 %v1532, %v1534
    %v1538 = vadd.f32 %v1536, %v1286
    %v1539 = vadd.f32 %v1537, %v1287
    %v1540 = vmax.f32 %v1538, 0.0
    %v1541 = vmax.f32 %v1539, 0.0
    %v1542 = vld [vmem:[%s51] sm:$0xff]
    %v1543 = vld [vmem:[%s51 + $0x8] sm:$0xff]
    %v1544 = vld [vmem:[%s51 + $0x10] sm:$0xff]
    %v1545 = vld [vmem:[%s51 + $0x18] sm:$0xff]
    %v1546 = vld [vmem:[%s51 + $0x20] sm:$0xff]
    %v1547 = vld [vmem:[%s51 + $0x28] sm:$0xff]
    %v1548 = vld [vmem:[%s53] sm:$0x1]
    %v1549 = vld [vmem:[%s55] sm:$0x1]
    %v1551 = vrot.slane %v1540, 7
    %v1554 = vrot.slane %v1541, 5
    %v1556 = vsel %vm362, 0.0, %v1551
    %v1557 = vsel %vm362, %v1551, 0.0
    %v1558 = vsel %vm376, %v1557, 0.0
    %v1559 = vsel %vm353, %v1558, %v1554
    %v1560 = vsel %vm353, %v1554, 0.0
    %v1563 = vrot.slane %v1559, 2
    %v1564 = vrot.slane %v1560, 2
    %v1565 = vsel %vm370, %v1563, %v1564
    %v1568 = vrot.slane %v1556, 1
    %v1569 = vrot.slane %v1559, 1
    %v1570 = vsel %vm385, %v1568, %v1569
    %v1571 = vrot.slane %v1559, 3
    %v1572 = vrot.slane %v1560, 3
    %v1573 = vsel %vm401, %v1571, %v1572
    %v1574 = vrot.slane %v1556, 2
    %v1575 = vsel %vm370, %v1574, %v1563
    %v1576 = vrot.slane %v1559, 4
    %v1577 = vrot.slane %v1560, 4
    %v1578 = vsel %vm413, %v1576, %v1577
    %1579 = vrot.lane.b32.xlu0 %v1570, 16
    %v1580 = vpop.permute.xlu0 %1579
    %1581 = vrot.lane.b32.xlu0 %v1573, 16
    %v1582 = vpop.permute.xlu0 %1581
    %1585 = vrot.lane.b32.xlu0 %v1575, 32
    %v1586 = vpop.permute.xlu0 %1585
    %1587 = vrot.lane.b32.xlu0 %v1578, 32
    %v1588 = vpop.permute.xlu0 %1587
    %v1591 = vsel %vm530, %v1556, %v1580
    %v1592 = vsel %vm530, %v1565, %v1582
    %v1593 = vsel %vm1495, %v1591, %v1586
    %v1594 = vsel %vm1495, %v1592, %v1588
    %v1596 = vsel %vm1498, %v1593, 0
    %v1599 = vsel %vm1498, %v1594, 0
    %1601 = vmatpush.msra.mxu0 0.0
    %1602 = vmatpush.msra.mxu0 0.0
    %1603 = vmatpush.msra.mxu0 0.0
    %1604 = vmatpush.msra.mxu0 0.0
    %1605 = vmatpush.msra.mxu0 0.0
    %1606 = vmatpush.msra.mxu0 0.0
    %1607 = vmatpush.msra.mxu0 0.0
    %1608 = vmatpush.msra.mxu0 0.0
    %1609 = vmatpush.msra.mxu0 0.0
    %1610 = vmatpush.msra.mxu0 0.0
    %1611 = vmatpush.msra.mxu0 %v1547
    %1612 = vmatpush.msra.mxu0 %v1546
    %1613 = vmatpush.msra.mxu0 %v1545
    %1614 = vmatpush.msra.mxu0 %v1544
    %1615 = vmatpush.msra.mxu0 %v1543
    %1616 = vmatpush.msra.mxu0 %v1542
    %1617 = vmatmul.f32.gmra.mxu0 %v1596
    %v1618 = vpop.f32.mrf.mxu0
    %v1619 = vadd.f32 0.0, %v1618
    %1620 = vmatmul.f32.gmra.mxu0 %v1599
    %v1621 = vpop.f32.mrf.mxu0
    %v1622 = vadd.f32 0.0, %v1621
    %1623 = vdwg.mxu0
    %v1625 = vperm.slane %v1548, 0
    %v1627 = vmul.f32 %v1619, %v1625
    %v1628 = vmul.f32 %v1622, %v1625
    %v1630 = vperm.slane %v1549, 0
    %v1632 = vadd.f32 %v1627, %v1630
    %v1633 = vadd.f32 %v1628, %v1630
    %v1634 = vmax.f32 %v1632, 0.0
    %v1635 = vmax.f32 %v1633, 0.0
    %v1636 = vld [vmem:[%s57] sm:$0xff]
    %v1637 = vld [vmem:[%s57 + $0x8] sm:$0xff]
    %v1638 = vld [vmem:[%s57 + $0x10] sm:$0xff]
    %v1639 = vld [vmem:[%s57 + $0x18] sm:$0xff]
    %v1640 = vld [vmem:[%s57 + $0x20] sm:$0xff]
    %v1641 = vld [vmem:[%s57 + $0x28] sm:$0xff]
    %v1642 = vld [vmem:[%s59] sm:$0x1]
    %v1643 = vld [vmem:[%s61] sm:$0x1]
    %v1645 = vrot.slane %v1634, 7
    %v1648 = vrot.slane %v1635, 5
    %v1650 = vsel %vm362, 0.0, %v1645
    %v1651 = vsel %vm362, %v1645, 0.0
    %v1652 = vsel %vm376, %v1651, 0.0
    %v1653 = vsel %vm353, %v1652, %v1648
    %v1654 = vsel %vm353, %v1648, 0.0
    %v1657 = vrot.slane %v1653, 2
    %v1658 = vrot.slane %v1654, 2
    %v1659 = vsel %vm370, %v1657, %v1658
    %v1662 = vrot.slane %v1650, 1
    %v1663 = vrot.slane %v1653, 1
    %v1664 = vsel %vm385, %v1662, %v1663
    %v1665 = vrot.slane %v1653, 3
    %v1666 = vrot.slane %v1654, 3
    %v1667 = vsel %vm401, %v1665, %v1666
    %v1668 = vrot.slane %v1650, 2
    %v1669 = vsel %vm370, %v1668, %v1657
    %v1670 = vrot.slane %v1653, 4
    %v1671 = vrot.slane %v1654, 4
    %v1672 = vsel %vm413, %v1670, %v1671
    %1673 = vrot.lane.b32.xlu0 %v1664, 16
    %v1674 = vpop.permute.xlu0 %1673
    %1675 = vrot.lane.b32.xlu0 %v1667, 16
    %v1676 = vpop.permute.xlu0 %1675
    %1679 = vrot.lane.b32.xlu0 %v1669, 32
    %v1680 = vpop.permute.xlu0 %1679
    %1681 = vrot.lane.b32.xlu0 %v1672, 32
    %v1682 = vpop.permute.xlu0 %1681
    %v1685 = vsel %vm530, %v1650, %v1674
    %v1686 = vsel %vm530, %v1659, %v1676
    %v1687 = vsel %vm1495, %v1685, %v1680
    %v1688 = vsel %vm1495, %v1686, %v1682
    %v1690 = vsel %vm1498, %v1687, 0
    %v1693 = vsel %vm1498, %v1688, 0
    %1695 = vmatpush.msra.mxu0 0.0
    %1696 = vmatpush.msra.mxu0 0.0
    %1697 = vmatpush.msra.mxu0 0.0
    %1698 = vmatpush.msra.mxu0 0.0
    %1699 = vmatpush.msra.mxu0 0.0
    %1700 = vmatpush.msra.mxu0 0.0
    %1701 = vmatpush.msra.mxu0 0.0
    %1702 = vmatpush.msra.mxu0 0.0
    %1703 = vmatpush.msra.mxu0 0.0
    %1704 = vmatpush.msra.mxu0 0.0
    %1705 = vmatpush.msra.mxu0 %v1641
    %1706 = vmatpush.msra.mxu0 %v1640
    %1707 = vmatpush.msra.mxu0 %v1639
    %1708 = vmatpush.msra.mxu0 %v1638
    %1709 = vmatpush.msra.mxu0 %v1637
    %1710 = vmatpush.msra.mxu0 %v1636
    %1711 = vmatmul.f32.gmra.mxu0 %v1690
    %v1712 = vpop.f32.mrf.mxu0
    %v1713 = vadd.f32 0.0, %v1712
    %1714 = vmatmul.f32.gmra.mxu0 %v1693
    %v1715 = vpop.f32.mrf.mxu0
    %v1716 = vadd.f32 0.0, %v1715
    %1717 = vdwg.mxu0
    %v1719 = vperm.slane %v1642, 0
    %v1721 = vmul.f32 %v1713, %v1719
    %v1722 = vmul.f32 %v1716, %v1719
    %v1724 = vperm.slane %v1643, 0
    %v1726 = vadd.f32 %v1721, %v1724
    %v1727 = vadd.f32 %v1722, %v1724
    %v1728 = vadd.f32 %v1726, %v1540
    %v1729 = vadd.f32 %v1727, %v1541
    %v1730 = vmax.f32 %v1728, 0.0
    %v1731 = vmax.f32 %v1729, 0.0
    %v1732 = vld [vmem:[%s63] sm:$0xff]
    %v1733 = vld [vmem:[%s63 + $0x8] sm:$0xff]
    %v1734 = vld [vmem:[%s65] sm:$0x1]
    %v1735 = vld [vmem:[%s67] sm:$0x1]
    %v1736 = vsel %vm520, %v1205, 0
    %1738 = vmatpush.msra.mxu0 0.0
    %1739 = vmatpush.msra.mxu0 0.0
    %1740 = vmatpush.msra.mxu0 0.0
    %1741 = vmatpush.msra.mxu0 0.0
    %1742 = vmatpush.msra.mxu0 0.0
    %1743 = vmatpush.msra.mxu0 0.0
    %1744 = vmatpush.msra.mxu0 0.0
    %1745 = vmatpush.msra.mxu0 0.0
    %1746 = vmatpush.msra.mxu0 0.0
    %1747 = vmatpush.msra.mxu0 0.0
    %1748 = vmatpush.msra.mxu0 0.0
    %1749 = vmatpush.msra.mxu0 0.0
    %1750 = vmatpush.msra.mxu0 0.0
    %1751 = vmatpush.msra.mxu0 0.0
    %1752 = vmatpush.msra.mxu0 0.0
    %1753 = vmatpush.msra.mxu0 %v1730
    %1754 = vmatmul.f32.gmra.mxu0 %v1736
    %v1755 = vpop.f32.mrf.mxu0
    %v1756 = vadd.f32 0.0, %v1755
    %1757 = vdwg.mxu0
    %1758 = vmatpush.msra.mxu0 0.0
    %1759 = vmatpush.msra.mxu0 0.0
    %1760 = vmatpush.msra.mxu0 0.0
    %1761 = vmatpush.msra.mxu0 0.0
    %1762 = vmatpush.msra.mxu0 0.0
    %1763 = vmatpush.msra.mxu0 0.0
    %1764 = vmatpush.msra.mxu0 0.0
    %1765 = vmatpush.msra.mxu0 0.0
    %1766 = vmatpush.msra.mxu0 0.0
    %1767 = vmatpush.msra.mxu0 0.0
    %1768 = vmatpush.msra.mxu0 0.0
    %1769 = vmatpush.msra.mxu0 0.0
    %1770 = vmatpush.msra.mxu0 0.0
    %1771 = vmatpush.msra.mxu0 0.0
    %1772 = vmatpush.msra.mxu0 0.0
    %1773 = vmatpush.msra.mxu0 %v1731
    %1774 = vmatmul.f32.gmra.mxu0 %v1736
    %v1775 = vpop.f32.mrf.mxu0
    %v1776 = vadd.f32 0.0, %v1775
    %1777 = vdwg.mxu0
    %v1779 = vrot.slane %v1776, 4
    %v1781 = vsel %vm413, %v1756, %v1779
    %v1783 = vsel %vm530, %v1781, 0
    %1785 = vmatpush.msra.mxu0 0.0
    %1786 = vmatpush.msra.mxu0 0.0
    %1787 = vmatpush.msra.mxu0 0.0
    %1788 = vmatpush.msra.mxu0 0.0
    %1789 = vmatpush.msra.mxu0 0.0
    %1790 = vmatpush.msra.mxu0 0.0
    %1791 = vmatpush.msra.mxu0 0.0
    %1792 = vmatpush.msra.mxu0 0.0
    %1793 = vmatpush.msra.mxu0 0.0
    %1794 = vmatpush.msra.mxu0 0.0
    %1795 = vmatpush.msra.mxu0 0.0
    %1796 = vmatpush.msra.mxu0 0.0
    %1797 = vmatpush.msra.mxu0 0.0
    %1798 = vmatpush.msra.mxu0 0.0
    %1799 = vmatpush.msra.mxu0 %v1733
    %1800 = vmatpush.msra.mxu0 %v1732
    %1801 = vmatmul.f32.gmra.mxu0 %v1783
    %v1802 = vpop.f32.mrf.mxu0
    %v1803 = vadd.f32 0.0, %v1802
    %1804 = vdwg.mxu0
    %v1806 = vperm.slane %v1734, 0
    %v1808 = vmul.f32 %v1803, %v1806
    %v1810 = vperm.slane %v1735, 0
    %v1812 = vadd.f32 %v1808, %v1810
    %v1813 = vld [vmem:[%s69] sm:$0xff]
    %v1814 = vld [vmem:[%s69 + $0x8] sm:$0xff]
    %v1815 = vld [vmem:[%s69 + $0x10] sm:$0xff]
    %v1816 = vld [vmem:[%s69 + $0x18] sm:$0xff]
    %v1817 = vld [vmem:[%s69 + $0x20] sm:$0xff]
    %v1818 = vld [vmem:[%s69 + $0x28] sm:$0xff]
    %v1819 = vld [vmem:[%s71] sm:$0x1]
    %v1820 = vld [vmem:[%s73] sm:$0x1]
    %v1821 = vsel %vm520, %v1295, 0
    %1823 = vmatpush.msra.mxu0 0.0
    %1824 = vmatpush.msra.mxu0 0.0
    %1825 = vmatpush.msra.mxu0 0.0
    %1826 = vmatpush.msra.mxu0 0.0
    %1827 = vmatpush.msra.mxu0 0.0
    %1828 = vmatpush.msra.mxu0 0.0
    %1829 = vmatpush.msra.mxu0 0.0
    %1830 = vmatpush.msra.mxu0 0.0
    %1831 = vmatpush.msra.mxu0 0.0
    %1832 = vmatpush.msra.mxu0 0.0
    %1833 = vmatpush.msra.mxu0 0.0
    %1834 = vmatpush.msra.mxu0 0.0
    %1835 = vmatpush.msra.mxu0 0.0
    %1836 = vmatpush.msra.mxu0 0.0
    %1837 = vmatpush.msra.mxu0 0.0
    %1838 = vmatpush.msra.mxu0 %v1730
    %1839 = vmatmul.f32.gmra.mxu0 %v1821
    %v1840 = vpop.f32.mrf.mxu0
    %v1841 = vadd.f32 0.0, %v1840
    %1842 = vdwg.mxu0
    %1843 = vmatpush.msra.mxu0 0.0
    %1844 = vmatpush.msra.mxu0 0.0
    %1845 = vmatpush.msra.mxu0 0.0
    %1846 = vmatpush.msra.mxu0 0.0
    %1847 = vmatpush.msra.mxu0 0.0
    %1848 = vmatpush.msra.mxu0 0.0
    %1849 = vmatpush.msra.mxu0 0.0
    %1850 = vmatpush.msra.mxu0 0.0
    %1851 = vmatpush.msra.mxu0 0.0
    %1852 = vmatpush.msra.mxu0 0.0
    %1853 = vmatpush.msra.mxu0 0.0
    %1854 = vmatpush.msra.mxu0 0.0
    %1855 = vmatpush.msra.mxu0 0.0
    %1856 = vmatpush.msra.mxu0 0.0
    %1857 = vmatpush.msra.mxu0 0.0
    %1858 = vmatpush.msra.mxu0 %v1731
    %1859 = vmatmul.f32.gmra.mxu0 %v1821
    %v1860 = vpop.f32.mrf.mxu0
    %v1861 = vadd.f32 0.0, %v1860
    %1862 = vdwg.mxu0
    %v1864 = vrot.slane %v1861, 4
    %v1866 = vsel %vm413, %v1841, %v1864
    %v1867 = vsel %vm520, %v1341, 0
    %1869 = vmatpush.msra.mxu0 0.0
    %1870 = vmatpush.msra.mxu0 0.0
    %1871 = vmatpush.msra.mxu0 0.0
    %1872 = vmatpush.msra.mxu0 0.0
    %1873 = vmatpush.msra.mxu0 0.0
    %1874 = vmatpush.msra.mxu0 0.0
    %1875 = vmatpush.msra.mxu0 0.0
    %1876 = vmatpush.msra.mxu0 0.0
    %1877 = vmatpush.msra.mxu0 0.0
    %1878 = vmatpush.msra.mxu0 0.0
    %1879 = vmatpush.msra.mxu0 0.0
    %1880 = vmatpush.msra.mxu0 0.0
    %1881 = vmatpush.msra.mxu0 0.0
    %1882 = vmatpush.msra.mxu0 0.0
    %1883 = vmatpush.msra.mxu0 0.0
    %1884 = vmatpush.msra.mxu0 %v1730
    %1885 = vmatmul.f32.gmra.mxu0 %v1867
    %v1886 = vpop.f32.mrf.mxu0
    %v1887 = vadd.f32 0.0, %v1886
    %1888 = vdwg.mxu0
    %1889 = vmatpush.msra.mxu0 0.0
    %1890 = vmatpush.msra.mxu0 0.0
    %1891 = vmatpush.msra.mxu0 0.0
    %1892 = vmatpush.msra.mxu0 0.0
    %1893 = vmatpush.msra.mxu0 0.0
    %1894 = vmatpush.msra.mxu0 0.0
    %1895 = vmatpush.msra.mxu0 0.0
    %1896 = vmatpush.msra.mxu0 0.0
    %1897 = vmatpush.msra.mxu0 0.0
    %1898 = vmatpush.msra.mxu0 0.0
    %1899 = vmatpush.msra.mxu0 0.0
    %1900 = vmatpush.msra.mxu0 0.0
    %1901 = vmatpush.msra.mxu0 0.0
    %1902 = vmatpush.msra.mxu0 0.0
    %1903 = vmatpush.msra.mxu0 0.0
    %1904 = vmatpush.msra.mxu0 %v1731
    %1905 = vmatmul.f32.gmra.mxu0 %v1867
    %v1906 = vpop.f32.mrf.mxu0
    %v1907 = vadd.f32 0.0, %v1906
    %1908 = vdwg.mxu0
    %v1910 = vrot.slane %v1907, 4
    %v1912 = vsel %vm413, %v1887, %v1910
    %1913 = vrot.lane.b32.xlu0 %v1781, 16
    %v1914 = vpop.permute.xlu0 %1913
    %1917 = vrot.lane.b32.xlu0 %v1912, 32
    %v1918 = vpop.permute.xlu0 %1917
    %v1920 = vsel %vm530, %v1866, %v1914
    %v1921 = vsel %vm1495, %v1920, %v1918
    %v1923 = vsel %vm1498, %v1921, 0
    %1925 = vmatpush.msra.mxu0 0.0
    %1926 = vmatpush.msra.mxu0 0.0
    %1927 = vmatpush.msra.mxu0 0.0
    %1928 = vmatpush.msra.mxu0 0.0
    %1929 = vmatpush.msra.mxu0 0.0
    %1930 = vmatpush.msra.mxu0 0.0
    %1931 = vmatpush.msra.mxu0 0.0
    %1932 = vmatpush.msra.mxu0 0.0
    %1933 = vmatpush.msra.mxu0 0.0
    %1934 = vmatpush.msra.mxu0 0.0
    %1935 = vmatpush.msra.mxu0 %v1818
    %1936 = vmatpush.msra.mxu0 %v1817
    %1937 = vmatpush.msra.mxu0 %v1816
    %1938 = vmatpush.msra.mxu0 %v1815
    %1939 = vmatpush.msra.mxu0 %v1814
    %1940 = vmatpush.msra.mxu0 %v1813
    %1941 = vmatmul.f32.gmra.mxu0 %v1923
    %v1942 = vpop.f32.mrf.mxu0
    %v1943 = vadd.f32 0.0, %v1942
    %1944 = vdwg.mxu0
    %v1946 = vperm.slane %v1819, 0
    %v1948 = vmul.f32 %v1943, %v1946
    %v1950 = vperm.slane %v1820, 0
    %v1952 = vadd.f32 %v1948, %v1950
    %v1953 = vmax.f32 %v1952, 0.0
    %v1954 = vld [vmem:[%s75] sm:$0xff]
    %v1955 = vld [vmem:[%s75 + $0x8] sm:$0xff]
    %v1956 = vld [vmem:[%s75 + $0x10] sm:$0xff]
    %v1957 = vld [vmem:[%s75 + $0x18] sm:$0xff]
    %v1958 = vld [vmem:[%s75 + $0x20] sm:$0xff]
    %v1959 = vld [vmem:[%s75 + $0x28] sm:$0xff]
    %v1960 = vld [vmem:[%s75 + $0x30] sm:$0xff]
    %v1961 = vld [vmem:[%s75 + $0x38] sm:$0xff]
    %v1962 = vld [vmem:[%s75 + $0x40] sm:$0xff]
    %v1963 = vld [vmem:[%s75 + $0x48] sm:$0xff]
    %v1964 = vld [vmem:[%s75 + $0x50] sm:$0xff]
    %v1965 = vld [vmem:[%s75 + $0x58] sm:$0xff]
    %v1966 = vld [vmem:[%s77] sm:$0x1]
    %v1967 = vld [vmem:[%s79] sm:$0x1]
    %v1969 = vrot.slane %v1953, 7
    %v1971 = vrot.slane %v1953, 5
    %v1973 = vsel %vm362, 0.0, %v1969
    %v1974 = vsel %vm401, %v1973, 0.0
    %v1975 = vsel %vm370, %v1974, 0.0
    %v1976 = vsel %vm385, %v1975, %v1971
    %v1977 = vsel %vm353, %v1971, 0.0
    %v1980 = vrot.slane %v1976, 2
    %v1981 = vrot.slane %v1977, 2
    %v1982 = vsel %vm370, %v1980, %v1981
    %v1984 = vsel %vm413, %v1976, %v1982
    %v1985 = vrot.slane %v1976, 1
    %v1987 = vrot.slane %v1976, 3
    %v1988 = vrot.slane %v1977, 3
    %v1989 = vsel %vm401, %v1987, %v1988
    %v1991 = vsel %vm413, %v1985, %v1989
    %v1993 = vrot.slane %v1977, 4
    %v1995 = vsel %vm413, %v1980, %v1993
    %1997 = vrot.lane.b32.xlu0 %v1991, 32
    %v1998 = vpop.permute.xlu0 %1997
    %2001 = vrot.lane.b32.xlu0 %v1995, 64
    %v2002 = vpop.permute.xlu0 %2001
    %v2004 = vsel %vm1495, %v1984, %v1998
    %vm2005 = vcmask 523264
    %v2006 = vsel %vm2005, %v2004, %v2002
    %vm2007 = vcmask 785408
    %v2009 = vsel %vm2007, %v2006, 0
    %2011 = vmatpush.msra.mxu0 0.0
    %2012 = vmatpush.msra.mxu0 0.0
    %2013 = vmatpush.msra.mxu0 0.0
    %2014 = vmatpush.msra.mxu0 0.0
    %2015 = vmatpush.msra.mxu0 %v1965
    %2016 = vmatpush.msra.mxu0 %v1964
    %2017 = vmatpush.msra.mxu0 %v1963
    %2018 = vmatpush.msra.mxu0 %v1962
    %2019 = vmatpush.msra.mxu0 %v1961
    %2020 = vmatpush.msra.mxu0 %v1960
    %2021 = vmatpush.msra.mxu0 %v1959
    %2022 = vmatpush.msra.mxu0 %v1958
    %2023 = vmatpush.msra.mxu0 %v1957
    %2024 = vmatpush.msra.mxu0 %v1956
    %2025 = vmatpush.msra.mxu0 %v1955
    %2026 = vmatpush.msra.mxu0 %v1954
    %2027 = vmatmul.f32.gmra.mxu0 %v2009
    %v2028 = vpop.f32.mrf.mxu0
    %v2029 = vadd.f32 0.0, %v2028
    %2030 = vdwg.mxu0
    %v2032 = vperm.slane %v1966, 0
    %v2034 = vmul.f32 %v2029, %v2032
    %v2036 = vperm.slane %v1967, 0
    %v2038 = vadd.f32 %v2034, %v2036
    %v2039 = vadd.f32 %v2038, %v1812
    %v2040 = vmax.f32 %v2039, 0.0
    %v2041 = vld [vmem:[%s81] sm:$0xff]
    %v2042 = vld [vmem:[%s81 + $0x8] sm:$0xff]
    %v2043 = vld [vmem:[%s81 + $0x10] sm:$0xff]
    %v2044 = vld [vmem:[%s81 + $0x18] sm:$0xff]
    %v2045 = vld [vmem:[%s81 + $0x20] sm:$0xff]
    %v2046 = vld [vmem:[%s81 + $0x28] sm:$0xff]
    %v2047 = vld [vmem:[%s81 + $0x30] sm:$0xff]
    %v2048 = vld [vmem:[%s81 + $0x38] sm:$0xff]
    %v2049 = vld [vmem:[%s81 + $0x40] sm:$0xff]
    %v2050 = vld [vmem:[%s81 + $0x48] sm:$0xff]
    %v2051 = vld [vmem:[%s81 + $0x50] sm:$0xff]
    %v2052 = vld [vmem:[%s81 + $0x58] sm:$0xff]
    %v2053 = vld [vmem:[%s83] sm:$0x1]
    %v2054 = vld [vmem:[%s85] sm:$0x1]
    %v2056 = vrot.slane %v2040, 7
    %v2058 = vrot.slane %v2040, 5
    %v2060 = vsel %vm362, 0.0, %v2056
    %v2061 = vsel %vm401, %v2060, 0.0
    %v2062 = vsel %vm370, %v2061, 0.0
    %v2063 = vsel %vm385, %v2062, %v2058
    %v2064 = vsel %vm353, %v2058, 0.0
    %v2067 = vrot.slane %v2063, 2
    %v2068 = vrot.slane %v2064, 2
    %v2069 = vsel %vm370, %v2067, %v2068
    %v2071 = vsel %vm413, %v2063, %v2069
    %v2072 = vrot.slane %v2063, 1
    %v2074 = vrot.slane %v2063, 3
    %v2075 = vrot.slane %v2064, 3
    %v2076 = vsel %vm401, %v2074, %v2075
    %v2078 = vsel %vm413, %v2072, %v2076
    %v2080 = vrot.slane %v2064, 4
    %v2082 = vsel %vm413, %v2067, %v2080
    %2084 = vrot.lane.b32.xlu0 %v2078, 32
    %v2085 = vpop.permute.xlu0 %2084
    %2088 = vrot.lane.b32.xlu0 %v2082, 64
    %v2089 = vpop.permute.xlu0 %2088
    %v2091 = vsel %vm1495, %v2071, %v2085
    %v2092 = vsel %vm2005, %v2091, %v2089
    %v2094 = vsel %vm2007, %v2092, 0
    %2096 = vmatpush.msra.mxu0 0.0
    %2097 = vmatpush.msra.mxu0 0.0
    %2098 = vmatpush.msra.mxu0 0.0
    %2099 = vmatpush.msra.mxu0 0.0
    %2100 = vmatpush.msra.mxu0 %v2052
    %2101 = vmatpush.msra.mxu0 %v2051
    %2102 = vmatpush.msra.mxu0 %v2050
    %2103 = vmatpush.msra.mxu0 %v2049
    %2104 = vmatpush.msra.mxu0 %v2048
    %2105 = vmatpush.msra.mxu0 %v2047
    %2106 = vmatpush.msra.mxu0 %v2046
    %2107 = vmatpush.msra.mxu0 %v2045
    %2108 = vmatpush.msra.mxu0 %v2044
    %2109 = vmatpush.msra.mxu0 %v2043
    %2110 = vmatpush.msra.mxu0 %v2042
    %2111 = vmatpush.msra.mxu0 %v2041
    %2112 = vmatmul.f32.gmra.mxu0 %v2094
    %v2113 = vpop.f32.mrf.mxu0
    %v2114 = vadd.f32 0.0, %v2113
    %2115 = vdwg.mxu0
    %v2117 = vperm.slane %v2053, 0
    %v2119 = vmul.f32 %v2114, %v2117
    %v2121 = vperm.slane %v2054, 0
    %v2123 = vadd.f32 %v2119, %v2121
    %v2124 = vmax.f32 %v2123, 0.0
    %v2125 = vld [vmem:[%s87] sm:$0xff]
    %v2126 = vld [vmem:[%s87 + $0x8] sm:$0xff]
    %v2127 = vld [vmem:[%s87 + $0x10] sm:$0xff]
    %v2128 = vld [vmem:[%s87 + $0x18] sm:$0xff]
    %v2129 = vld [vmem:[%s87 + $0x20] sm:$0xff]
    %v2130 = vld [vmem:[%s87 + $0x28] sm:$0xff]
    %v2131 = vld [vmem:[%s87 + $0x30] sm:$0xff]
    %v2132 = vld [vmem:[%s87 + $0x38] sm:$0xff]
    %v2133 = vld [vmem:[%s87 + $0x40] sm:$0xff]
    %v2134 = vld [vmem:[%s87 + $0x48] sm:$0xff]
    %v2135 = vld [vmem:[%s87 + $0x50] sm:$0xff]
    %v2136 = vld [vmem:[%s87 + $0x58] sm:$0xff]
    %v2137 = vld [vmem:[%s89] sm:$0x1]
    %v2138 = vld [vmem:[%s91] sm:$0x1]
    %v2140 = vrot.slane %v2124, 7
    %v2142 = vrot.slane %v2124, 5
    %v2144 = vsel %vm362, 0.0, %v2140
    %v2145 = vsel %vm401, %v2144, 0.0
    %v2146 = vsel %vm370, %v2145, 0.0
    %v2147 = vsel %vm385, %v2146, %v2142
    %v2148 = vsel %vm353, %v2142, 0.0
    %v2151 = vrot.slane %v2147, 2
    %v2152 = vrot.slane %v2148, 2
    %v2153 = vsel %vm370, %v2151, %v2152
    %v2155 = vsel %vm413, %v2147, %v2153
    %v2156 = vrot.slane %v2147, 1
    %v2158 = vrot.slane %v2147, 3
    %v2159 = vrot.slane %v2148, 3
    %v2160 = vsel %vm401, %v2158, %v2159
    %v2162 = vsel %vm413, %v2156, %v2160
    %v2164 = vrot.slane %v2148, 4
    %v2166 = vsel %vm413, %v2151, %v2164
    %2168 = vrot.lane.b32.xlu0 %v2162, 32
    %v2169 = vpop.permute.xlu0 %2168
    %2172 = vrot.lane.b32.xlu0 %v2166, 64
    %v2173 = vpop.permute.xlu0 %2172
    %v2175 = vsel %vm1495, %v2155, %v2169
    %v2176 = vsel %vm2005, %v2175, %v2173
    %v2178 = vsel %vm2007, %v2176, 0
    %2180 = vmatpush.msra.mxu0 0.0
    %2181 = vmatpush.msra.mxu0 0.0
    %2182 = vmatpush.msra.mxu0 0.0
    %2183 = vmatpush.msra.mxu0 0.0
    %2184 = vmatpush.msra.mxu0 %v2136
    %2185 = vmatpush.msra.mxu0 %v2135
    %2186 = vmatpush.msra.mxu0 %v2134
    %2187 = vmatpush.msra.mxu0 %v2133
    %2188 = vmatpush.msra.mxu0 %v2132
    %2189 = vmatpush.msra.mxu0 %v2131
    %2190 = vmatpush.msra.mxu0 %v2130
    %2191 = vmatpush.msra.mxu0 %v2129
    %2192 = vmatpush.msra.mxu0 %v2128
    %2193 = vmatpush.msra.mxu0 %v2127
    %2194 = vmatpush.msra.mxu0 %v2126
    %2195 = vmatpush.msra.mxu0 %v2125
    %2196 = vmatmul.f32.gmra.mxu0 %v2178
    %v2197 = vpop.f32.mrf.mxu0
    %v2198 = vadd.f32 0.0, %v2197
    %2199 = vdwg.mxu0
    %v2201 = vperm.slane %v2137, 0
    %v2203 = vmul.f32 %v2198, %v2201
    %v2205 = vperm.slane %v2138, 0
    %v2207 = vadd.f32 %v2203, %v2205
    %v2208 = vadd.f32 %v2207, %v2040
    %v2209 = vmax.f32 %v2208, 0.0
    %v2210 = vld [vmem:[%s93] sm:$0xff]
    %v2211 = vld [vmem:[%s93 + $0x8] sm:$0xff]
    %v2212 = vld [vmem:[%s93 + $0x10] sm:$0xff]
    %v2213 = vld [vmem:[%s93 + $0x18] sm:$0xff]
    %v2214 = vld [vmem:[%s95] sm:$0x1]
    %v2215 = vld [vmem:[%s97] sm:$0x1]
    %v2216 = vsel %vm515, %v1205, 0
    %v2219 = vsel %vm413, %v2209, 0
    %2221 = vmatpush.msra.mxu0 0.0
    %2222 = vmatpush.msra.mxu0 0.0
    %2223 = vmatpush.msra.mxu0 0.0
    %2224 = vmatpush.msra.mxu0 0.0
    %2225 = vmatpush.msra.mxu0 0.0
    %2226 = vmatpush.msra.mxu0 0.0
    %2227 = vmatpush.msra.mxu0 0.0
    %2228 = vmatpush.msra.mxu0 0.0
    %2229 = vmatpush.msra.mxu0 0.0
    %2230 = vmatpush.msra.mxu0 0.0
    %2231 = vmatpush.msra.mxu0 0.0
    %2232 = vmatpush.msra.mxu0 0.0
    %2233 = vmatpush.msra.mxu0 0.0
    %2234 = vmatpush.msra.mxu0 0.0
    %2235 = vmatpush.msra.mxu0 0.0
    %2236 = vmatpush.msra.mxu0 %v2219
    %2237 = vmatmul.f32.gmra.mxu0 %v2216
    %v2238 = vpop.f32.mrf.mxu0
    %v2239 = vadd.f32 0.0, %v2238
    %2240 = vdwg.mxu0
    %v2241 = vrot.slane %v2209, 4
    %v2242 = vsel %vm413, %v2241, 0
    %2244 = vmatpush.msra.mxu0 0.0
    %2245 = vmatpush.msra.mxu0 0.0
    %2246 = vmatpush.msra.mxu0 0.0
    %2247 = vmatpush.msra.mxu0 0.0
    %2248 = vmatpush.msra.mxu0 0.0
    %2249 = vmatpush.msra.mxu0 0.0
    %2250 = vmatpush.msra.mxu0 0.0
    %2251 = vmatpush.msra.mxu0 0.0
    %2252 = vmatpush.msra.mxu0 0.0
    %2253 = vmatpush.msra.mxu0 0.0
    %2254 = vmatpush.msra.mxu0 0.0
    %2255 = vmatpush.msra.mxu0 0.0
    %2256 = vmatpush.msra.mxu0 0.0
    %2257 = vmatpush.msra.mxu0 0.0
    %2258 = vmatpush.msra.mxu0 0.0
    %2259 = vmatpush.msra.mxu0 %v2242
    %2260 = vmatmul.f32.gmra.mxu0 %v2216
    %v2261 = vpop.f32.mrf.mxu0
    %v2262 = vadd.f32 0.0, %v2261
    %2263 = vdwg.mxu0
    %v2265 = vrot.slane %v2262, 6
    %v2267 = vsel %vm376, %v2239, %v2265
    %v2269 = vsel %vm1495, %v2267, 0
    %2271 = vmatpush.msra.mxu0 0.0
    %2272 = vmatpush.msra.mxu0 0.0
    %2273 = vmatpush.msra.mxu0 0.0
    %2274 = vmatpush.msra.mxu0 0.0
    %2275 = vmatpush.msra.mxu0 0.0
    %2276 = vmatpush.msra.mxu0 0.0
    %2277 = vmatpush.msra.mxu0 0.0
    %2278 = vmatpush.msra.mxu0 0.0
    %2279 = vmatpush.msra.mxu0 0.0
    %2280 = vmatpush.msra.mxu0 0.0
    %2281 = vmatpush.msra.mxu0 0.0
    %2282 = vmatpush.msra.mxu0 0.0
    %2283 = vmatpush.msra.mxu0 %v2213
    %2284 = vmatpush.msra.mxu0 %v2212
    %2285 = vmatpush.msra.mxu0 %v2211
    %2286 = vmatpush.msra.mxu0 %v2210
    %2287 = vmatmul.f32.gmra.mxu0 %v2269
    %v2288 = vpop.f32.mrf.mxu0
    %v2289 = vadd.f32 0.0, %v2288
    %2290 = vdwg.mxu0
    %v2292 = vperm.slane %v2214, 0
    %v2294 = vmul.f32 %v2289, %v2292
    %v2296 = vperm.slane %v2215, 0
    %v2298 = vadd.f32 %v2294, %v2296
    %v2299 = vld [vmem:[%s99] sm:$0xff]
    %v2300 = vld [vmem:[%s99 + $0x8] sm:$0xff]
    %v2301 = vld [vmem:[%s99 + $0x10] sm:$0xff]
    %v2302 = vld [vmem:[%s99 + $0x18] sm:$0xff]
    %v2303 = vld [vmem:[%s99 + $0x20] sm:$0xff]
    %v2304 = vld [vmem:[%s99 + $0x28] sm:$0xff]
    %v2305 = vld [vmem:[%s99 + $0x30] sm:$0xff]
    %v2306 = vld [vmem:[%s99 + $0x38] sm:$0xff]
    %v2307 = vld [vmem:[%s99 + $0x40] sm:$0xff]
    %v2308 = vld [vmem:[%s99 + $0x48] sm:$0xff]
    %v2309 = vld [vmem:[%s99 + $0x50] sm:$0xff]
    %v2310 = vld [vmem:[%s99 + $0x58] sm:$0xff]
    %v2311 = vld [vmem:[%s101] sm:$0x1]
    %v2312 = vld [vmem:[%s103] sm:$0x1]
    %v2313 = vsel %vm515, %v1295, 0
    %2315 = vmatpush.msra.mxu0 0.0
    %2316 = vmatpush.msra.mxu0 0.0
    %2317 = vmatpush.msra.mxu0 0.0
    %2318 = vmatpush.msra.mxu0 0.0
    %2319 = vmatpush.msra.mxu0 0.0
    %2320 = vmatpush.msra.mxu0 0.0
    %2321 = vmatpush.msra.mxu0 0.0
    %2322 = vmatpush.msra.mxu0 0.0
    %2323 = vmatpush.msra.mxu0 0.0
    %2324 = vmatpush.msra.mxu0 0.0
    %2325 = vmatpush.msra.mxu0 0.0
    %2326 = vmatpush.msra.mxu0 0.0
    %2327 = vmatpush.msra.mxu0 0.0
    %2328 = vmatpush.msra.mxu0 0.0
    %2329 = vmatpush.msra.mxu0 0.0
    %2330 = vmatpush.msra.mxu0 %v2219
    %2331 = vmatmul.f32.gmra.mxu0 %v2313
    %v2332 = vpop.f32.mrf.mxu0
    %v2333 = vadd.f32 0.0, %v2332
    %2334 = vdwg.mxu0
    %2335 = vmatpush.msra.mxu0 0.0
    %2336 = vmatpush.msra.mxu0 0.0
    %2337 = vmatpush.msra.mxu0 0.0
    %2338 = vmatpush.msra.mxu0 0.0
    %2339 = vmatpush.msra.mxu0 0.0
    %2340 = vmatpush.msra.mxu0 0.0
    %2341 = vmatpush.msra.mxu0 0.0
    %2342 = vmatpush.msra.mxu0 0.0
    %2343 = vmatpush.msra.mxu0 0.0
    %2344 = vmatpush.msra.mxu0 0.0
    %2345 = vmatpush.msra.mxu0 0.0
    %2346 = vmatpush.msra.mxu0 0.0
    %2347 = vmatpush.msra.mxu0 0.0
    %2348 = vmatpush.msra.mxu0 0.0
    %2349 = vmatpush.msra.mxu0 0.0
    %2350 = vmatpush.msra.mxu0 %v2242
    %2351 = vmatmul.f32.gmra.mxu0 %v2313
    %v2352 = vpop.f32.mrf.mxu0
    %v2353 = vadd.f32 0.0, %v2352
    %2354 = vdwg.mxu0
    %v2356 = vrot.slane %v2353, 6
    %v2358 = vsel %vm376, %v2333, %v2356
    %v2359 = vsel %vm515, %v1341, 0
    %2361 = vmatpush.msra.mxu0 0.0
    %2362 = vmatpush.msra.mxu0 0.0
    %2363 = vmatpush.msra.mxu0 0.0
    %2364 = vmatpush.msra.mxu0 0.0
    %2365 = vmatpush.msra.mxu0 0.0
    %2366 = vmatpush.msra.mxu0 0.0
    %2367 = vmatpush.msra.mxu0 0.0
    %2368 = vmatpush.msra.mxu0 0.0
    %2369 = vmatpush.msra.mxu0 0.0
    %2370 = vmatpush.msra.mxu0 0.0
    %2371 = vmatpush.msra.mxu0 0.0
    %2372 = vmatpush.msra.mxu0 0.0
    %2373 = vmatpush.msra.mxu0 0.0
    %2374 = vmatpush.msra.mxu0 0.0
    %2375 = vmatpush.msra.mxu0 0.0
    %2376 = vmatpush.msra.mxu0 %v2219
    %2377 = vmatmul.f32.gmra.mxu0 %v2359
    %v2378 = vpop.f32.mrf.mxu0
    %v2379 = vadd.f32 0.0, %v2378
    %2380 = vdwg.mxu0
    %2381 = vmatpush.msra.mxu0 0.0
    %2382 = vmatpush.msra.mxu0 0.0
    %2383 = vmatpush.msra.mxu0 0.0
    %2384 = vmatpush.msra.mxu0 0.0
    %2385 = vmatpush.msra.mxu0 0.0
    %2386 = vmatpush.msra.mxu0 0.0
    %2387 = vmatpush.msra.mxu0 0.0
    %2388 = vmatpush.msra.mxu0 0.0
    %2389 = vmatpush.msra.mxu0 0.0
    %2390 = vmatpush.msra.mxu0 0.0
    %2391 = vmatpush.msra.mxu0 0.0
    %2392 = vmatpush.msra.mxu0 0.0
    %2393 = vmatpush.msra.mxu0 0.0
    %2394 = vmatpush.msra.mxu0 0.0
    %2395 = vmatpush.msra.mxu0 0.0
    %2396 = vmatpush.msra.mxu0 %v2242
    %2397 = vmatmul.f32.gmra.mxu0 %v2359
    %v2398 = vpop.f32.mrf.mxu0
    %v2399 = vadd.f32 0.0, %v2398
    %2400 = vdwg.mxu0
    %v2402 = vrot.slane %v2399, 6
    %v2404 = vsel %vm376, %v2379, %v2402
    %2405 = vrot.lane.b32.xlu0 %v2267, 32
    %v2406 = vpop.permute.xlu0 %2405
    %2409 = vrot.lane.b32.xlu0 %v2404, 64
    %v2410 = vpop.permute.xlu0 %2409
    %v2412 = vsel %vm1495, %v2358, %v2406
    %v2413 = vsel %vm2005, %v2412, %v2410
    %v2415 = vsel %vm2007, %v2413, 0
    %2417 = vmatpush.msra.mxu0 0.0
    %2418 = vmatpush.msra.mxu0 0.0
    %2419 = vmatpush.msra.mxu0 0.0
    %2420 = vmatpush.msra.mxu0 0.0
    %2421 = vmatpush.msra.mxu0 %v2310
    %2422 = vmatpush.msra.mxu0 %v2309
    %2423 = vmatpush.msra.mxu0 %v2308
    %2424 = vmatpush.msra.mxu0 %v2307
    %2425 = vmatpush.msra.mxu0 %v2306
    %2426 = vmatpush.msra.mxu0 %v2305
    %2427 = vmatpush.msra.mxu0 %v2304
    %2428 = vmatpush.msra.mxu0 %v2303
    %2429 = vmatpush.msra.mxu0 %v2302
    %2430 = vmatpush.msra.mxu0 %v2301
    %2431 = vmatpush.msra.mxu0 %v2300
    %2432 = vmatpush.msra.mxu0 %v2299
    %2433 = vmatmul.f32.gmra.mxu0 %v2415
    %v2434 = vpop.f32.mrf.mxu0
    %v2435 = vadd.f32 0.0, %v2434
    %2436 = vdwg.mxu0
    %v2438 = vperm.slane %v2311, 0
    %v2440 = vmul.f32 %v2435, %v2438
    %v2442 = vperm.slane %v2312, 0
    %v2444 = vadd.f32 %v2440, %v2442
    %v2445 = vmax.f32 %v2444, 0.0
    %v2446 = vld [vmem:[%s105] sm:$0xff]
    %v2447 = vld [vmem:[%s105 + $0x8] sm:$0xff]
    %v2448 = vld [vmem:[%s105 + $0x10] sm:$0xff]
    %v2449 = vld [vmem:[%s105 + $0x18] sm:$0xff]
    %v2450 = vld [vmem:[%s105 + $0x20] sm:$0xff]
    %v2451 = vld [vmem:[%s105 + $0x28] sm:$0xff]
    %v2452 = vld [vmem:[%s105 + $0x30] sm:$0xff]
    %v2453 = vld [vmem:[%s105 + $0x38] sm:$0xff]
    %v2454 = vld [vmem:[%s105 + $0x40] sm:$0xff]
    %v2455 = vld [vmem:[%s105 + $0x48] sm:$0xff]
    %v2456 = vld [vmem:[%s105 + $0x50] sm:$0xff]
    %v2457 = vld [vmem:[%s105 + $0x58] sm:$0xff]
    %v2458 = vld [vmem:[%s105 + $0x60] sm:$0xff]
    %v2459 = vld [vmem:[%s105 + $0x68] sm:$0xff]
    %v2460 = vld [vmem:[%s105 + $0x70] sm:$0xff]
    %v2461 = vld [vmem:[%s105 + $0x78] sm:$0xff]
    %v2462 = vld [vmem:[%s105 + $0x80] sm:$0xff]
    %v2463 = vld [vmem:[%s105 + $0x88] sm:$0xff]
    %v2464 = vld [vmem:[%s105 + $0x90] sm:$0xff]
    %v2465 = vld [vmem:[%s105 + $0x98] sm:$0xff]
    %v2466 = vld [vmem:[%s105 + $0xa0] sm:$0xff]
    %v2467 = vld [vmem:[%s105 + $0xa8] sm:$0xff]
    %v2468 = vld [vmem:[%s105 + $0xb0] sm:$0xff]
    %v2469 = vld [vmem:[%s105 + $0xb8] sm:$0xff]
    %v2470 = vld [vmem:[%s107] sm:$0x1]
    %v2471 = vld [vmem:[#allocation2] sm:$0x1]
    %v2473 = vrot.slane %v2445, 7
    %v2475 = vrot.slane %v2445, 5
    %v2477 = vsel %vm362, 0.0, %v2473
    %v2478 = vsel %vm353, %v2477, 0.0
    %v2479 = vsel %vm413, %v2478, 0.0
    %v2480 = vsel %vm401, %v2479, %v2475
    %v2481 = vsel %vm385, %v2480, 0.0
    %v2483 = vrot.slane %v2481, 2
    %v2485 = vsel %vm376, %v2481, %v2483
    %v2486 = vrot.slane %v2481, 1
    %v2488 = vrot.slane %v2481, 3
    %v2490 = vsel %vm376, %v2486, %v2488
    %v2491 = vrot.slane %v2481, 4
    %v2493 = vsel %vm376, %v2483, %v2491
    %2495 = vrot.lane.b32.xlu0 %v2490, 64
    %v2496 = vpop.permute.xlu0 %2495
    %v2498 = vsel %vm2005, %v2485, %v2496
    %v2500 = vsel %vm2005, %v2493, 0
    %2502 = vmatpush.msra.mxu0 %v2461
    %2503 = vmatpush.msra.mxu0 %v2460
    %2504 = vmatpush.msra.mxu0 %v2459
    %2505 = vmatpush.msra.mxu0 %v2458
    %2506 = vmatpush.msra.mxu0 %v2457
    %2507 = vmatpush.msra.mxu0 %v2456
    %2508 = vmatpush.msra.mxu0 %v2455
    %2509 = vmatpush.msra.mxu0 %v2454
    %2510 = vmatpush.msra.mxu0 %v2453
    %2511 = vmatpush.msra.mxu0 %v2452
    %2512 = vmatpush.msra.mxu0 %v2451
    %2513 = vmatpush.msra.mxu0 %v2450
    %2514 = vmatpush.msra.mxu0 %v2449
    %2515 = vmatpush.msra.mxu0 %v2448
    %2516 = vmatpush.msra.mxu0 %v2447
    %2517 = vmatpush.msra.mxu0 %v2446
    %2518 = vmatmul.f32.gmra.mxu0 %v2498
    %v2519 = vpop.f32.mrf.mxu0
    %v2520 = vadd.f32 0.0, %v2519
    %2521 = vdwg.mxu0
    %2522 = vmatpush.msra.mxu0 0.0
    %2523 = vmatpush.msra.mxu0 0.0
    %2524 = vmatpush.msra.mxu0 0.0
    %2525 = vmatpush.msra.mxu0 0.0
    %2526 = vmatpush.msra.mxu0 0.0
    %2527 = vmatpush.msra.mxu0 0.0
    %2528 = vmatpush.msra.mxu0 0.0
    %2529 = vmatpush.msra.mxu0 0.0
    %2530 = vmatpush.msra.mxu0 %v2469
    %2531 = vmatpush.msra.mxu0 %v2468
    %2532 = vmatpush.msra.mxu0 %v2467
    %2533 = vmatpush.msra.mxu0 %v2466
    %2534 = vmatpush.msra.mxu0 %v2465
    %2535 = vmatpush.msra.mxu0 %v2464
    %2536 = vmatpush.msra.mxu0 %v2463
    %2537 = vmatpush.msra.mxu0 %v2462
    %2538 = vmatmul.f32.gmra.mxu0 %v2500
    %v2539 = vpop.f32.mrf.mxu0
    %v2540 = vadd.f32 %v2520, %v2539
    %2541 = vdwg.mxu0
    %v2543 = vperm.slane %v2470, 0
    %v2545 = vmul.f32 %v2540, %v2543
    %v2547 = vperm.slane %v2471, 0
    %v2549 = vadd.f32 %v2545, %v2547
    %v2550 = vadd.f32 %v2549, %v2298
    %v2551 = vmax.f32 %v2550, 0.0
    %v2552 = vld [vmem:[%s111] sm:$0xff]
    %v2553 = vld [vmem:[%s111 + $0x8] sm:$0xff]
    %v2554 = vld [vmem:[%s111 + $0x10] sm:$0xff]
    %v2555 = vld [vmem:[%s111 + $0x18] sm:$0xff]
    %v2556 = vld [vmem:[%s111 + $0x20] sm:$0xff]
    %v2557 = vld [vmem:[%s111 + $0x28] sm:$0xff]
    %v2558 = vld [vmem:[%s111 + $0x30] sm:$0xff]
    %v2559 = vld [vmem:[%s111 + $0x38] sm:$0xff]
    %v2560 = vld [vmem:[%s111 + $0x40] sm:$0xff]
    %v2561 = vld [vmem:[%s111 + $0x48] sm:$0xff]
    %v2562 = vld [vmem:[%s111 + $0x50] sm:$0xff]
    %v2563 = vld [vmem:[%s111 + $0x58] sm:$0xff]
    %v2564 = vld [vmem:[%s111 + $0x60] sm:$0xff]
    %v2565 = vld [vmem:[%s111 + $0x68] sm:$0xff]
    %v2566 = vld [vmem:[%s111 + $0x70] sm:$0xff]
    %v2567 = vld [vmem:[%s111 + $0x78] sm:$0xff]
    %v2568 = vld [vmem:[%s111 + $0x80] sm:$0xff]
    %v2569 = vld [vmem:[%s111 + $0x88] sm:$0xff]
    %v2570 = vld [vmem:[%s111 + $0x90] sm:$0xff]
    %v2571 = vld [vmem:[%s111 + $0x98] sm:$0xff]
    %v2572 = vld [vmem:[%s111 + $0xa0] sm:$0xff]
    %v2573 = vld [vmem:[%s111 + $0xa8] sm:$0xff]
    %v2574 = vld [vmem:[%s111 + $0xb0] sm:$0xff]
    %v2575 = vld [vmem:[%s111 + $0xb8] sm:$0xff]
    %v2576 = vld [vmem:[#allocation5] sm:$0x1]
    %v2577 = vld [vmem:[#allocation7] sm:$0x1]
    %v2579 = vrot.slane %v2551, 7
    %v2581 = vrot.slane %v2551, 5
    %v2583 = vsel %vm362, 0.0, %v2579
    %v2584 = vsel %vm353, %v2583, 0.0
    %v2585 = vsel %vm413, %v2584, 0.0
    %v2586 = vsel %vm401, %v2585, %v2581
    %v2587 = vsel %vm385, %v2586, 0.0
    %v2589 = vrot.slane %v2587, 2
    %v2591 = vsel %vm376, %v2587, %v2589
    %v2592 = vrot.slane %v2587, 1
    %v2594 = vrot.slane %v2587, 3
    %v2596 = vsel %vm376, %v2592, %v2594
    %v2597 = vrot.slane %v2587, 4
    %v2599 = vsel %vm376, %v2589, %v2597
    %2601 = vrot.lane.b32.xlu0 %v2596, 64
    %v2602 = vpop.permute.xlu0 %2601
    %v2604 = vsel %vm2005, %v2591, %v2602
    %v2606 = vsel %vm2005, %v2599, 0
    %2608 = vmatpush.msra.mxu0 %v2567
    %2609 = vmatpush.msra.mxu0 %v2566
    %2610 = vmatpush.msra.mxu0 %v2565
    %2611 = vmatpush.msra.mxu0 %v2564
    %2612 = vmatpush.msra.mxu0 %v2563
    %2613 = vmatpush.msra.mxu0 %v2562
    %2614 = vmatpush.msra.mxu0 %v2561
    %2615 = vmatpush.msra.mxu0 %v2560
    %2616 = vmatpush.msra.mxu0 %v2559
    %2617 = vmatpush.msra.mxu0 %v2558
    %2618 = vmatpush.msra.mxu0 %v2557
    %2619 = vmatpush.msra.mxu0 %v2556
    %2620 = vmatpush.msra.mxu0 %v2555
    %2621 = vmatpush.msra.mxu0 %v2554
    %2622 = vmatpush.msra.mxu0 %v2553
    %2623 = vmatpush.msra.mxu0 %v2552
    %2624 = vmatmul.f32.gmra.mxu0 %v2604
    %v2625 = vpop.f32.mrf.mxu0
    %v2626 = vadd.f32 0.0, %v2625
    %2627 = vdwg.mxu0
    %2628 = vmatpush.msra.mxu0 0.0
    %2629 = vmatpush.msra.mxu0 0.0
    %2630 = vmatpush.msra.mxu0 0.0
    %2631 = vmatpush.msra.mxu0 0.0
    %2632 = vmatpush.msra.mxu0 0.0
    %2633 = vmatpush.msra.mxu0 0.0
    %2634 = vmatpush.msra.mxu0 0.0
    %2635 = vmatpush.msra.mxu0 0.0
    %2636 = vmatpush.msra.mxu0 %v2575
    %2637 = vmatpush.msra.mxu0 %v2574
    %2638 = vmatpush.msra.mxu0 %v2573
    %2639 = vmatpush.msra.mxu0 %v2572
    %2640 = vmatpush.msra.mxu0 %v2571
    %2641 = vmatpush.msra.mxu0 %v2570
    %2642 = vmatpush.msra.mxu0 %v2569
    %2643 = vmatpush.msra.mxu0 %v2568
    %2644 = vmatmul.f32.gmra.mxu0 %v2606
    %v2645 = vpop.f32.mrf.mxu0
    %v2646 = vadd.f32 %v2626, %v2645
    %2647 = vdwg.mxu0
    %v2649 = vperm.slane %v2576, 0
    %v2651 = vmul.f32 %v2646, %v2649
    %v2653 = vperm.slane %v2577, 0
    %v2655 = vadd.f32 %v2651, %v2653
    %v2656 = vmax.f32 %v2655, 0.0
    %v2657 = vld [vmem:[%s117] sm:$0xff]
    %v2658 = vld [vmem:[%s117 + $0x8] sm:$0xff]
    %v2659 = vld [vmem:[%s117 + $0x10] sm:$0xff]
    %v2660 = vld [vmem:[%s117 + $0x18] sm:$0xff]
    %v2661 = vld [vmem:[%s117 + $0x20] sm:$0xff]
    %v2662 = vld [vmem:[%s117 + $0x28] sm:$0xff]
    %v2663 = vld [vmem:[%s117 + $0x30] sm:$0xff]
    %v2664 = vld [vmem:[%s117 + $0x38] sm:$0xff]
    %v2665 = vld [vmem:[%s117 + $0x40] sm:$0xff]
    %v2666 = vld [vmem:[%s117 + $0x48] sm:$0xff]
    %v2667 = vld [vmem:[%s117 + $0x50] sm:$0xff]
    %v2668 = vld [vmem:[%s117 + $0x58] sm:$0xff]
    %v2669 = vld [vmem:[%s117 + $0x60] sm:$0xff]
    %v2670 = vld [vmem:[%s117 + $0x68] sm:$0xff]
    %v2671 = vld [vmem:[%s117 + $0x70] sm:$0xff]
    %v2672 = vld [vmem:[%s117 + $0x78] sm:$0xff]
    %v2673 = vld [vmem:[%s117 + $0x80] sm:$0xff]
    %v2674 = vld [vmem:[%s117 + $0x88] sm:$0xff]
    %v2675 = vld [vmem:[%s117 + $0x90] sm:$0xff]
    %v2676 = vld [vmem:[%s117 + $0x98] sm:$0xff]
    %v2677 = vld [vmem:[%s117 + $0xa0] sm:$0xff]
    %v2678 = vld [vmem:[%s117 + $0xa8] sm:$0xff]
    %v2679 = vld [vmem:[%s117 + $0xb0] sm:$0xff]
    %v2680 = vld [vmem:[%s117 + $0xb8] sm:$0xff]
    %v2681 = vld [vmem:[#allocation8] sm:$0x1]
    %v2682 = vld [vmem:[#allocation10] sm:$0x1]
    %v2684 = vrot.slane %v2656, 7
    %v2686 = vrot.slane %v2656, 5
    %v2688 = vsel %vm362, 0.0, %v2684
    %v2689 = vsel %vm353, %v2688, 0.0
    %v2690 = vsel %vm413, %v2689, 0.0
    %v2691 = vsel %vm401, %v2690, %v2686
    %v2692 = vsel %vm385, %v2691, 0.0
    %v2694 = vrot.slane %v2692, 2
    %v2696 = vsel %vm376, %v2692, %v2694
    %v2697 = vrot.slane %v2692, 1
    %v2699 = vrot.slane %v2692, 3
    %v2701 = vsel %vm376, %v2697, %v2699
    %v2702 = vrot.slane %v2692, 4
    %v2704 = vsel %vm376, %v2694, %v2702
    %2706 = vrot.lane.b32.xlu0 %v2701, 64
    %v2707 = vpop.permute.xlu0 %2706
    %v2709 = vsel %vm2005, %v2696, %v2707
    %v2711 = vsel %vm2005, %v2704, 0
    %2713 = vmatpush.msra.mxu0 %v2672
    %2714 = vmatpush.msra.mxu0 %v2671
    %2715 = vmatpush.msra.mxu0 %v2670
    %2716 = vmatpush.msra.mxu0 %v2669
    %2717 = vmatpush.msra.mxu0 %v2668
    %2718 = vmatpush.msra.mxu0 %v2667
    %2719 = vmatpush.msra.mxu0 %v2666
    %2720 = vmatpush.msra.mxu0 %v2665
    %2721 = vmatpush.msra.mxu0 %v2664
    %2722 = vmatpush.msra.mxu0 %v2663
    %2723 = vmatpush.msra.mxu0 %v2662
    %2724 = vmatpush.msra.mxu0 %v2661
    %2725 = vmatpush.msra.mxu0 %v2660
    %2726 = vmatpush.msra.mxu0 %v2659
    %2727 = vmatpush.msra.mxu0 %v2658
    %2728 = vmatpush.msra.mxu0 %v2657
    %2729 = vmatmul.f32.gmra.mxu0 %v2709
    %v2730 = vpop.f32.mrf.mxu0
    %v2731 = vadd.f32 0.0, %v2730
    %2732 = vdwg.mxu0
    %2733 = vmatpush.msra.mxu0 0.0
    %2734 = vmatpush.msra.mxu0 0.0
    %2735 = vmatpush.msra.mxu0 0.0
    %2736 = vmatpush.msra.mxu0 0.0
    %2737 = vmatpush.msra.mxu0 0.0
    %2738 = vmatpush.msra.mxu0 0.0
    %2739 = vmatpush.msra.mxu0 0.0
    %2740 = vmatpush.msra.mxu0 0.0
    %2741 = vmatpush.msra.mxu0 %v2680
    %2742 = vmatpush.msra.mxu0 %v2679
    %2743 = vmatpush.msra.mxu0 %v2678
    %2744 = vmatpush.msra.mxu0 %v2677
    %2745 = vmatpush.msra.mxu0 %v2676
    %2746 = vmatpush.msra.mxu0 %v2675
    %2747 = vmatpush.msra.mxu0 %v2674
    %2748 = vmatpush.msra.mxu0 %v2673
    %2749 = vmatmul.f32.gmra.mxu0 %v2711
    %v2750 = vpop.f32.mrf.mxu0
    %v2751 = vadd.f32 %v2731, %v2750
    %2752 = vdwg.mxu0
    %v2754 = vperm.slane %v2681, 0
    %v2756 = vmul.f32 %v2751, %v2754
    %v2758 = vperm.slane %v2682, 0
    %v2760 = vadd.f32 %v2756, %v2758
    %v2761 = vadd.f32 %v2760, %v2551
    %v2762 = vmax.f32 %v2761, 0.0
    %v2763 = vld [vmem:[%s123] sm:$0xff]
    %v2764 = vld [vmem:[%s123 + $0x8] sm:$0xff]
    %v2765 = vld [vmem:[%s123 + $0x10] sm:$0xff]
    %v2766 = vld [vmem:[%s123 + $0x18] sm:$0xff]
    %v2767 = vld [vmem:[%s123 + $0x20] sm:$0xff]
    %v2768 = vld [vmem:[%s123 + $0x28] sm:$0xff]
    %v2769 = vld [vmem:[%s123 + $0x30] sm:$0xff]
    %v2770 = vld [vmem:[%s123 + $0x38] sm:$0xff]
    %v2771 = vld [vmem:[#allocation11] sm:$0x1]
    %vm2772 = vcmask 517120
    %v2773 = vsel %vm2772, %v2762, 0.0
    %v2774 = vrot.slane %v2773, 4
    %v2775 = vadd.f32 %v2773, %v2774
    %v2776 = vrot.slane %v2775, 2
    %v2777 = vadd.f32 %v2775, %v2776
    %v2778 = vrot.slane %v2777, 1
    %v2779 = vadd.f32 %v2777, %v2778
    %v2780 = vrcp.pop 2.0
    %v2781 = vmul.f32 2.0, %v2780
    %v2782 = vsub.f32 1.0, %v2781
    %v2783 = vmul.f32 %v2780, %v2782
    %v2784 = vadd.f32 %v2780, %v2783
    %vm2785 = vweird.f32 %v2780
    %v2786 = vsel %vm2785, %v2780, %v2784
    %v2787 = vmul.f32 %v2779, %v2786
    %v2789 = vrot.slane %v2762, 2
    %v2791 = vsel %vm2772, %v2789, 0.0
    %v2792 = vrot.slane %v2791, 4
    %v2793 = vadd.f32 %v2791, %v2792
    %v2794 = vrot.slane %v2793, 2
    %v2795 = vadd.f32 %v2793, %v2794
    %v2796 = vrot.slane %v2795, 1
    %v2797 = vadd.f32 %v2795, %v2796
    %v2798 = vmul.f32 %v2797, %v2786
    %v2799 = vsel %vm362, %v2787, %v2798
    %v2801 = vperm.slane %v2771, 0
    %v2804 = vsel %vm2005, %v2799, 0
    %2806 = vmatpush.msra.mxu0 0.0
    %2807 = vmatpush.msra.mxu0 0.0
    %2808 = vmatpush.msra.mxu0 0.0
    %2809 = vmatpush.msra.mxu0 0.0
    %2810 = vmatpush.msra.mxu0 0.0
    %2811 = vmatpush.msra.mxu0 0.0
    %2812 = vmatpush.msra.mxu0 0.0
    %2813 = vmatpush.msra.mxu0 0.0
    %2814 = vmatpush.msra.mxu0 %v2770
    %2815 = vmatpush.msra.mxu0 %v2769
    %2816 = vmatpush.msra.mxu0 %v2768
    %2817 = vmatpush.msra.mxu0 %v2767
    %2818 = vmatpush.msra.mxu0 %v2766
    %2819 = vmatpush.msra.mxu0 %v2765
    %2820 = vmatpush.msra.mxu0 %v2764
    %2821 = vmatpush.msra.mxu0 %v2763
    %2822 = vmatmul.f32.gmra.mxu0 %v2804
    %v2823 = vpop.f32.mrf.mxu0
    %v2824 = vadd.f32 %v2801, %v2823
    %2825 = vdwg.mxu0
    %vm2826 = vcmask 17408
    %2827 = vst.msk [vmem:[#allocation13] sm:$0x3] %vm2826, %v2824
    // Predicated region
    $region278: #{forward.1} parent=1 // pred_check
      _
    $region279: #{forward.1} parent=1 // pred_check_branch
      %2829 = sbr.rel (0) target = $region281
    $region280: #{forward.1} parent=1 // pred_region
      %2831 = vsyncadd [#allocation4], 0
      %s2833 = sshll.u32 [#allocation13], 4
      %s2834 = int_to_ptr.vmem [resolvable:$true] %s2833
      %s2835 = sshll.u32 %s127, 4
      %s2836 = int_to_ptr.hbm [resolvable:$true] %s2835
      %2838 = dma.vmem_to_hbm [thread:$0]  %s2834, 32, %s2836, [#allocation4]
    $region281: #{forward.1} parent=1 // pred_fallthru
      _
    // Predicated region
    $region282: #{forward.1} parent=1 // pred_check
      _
    $region283: #{forward.1} parent=1 // pred_check_branch
      %2840 = sbr.rel (0) target = $region285
    $region284: #{forward.1} parent=1 // pred_region
      %2842 = dma.done [#allocation4], 32
    $region285: #{forward.1} parent=1 // pred_fallthru
      _
    %2843 = vsyncpa [#allocation3], 1
    %2844 = vsyncpa [#allocation6], 1
    %2845 = vsyncpa [#allocation9], 1
    %2846 = vsyncpa [#allocation12], 1
    %2847 = vsyncpa [#allocation4], 1

</llo_original>
